<compile_context>
chip_gen: v6e
topology: v6e:2x2x1
jax: 0.10.0
libtpu: 0.0.40
codegen_flags: <defaults>
</compile_context>

<pallas_src>
import math
import functools

import jax
import jax.numpy as jnp
from jax.experimental import pallas as pl
from jax.experimental.pallas import tpu as pltpu


# Packed-parameter slab indices (order of matrices in w_slab / b_slab).
ENC_ATTN_IN, ENC_ATTN_OUT, ENC_LIN1, ENC_LIN2 = 0, 1, 2, 3
DEC_SA_IN, DEC_SA_OUT, DEC_CA_IN, DEC_CA_OUT, DEC_LIN1, DEC_LIN2 = 4, 5, 6, 7, 8, 9
NUM_MATS = 10

# The reference uses nn.LeakyReLU(True): True is passed as negative_slope,
# i.e. slope == 1.0 (effectively identity).  Kept as a constant for fidelity.
LEAKY_SLOPE = 1.0


def positional_encoding(n_window, feats):
    # Matches TranAD's PositionalEncoding buffer: pe = sin(pos*div) + cos(pos*div)
    position = jnp.arange(n_window, dtype=jnp.float32)[:, None]
    div_term = jnp.exp(jnp.arange(feats, dtype=jnp.float32)
                       * (-math.log(10000.0) / feats))
    return jnp.sin(position * div_term) + jnp.cos(position * div_term)  # (W, F)


def make_tranad_kernel(feats, n_window, dff):
    F, W, DFF = feats, n_window, dff
    SQRT_F = math.sqrt(F)
    f32 = jnp.float32

    def kernel(w_ref, b_ref, pe_ref, src_ref, tgt_ref, out_ref):
        B = src_ref.shape[2]                       # 128-lane batch tile

        def get_w(idx, r, c):
            return w_ref[idx, :r, :c]              # static view of packed slab

        def get_b(idx, r):
            return b_ref[idx, :r, :]               # (r, 1), broadcasts over lanes

        def linear(x, idx, rows, cols):
            # x: (cols, N) -> (rows, N); weights stored PyTorch-style (out, in)
            return jnp.dot(get_w(idx, rows, cols), x,
                           preferred_element_type=f32) + get_b(idx, rows)

        def leaky_relu(x):
            return jnp.where(x >= 0, x, LEAKY_SLOPE * x)

        def ffn(x, idx1, idx2):
            # Linear -> LeakyReLU -> (Dropout: eval identity) -> Linear
            return linear(leaky_relu(linear(x, idx1, DFF, F)), idx2, F, DFF)

        def attention(q_blocks, k_blocks, v_blocks):
            # head_dim == 1, scale = 1/sqrt(1) = 1:
            # score[f, b] = q[f, b] * k[f, b]; softmax over the key positions.
            outs = []
            for qb in q_blocks:
                s = [qb * kb for kb in k_blocks]
                m = s[0]
                for sj in s[1:]:
                    m = jnp.maximum(m, sj)
                p = [jnp.exp(sj - m) for sj in s]
                denom = p[0]
                for pj in p[1:]:
                    denom = denom + pj
                acc = p[0] * v_blocks[0]
                for pj, vb in zip(p[1:], v_blocks[1:]):
                    acc = acc + pj * vb
                outs.append(acc * pl.reciprocal(denom, approx=True))
            return outs

        def split_seq(x, seq):
            # lane-aligned 128-wide static slices
            return [x[:, j * B:(j + 1) * B] for j in range(seq)]

        def mha_self(x, seq, idx_in, idx_out):
            qkv = linear(x, idx_in, 3 * F, F)          # (3F, seq*B)
            qb = split_seq(qkv[:F], seq)
            kb = split_seq(qkv[F:2 * F], seq)
            vb = split_seq(qkv[2 * F:], seq)
            ob = attention(qb, kb, vb)
            o = ob[0] if seq == 1 else jnp.concatenate(ob, axis=1)
            return linear(o, idx_out, F, F)

        def mha_self_len1(x, idx_in, idx_out):
            # seq length 1: softmax over a single key is exactly 1 -> out == V.
            Wi = get_w(idx_in, 3 * F, F)
            bi = get_b(idx_in, 3 * F)
            v = jnp.dot(Wi[2 * F:], x, preferred_element_type=f32) + bi[2 * F:]
            return linear(v, idx_out, F, F)

        def mha_cross(q_in, mem, mem_seq, idx_in, idx_out):
            # q_in: (F, B); mem: (F, mem_seq*B)
            Wi = get_w(idx_in, 3 * F, F)
            bi = get_b(idx_in, 3 * F)
            q = jnp.dot(Wi[:F], q_in, preferred_element_type=f32) + bi[:F]
            kv = jnp.dot(Wi[F:], mem, preferred_element_type=f32) + bi[F:]
            kb = split_seq(kv[:F], mem_seq)
            vb = split_seq(kv[F:], mem_seq)
            ob = attention([q], kb, vb)
            return linear(ob[0], idx_out, F, F)

        # ---- src * sqrt(F) + positional encoding ----
        # TODO(synk): all Dropout layers (pos-enc, attention, FFN) run as
        # eval-mode identity (inference semantics).
        x = jnp.concatenate(
            [src_ref[w] * SQRT_F + pe_ref[w] for w in range(W)], axis=1)  # (F, W*B)

        # ---- TransformerEncoder (1 TranAD-style layer, no LayerNorm) ----
        x = x + mha_self(x, W, ENC_ATTN_IN, ENC_ATTN_OUT)
        x = x + ffn(x, ENC_LIN1, ENC_LIN2)
        memory = x                                                      # (F, W*B)

        # ---- TransformerDecoder (1 TranAD-style layer, no LayerNorm) ----
        t = tgt_ref[...]                                                # (F, B)
        t = t + mha_self_len1(t, DEC_SA_IN, DEC_SA_OUT)
        t = t + mha_cross(t, memory, W, DEC_CA_IN, DEC_CA_OUT)
        t = t + ffn(t, DEC_LIN1, DEC_LIN2)

        # ---- fcn = Sigmoid (exact divide; negligible cost, tighter numerics) ----
        out_ref[...] = 1.0 / (1.0 + jnp.exp(-t))

    return kernel


def pack_params(params, feats, dff):
    """Pack all weights into one (10, max_out, max_in) slab and all biases into
    one (10, max_out, 1) slab (indices match the *_IN/*_OUT constants)."""
    F = feats
    max_out = max(3 * F, dff)
    max_in = max(F, dff)
    order = ['enc_attn_in', 'enc_attn_out', 'enc_lin1', 'enc_lin2',
             'dec_sa_in', 'dec_sa_out', 'dec_ca_in', 'dec_ca_out',
             'dec_lin1', 'dec_lin2']
    w_slab = jnp.zeros((NUM_MATS, max_out, max_in), jnp.float32)
    b_slab = jnp.zeros((NUM_MATS, max_out, 1), jnp.float32)
    for i, name in enumerate(order):
        wm, bm = params[name]
        o, c = wm.shape
        w_slab = w_slab.at[i, :o, :c].set(wm.astype(jnp.float32))
        b_slab = b_slab.at[i, :o, 0].set(bm.astype(jnp.float32))
    return w_slab, b_slab


def tranad_basic_forward(src, tgt, *, params, feats, n_window=10, dff=16,
                         batch_tile=128):
    """src: (n_window, B, feats), tgt: (1, B, feats) -> sigmoid output
    (1, B, feats), matching TranAD_Basic.forward in eval mode (TranAD always
    feeds a length-1 tgt: the last window element)."""
    W, Bt, F = src.shape
    assert W == n_window and F == feats
    assert tgt.shape == (1, Bt, F), "kernel assumes TranAD's length-1 tgt"
    assert Bt % batch_tile == 0, "batch must be a multiple of the 128-lane tile"

    w_slab, b_slab = pack_params(params, feats, dff)
    pe3 = positional_encoding(n_window, feats)[:, :, None]        # (W, F, 1)

    # Lane-dense layout: batch on the last (lane) axis.
    src_l = jnp.transpose(src, (0, 2, 1)).astype(jnp.float32)     # (W, F, Bt)
    tgt_l = jnp.transpose(tgt[0], (1, 0)).astype(jnp.float32)     # (F, Bt)

    max_out = max(3 * F, dff)
    max_in = max(F, dff)
    grid = (Bt // batch_tile,)

    out = pl.pallas_call(
        make_tranad_kernel(feats, n_window, dff),
        out_shape=jax.ShapeDtypeStruct((F, Bt), jnp.float32),
        grid_spec=pltpu.PrefetchScalarGridSpec(
            num_scalar_prefetch=0,
            grid=grid,
            in_specs=[
                pl.BlockSpec((NUM_MATS, max_out, max_in), lambda i: (0, 0, 0)),
                pl.BlockSpec((NUM_MATS, max_out, 1), lambda i: (0, 0, 0)),
                pl.BlockSpec((n_window, F, 1), lambda i: (0, 0, 0)),
                pl.BlockSpec((n_window, F, batch_tile), lambda i: (0, 0, i)),
                pl.BlockSpec((F, batch_tile), lambda i: (0, i)),
            ],
            out_specs=pl.BlockSpec((F, batch_tile), lambda i: (0, i)),
        ),
        compiler_params=pltpu.CompilerParams(
            dimension_semantics=("parallel",)),
    )(w_slab, b_slab, pe3, src_l, tgt_l)

    return jnp.transpose(out)[None, :, :]                          # (1, Bt, F)


# ----------------------- pure-JAX reference (for checking) -----------------------
def ref_forward(src, tgt, params, feats, n_window):
    F = feats

    def lin(x, w, b):
        return x @ w.T + b

    def mha(q_in, kv_in, wi, bi, wo, bo):
        q = q_in @ wi[:F].T + bi[:F]
        k = kv_in @ wi[F:2 * F].T + bi[F:2 * F]
        v = kv_in @ wi[2 * F:].T + bi[2 * F:]
        scores = jnp.einsum('ibh,jbh->bhij', q, k)      # head_dim=1, scale=1
        attn = jax.nn.softmax(scores, axis=-1)
        o = jnp.einsum('bhij,jbh->ibh', attn, v)
        return o @ wo.T + bo

    def leaky(x):
        return jnp.where(x >= 0, x, LEAKY_SLOPE * x)

    pe = positional_encoding(n_window, F)               # (W, F)
    x = src * math.sqrt(F) + pe[:, None, :]
    x = x + mha(x, x, *params['enc_attn_in'], *params['enc_attn_out'])
    x = x + lin(leaky(lin(x, *params['enc_lin1'])), *params['enc_lin2'])
    memory = x
    t = tgt
    t = t + mha(t, t, *params['dec_sa_in'], *params['dec_sa_out'])
    t = t + mha(t, memory, *params['dec_ca_in'], *params['dec_ca_out'])
    t = t + lin(leaky(lin(t, *params['dec_lin1'])), *params['dec_lin2'])
    return jax.nn.sigmoid(t)


def init_params(key, feats, dff=16):
    F = feats

    def lin_init(k, out_dim, in_dim):
        kw, kb = jax.random.split(k)
        bound = 1.0 / math.sqrt(in_dim)
        w = jax.random.uniform(kw, (out_dim, in_dim), jnp.float32, -bound, bound)
        b = jax.random.uniform(kb, (out_dim,), jnp.float32, -bound, bound)
        return w, b

    names_shapes = [
        ('enc_attn_in', 3 * F, F), ('enc_attn_out', F, F),
        ('enc_lin1', dff, F), ('enc_lin2', F, dff),
        ('dec_sa_in', 3 * F, F), ('dec_sa_out', F, F),
        ('dec_ca_in', 3 * F, F), ('dec_ca_out', F, F),
        ('dec_lin1', dff, F), ('dec_lin2', F, dff),
    ]
    keys = jax.random.split(key, len(names_shapes))
    return {name: lin_init(k, o, i)
            for k, (name, o, i) in zip(keys, names_shapes)}


if __name__ == "__main__":
    feats = 8          # d_model == nhead == feats
    n_window = 10      # TranAD_Basic.n_window
    batch = 256        # two 128-lane batch tiles -> grid=(2,), "parallel"
    dff = 16

    key = jax.random.PRNGKey(0)
    k_par, k_src = jax.random.split(key)
    params = init_params(k_par, feats, dff)

    src = jax.random.uniform(k_src, (n_window, batch, feats), jnp.float32)
    tgt = src[-1:, :, :]     # TranAD feeds the last window element as tgt

    fwd = jax.jit(functools.partial(tranad_basic_forward, params=params,
                                    feats=feats, n_window=n_window, dff=dff))
    out = fwd(src, tgt)
    jax.block_until_ready(out)

    assert out.shape == (1, batch, feats)
    assert bool(jnp.all(jnp.isfinite(out)))

    # Tolerance covers the approx EUP reciprocal in the softmax and
    # default-precision MXU matmuls (real layout/param bugs would show up as
    # O(0.1) differences).
    ref = ref_forward(src, tgt, params, feats, n_window)
    max_err = float(jnp.max(jnp.abs(out - ref)))
    assert jnp.allclose(out, ref, atol=2e-2, rtol=2e-2), max_err

    print("KERNEL_OK")
</pallas_src>

<mosaic_0001>
module attributes {stable_mosaic.version = 11 : i64} {
  func.func @kernel(%arg0: i32, %arg1: memref<10x24x16xf32, #tpu.memory_space<vmem>>, %arg2: memref<10x24x1xf32, #tpu.memory_space<vmem>>, %arg3: memref<10x8x1xf32, #tpu.memory_space<vmem>>, %arg4: memref<10x8x128xf32, #tpu.memory_space<vmem>>, %arg5: memref<8x128xf32, #tpu.memory_space<vmem>>, %arg6: memref<8x128xf32, #tpu.memory_space<vmem>>) attributes {dimension_semantics = [#tpu.dimension_semantics<parallel>], iteration_bounds = array<i64: 2>, scalar_prefetch = 0 : i64, scratch_operands = 0 : i64, tpu.core_type = #tpu.core_type<tc>, window_params = [{pipeline_mode = #tpu.pipeline_mode<synchronous>, transform_indices = @transform_0, window_bounds = array<i64: 10, 24, 16>}, {pipeline_mode = #tpu.pipeline_mode<synchronous>, transform_indices = @transform_1, window_bounds = array<i64: 10, 24, 1>}, {pipeline_mode = #tpu.pipeline_mode<synchronous>, transform_indices = @transform_2, window_bounds = array<i64: 10, 8, 1>}, {transform_indices = @transform_3, window_bounds = array<i64: 10, 8, 128>}, {transform_indices = @transform_4, window_bounds = array<i64: 8, 128>}, {transform_indices = @transform_5, window_bounds = array<i64: 8, 128>}]} {
    %c0 = arith.constant 0 : index
    %c0_0 = arith.constant 0 : index
    %c0_1 = arith.constant 0 : index
    %0 = vector.load %arg4[%c0, %c0_0, %c0_1] : memref<10x8x128xf32, #tpu.memory_space<vmem>>, vector<1x8x128xf32>
    %1 = vector.shape_cast %0 : vector<1x8x128xf32> to vector<8x128xf32>
    %cst = arith.constant 2.82842708 : f32
    %2 = vector.broadcast %cst : f32 to vector<8x128xf32>
    %3 = arith.mulf %1, %2 : vector<8x128xf32>
    %c0_2 = arith.constant 0 : index
    %c0_3 = arith.constant 0 : index
    %c0_4 = arith.constant 0 : index
    %4 = vector.load %arg3[%c0_2, %c0_3, %c0_4] : memref<10x8x1xf32, #tpu.memory_space<vmem>>, vector<1x8x1xf32>
    %5 = vector.shape_cast %4 : vector<1x8x1xf32> to vector<8x1xf32>
    %6 = vector.broadcast %5 : vector<8x1xf32> to vector<8x128xf32>
    %7 = arith.addf %3, %6 : vector<8x128xf32>
    %c1 = arith.constant 1 : index
    %c0_5 = arith.constant 0 : index
    %c0_6 = arith.constant 0 : index
    %8 = vector.load %arg4[%c1, %c0_5, %c0_6] : memref<10x8x128xf32, #tpu.memory_space<vmem>>, vector<1x8x128xf32>
    %9 = vector.shape_cast %8 : vector<1x8x128xf32> to vector<8x128xf32>
    %cst_7 = arith.constant 2.82842708 : f32
    %10 = vector.broadcast %cst_7 : f32 to vector<8x128xf32>
    %11 = arith.mulf %9, %10 : vector<8x128xf32>
    %c1_8 = arith.constant 1 : index
    %c0_9 = arith.constant 0 : index
    %c0_10 = arith.constant 0 : index
    %12 = vector.load %arg3[%c1_8, %c0_9, %c0_10] : memref<10x8x1xf32, #tpu.memory_space<vmem>>, vector<1x8x1xf32>
    %13 = vector.shape_cast %12 : vector<1x8x1xf32> to vector<8x1xf32>
    %14 = vector.broadcast %13 : vector<8x1xf32> to vector<8x128xf32>
    %15 = arith.addf %11, %14 : vector<8x128xf32>
    %c2 = arith.constant 2 : index
    %c0_11 = arith.constant 0 : index
    %c0_12 = arith.constant 0 : index
    %16 = vector.load %arg4[%c2, %c0_11, %c0_12] : memref<10x8x128xf32, #tpu.memory_space<vmem>>, vector<1x8x128xf32>
    %17 = vector.shape_cast %16 : vector<1x8x128xf32> to vector<8x128xf32>
    %cst_13 = arith.constant 2.82842708 : f32
    %18 = vector.broadcast %cst_13 : f32 to vector<8x128xf32>
    %19 = arith.mulf %17, %18 : vector<8x128xf32>
    %c2_14 = arith.constant 2 : index
    %c0_15 = arith.constant 0 : index
    %c0_16 = arith.constant 0 : index
    %20 = vector.load %arg3[%c2_14, %c0_15, %c0_16] : memref<10x8x1xf32, #tpu.memory_space<vmem>>, vector<1x8x1xf32>
    %21 = vector.shape_cast %20 : vector<1x8x1xf32> to vector<8x1xf32>
    %22 = vector.broadcast %21 : vector<8x1xf32> to vector<8x128xf32>
    %23 = arith.addf %19, %22 : vector<8x128xf32>
    %c3 = arith.constant 3 : index
    %c0_17 = arith.constant 0 : index
    %c0_18 = arith.constant 0 : index
    %24 = vector.load %arg4[%c3, %c0_17, %c0_18] : memref<10x8x128xf32, #tpu.memory_space<vmem>>, vector<1x8x128xf32>
    %25 = vector.shape_cast %24 : vector<1x8x128xf32> to vector<8x128xf32>
    %cst_19 = arith.constant 2.82842708 : f32
    %26 = vector.broadcast %cst_19 : f32 to vector<8x128xf32>
    %27 = arith.mulf %25, %26 : vector<8x128xf32>
    %c3_20 = arith.constant 3 : index
    %c0_21 = arith.constant 0 : index
    %c0_22 = arith.constant 0 : index
    %28 = vector.load %arg3[%c3_20, %c0_21, %c0_22] : memref<10x8x1xf32, #tpu.memory_space<vmem>>, vector<1x8x1xf32>
    %29 = vector.shape_cast %28 : vector<1x8x1xf32> to vector<8x1xf32>
    %30 = vector.broadcast %29 : vector<8x1xf32> to vector<8x128xf32>
    %31 = arith.addf %27, %30 : vector<8x128xf32>
    %c4 = arith.constant 4 : index
    %c0_23 = arith.constant 0 : index
    %c0_24 = arith.constant 0 : index
    %32 = vector.load %arg4[%c4, %c0_23, %c0_24] : memref<10x8x128xf32, #tpu.memory_space<vmem>>, vector<1x8x128xf32>
    %33 = vector.shape_cast %32 : vector<1x8x128xf32> to vector<8x128xf32>
    %cst_25 = arith.constant 2.82842708 : f32
    %34 = vector.broadcast %cst_25 : f32 to vector<8x128xf32>
    %35 = arith.mulf %33, %34 : vector<8x128xf32>
    %c4_26 = arith.constant 4 : index
    %c0_27 = arith.constant 0 : index
    %c0_28 = arith.constant 0 : index
    %36 = vector.load %arg3[%c4_26, %c0_27, %c0_28] : memref<10x8x1xf32, #tpu.memory_space<vmem>>, vector<1x8x1xf32>
    %37 = vector.shape_cast %36 : vector<1x8x1xf32> to vector<8x1xf32>
    %38 = vector.broadcast %37 : vector<8x1xf32> to vector<8x128xf32>
    %39 = arith.addf %35, %38 : vector<8x128xf32>
    %c5 = arith.constant 5 : index
    %c0_29 = arith.constant 0 : index
    %c0_30 = arith.constant 0 : index
    %40 = vector.load %arg4[%c5, %c0_29, %c0_30] : memref<10x8x128xf32, #tpu.memory_space<vmem>>, vector<1x8x128xf32>
    %41 = vector.shape_cast %40 : vector<1x8x128xf32> to vector<8x128xf32>
    %cst_31 = arith.constant 2.82842708 : f32
    %42 = vector.broadcast %cst_31 : f32 to vector<8x128xf32>
    %43 = arith.mulf %41, %42 : vector<8x128xf32>
    %c5_32 = arith.constant 5 : index
    %c0_33 = arith.constant 0 : index
    %c0_34 = arith.constant 0 : index
    %44 = vector.load %arg3[%c5_32, %c0_33, %c0_34] : memref<10x8x1xf32, #tpu.memory_space<vmem>>, vector<1x8x1xf32>
    %45 = vector.shape_cast %44 : vector<1x8x1xf32> to vector<8x1xf32>
    %46 = vector.broadcast %45 : vector<8x1xf32> to vector<8x128xf32>
    %47 = arith.addf %43, %46 : vector<8x128xf32>
    %c6 = arith.constant 6 : index
    %c0_35 = arith.constant 0 : index
    %c0_36 = arith.constant 0 : index
    %48 = vector.load %arg4[%c6, %c0_35, %c0_36] : memref<10x8x128xf32, #tpu.memory_space<vmem>>, vector<1x8x128xf32>
    %49 = vector.shape_cast %48 : vector<1x8x128xf32> to vector<8x128xf32>
    %cst_37 = arith.constant 2.82842708 : f32
    %50 = vector.broadcast %cst_37 : f32 to vector<8x128xf32>
    %51 = arith.mulf %49, %50 : vector<8x128xf32>
    %c6_38 = arith.constant 6 : index
    %c0_39 = arith.constant 0 : index
    %c0_40 = arith.constant 0 : index
    %52 = vector.load %arg3[%c6_38, %c0_39, %c0_40] : memref<10x8x1xf32, #tpu.memory_space<vmem>>, vector<1x8x1xf32>
    %53 = vector.shape_cast %52 : vector<1x8x1xf32> to vector<8x1xf32>
    %54 = vector.broadcast %53 : vector<8x1xf32> to vector<8x128xf32>
    %55 = arith.addf %51, %54 : vector<8x128xf32>
    %c7 = arith.constant 7 : index
    %c0_41 = arith.constant 0 : index
    %c0_42 = arith.constant 0 : index
    %56 = vector.load %arg4[%c7, %c0_41, %c0_42] : memref<10x8x128xf32, #tpu.memory_space<vmem>>, vector<1x8x128xf32>
    %57 = vector.shape_cast %56 : vector<1x8x128xf32> to vector<8x128xf32>
    %cst_43 = arith.constant 2.82842708 : f32
    %58 = vector.broadcast %cst_43 : f32 to vector<8x128xf32>
    %59 = arith.mulf %57, %58 : vector<8x128xf32>
    %c7_44 = arith.constant 7 : index
    %c0_45 = arith.constant 0 : index
    %c0_46 = arith.constant 0 : index
    %60 = vector.load %arg3[%c7_44, %c0_45, %c0_46] : memref<10x8x1xf32, #tpu.memory_space<vmem>>, vector<1x8x1xf32>
    %61 = vector.shape_cast %60 : vector<1x8x1xf32> to vector<8x1xf32>
    %62 = vector.broadcast %61 : vector<8x1xf32> to vector<8x128xf32>
    %63 = arith.addf %59, %62 : vector<8x128xf32>
    %c8 = arith.constant 8 : index
    %c0_47 = arith.constant 0 : index
    %c0_48 = arith.constant 0 : index
    %64 = vector.load %arg4[%c8, %c0_47, %c0_48] : memref<10x8x128xf32, #tpu.memory_space<vmem>>, vector<1x8x128xf32>
    %65 = vector.shape_cast %64 : vector<1x8x128xf32> to vector<8x128xf32>
    %cst_49 = arith.constant 2.82842708 : f32
    %66 = vector.broadcast %cst_49 : f32 to vector<8x128xf32>
    %67 = arith.mulf %65, %66 : vector<8x128xf32>
    %c8_50 = arith.constant 8 : index
    %c0_51 = arith.constant 0 : index
    %c0_52 = arith.constant 0 : index
    %68 = vector.load %arg3[%c8_50, %c0_51, %c0_52] : memref<10x8x1xf32, #tpu.memory_space<vmem>>, vector<1x8x1xf32>
    %69 = vector.shape_cast %68 : vector<1x8x1xf32> to vector<8x1xf32>
    %70 = vector.broadcast %69 : vector<8x1xf32> to vector<8x128xf32>
    %71 = arith.addf %67, %70 : vector<8x128xf32>
    %c9 = arith.constant 9 : index
    %c0_53 = arith.constant 0 : index
    %c0_54 = arith.constant 0 : index
    %72 = vector.load %arg4[%c9, %c0_53, %c0_54] : memref<10x8x128xf32, #tpu.memory_space<vmem>>, vector<1x8x128xf32>
    %73 = vector.shape_cast %72 : vector<1x8x128xf32> to vector<8x128xf32>
    %cst_55 = arith.constant 2.82842708 : f32
    %74 = vector.broadcast %cst_55 : f32 to vector<8x128xf32>
    %75 = arith.mulf %73, %74 : vector<8x128xf32>
    %c9_56 = arith.constant 9 : index
    %c0_57 = arith.constant 0 : index
    %c0_58 = arith.constant 0 : index
    %76 = vector.load %arg3[%c9_56, %c0_57, %c0_58] : memref<10x8x1xf32, #tpu.memory_space<vmem>>, vector<1x8x1xf32>
    %77 = vector.shape_cast %76 : vector<1x8x1xf32> to vector<8x1xf32>
    %78 = vector.broadcast %77 : vector<8x1xf32> to vector<8x128xf32>
    %79 = arith.addf %75, %78 : vector<8x128xf32>
    %80 = tpu.concatenate %7, %15, %23, %31, %39, %47, %55, %63, %71, %79 in 1 : vector<8x128xf32>, vector<8x128xf32>, vector<8x128xf32>, vector<8x128xf32>, vector<8x128xf32>, vector<8x128xf32>, vector<8x128xf32>, vector<8x128xf32>, vector<8x128xf32>, vector<8x128xf32> -> vector<8x1280xf32>
    %c0_59 = arith.constant 0 : index
    %c0_60 = arith.constant 0 : index
    %c0_61 = arith.constant 0 : index
    %81 = vector.load %arg1[%c0_59, %c0_60, %c0_61] : memref<10x24x16xf32, #tpu.memory_space<vmem>>, vector<1x24x8xf32>
    %82 = vector.shape_cast %81 : vector<1x24x8xf32> to vector<24x8xf32>
    %cst_62 = arith.constant dense<0.000000e+00> : vector<24x1280xf32>
    %83 = tpu.matmul %82, %80, %cst_62 {dimension_numbers = #tpu.dot_dimension_numbers<[1], [0], [0], [1], [0, 0, 1, 1], [], []>} : vector<24x8xf32>, vector<8x1280xf32>, vector<24x1280xf32> -> vector<24x1280xf32>
    %c0_63 = arith.constant 0 : index
    %c0_64 = arith.constant 0 : index
    %c0_65 = arith.constant 0 : index
    %84 = vector.load %arg2[%c0_63, %c0_64, %c0_65] : memref<10x24x1xf32, #tpu.memory_space<vmem>>, vector<1x24x1xf32>
    %85 = vector.shape_cast %84 : vector<1x24x1xf32> to vector<24x1xf32>
    %86 = vector.broadcast %85 : vector<24x1xf32> to vector<24x1280xf32>
    %87 = arith.addf %83, %86 : vector<24x1280xf32>
    %88 = vector.extract_strided_slice %87 {offsets = [0, 0], sizes = [8, 1280], strides = [1, 1]} : vector<24x1280xf32> to vector<8x1280xf32>
    %89 = vector.extract_strided_slice %88 {offsets = [0, 0], sizes = [8, 128], strides = [1, 1]} : vector<8x1280xf32> to vector<8x128xf32>
    %90 = vector.extract_strided_slice %88 {offsets = [0, 128], sizes = [8, 128], strides = [1, 1]} : vector<8x1280xf32> to vector<8x128xf32>
    %91 = vector.extract_strided_slice %88 {offsets = [0, 256], sizes = [8, 128], strides = [1, 1]} : vector<8x1280xf32> to vector<8x128xf32>
    %92 = vector.extract_strided_slice %88 {offsets = [0, 384], sizes = [8, 128], strides = [1, 1]} : vector<8x1280xf32> to vector<8x128xf32>
    %93 = vector.extract_strided_slice %88 {offsets = [0, 512], sizes = [8, 128], strides = [1, 1]} : vector<8x1280xf32> to vector<8x128xf32>
    %94 = vector.extract_strided_slice %88 {offsets = [0, 640], sizes = [8, 128], strides = [1, 1]} : vector<8x1280xf32> to vector<8x128xf32>
    %95 = vector.extract_strided_slice %88 {offsets = [0, 768], sizes = [8, 128], strides = [1, 1]} : vector<8x1280xf32> to vector<8x128xf32>
    %96 = vector.extract_strided_slice %88 {offsets = [0, 896], sizes = [8, 128], strides = [1, 1]} : vector<8x1280xf32> to vector<8x128xf32>
    %97 = vector.extract_strided_slice %88 {offsets = [0, 1024], sizes = [8, 128], strides = [1, 1]} : vector<8x1280xf32> to vector<8x128xf32>
    %98 = vector.extract_strided_slice %88 {offsets = [0, 1152], sizes = [8, 128], strides = [1, 1]} : vector<8x1280xf32> to vector<8x128xf32>
    %99 = vector.extract_strided_slice %87 {offsets = [8, 0], sizes = [8, 1280], strides = [1, 1]} : vector<24x1280xf32> to vector<8x1280xf32>
    %100 = vector.extract_strided_slice %99 {offsets = [0, 0], sizes = [8, 128], strides = [1, 1]} : vector<8x1280xf32> to vector<8x128xf32>
    %101 = vector.extract_strided_slice %99 {offsets = [0, 128], sizes = [8, 128], strides = [1, 1]} : vector<8x1280xf32> to vector<8x128xf32>
    %102 = vector.extract_strided_slice %99 {offsets = [0, 256], sizes = [8, 128], strides = [1, 1]} : vector<8x1280xf32> to vector<8x128xf32>
    %103 = vector.extract_strided_slice %99 {offsets = [0, 384], sizes = [8, 128], strides = [1, 1]} : vector<8x1280xf32> to vector<8x128xf32>
    %104 = vector.extract_strided_slice %99 {offsets = [0, 512], sizes = [8, 128], strides = [1, 1]} : vector<8x1280xf32> to vector<8x128xf32>
    %105 = vector.extract_strided_slice %99 {offsets = [0, 640], sizes = [8, 128], strides = [1, 1]} : vector<8x1280xf32> to vector<8x128xf32>
    %106 = vector.extract_strided_slice %99 {offsets = [0, 768], sizes = [8, 128], strides = [1, 1]} : vector<8x1280xf32> to vector<8x128xf32>
    %107 = vector.extract_strided_slice %99 {offsets = [0, 896], sizes = [8, 128], strides = [1, 1]} : vector<8x1280xf32> to vector<8x128xf32>
    %108 = vector.extract_strided_slice %99 {offsets = [0, 1024], sizes = [8, 128], strides = [1, 1]} : vector<8x1280xf32> to vector<8x128xf32>
    %109 = vector.extract_strided_slice %99 {offsets = [0, 1152], sizes = [8, 128], strides = [1, 1]} : vector<8x1280xf32> to vector<8x128xf32>
    %110 = vector.extract_strided_slice %87 {offsets = [16, 0], sizes = [8, 1280], strides = [1, 1]} : vector<24x1280xf32> to vector<8x1280xf32>
    %111 = vector.extract_strided_slice %110 {offsets = [0, 0], sizes = [8, 128], strides = [1, 1]} : vector<8x1280xf32> to vector<8x128xf32>
    %112 = vector.extract_strided_slice %110 {offsets = [0, 128], sizes = [8, 128], strides = [1, 1]} : vector<8x1280xf32> to vector<8x128xf32>
    %113 = vector.extract_strided_slice %110 {offsets = [0, 256], sizes = [8, 128], strides = [1, 1]} : vector<8x1280xf32> to vector<8x128xf32>
    %114 = vector.extract_strided_slice %110 {offsets = [0, 384], sizes = [8, 128], strides = [1, 1]} : vector<8x1280xf32> to vector<8x128xf32>
    %115 = vector.extract_strided_slice %110 {offsets = [0, 512], sizes = [8, 128], strides = [1, 1]} : vector<8x1280xf32> to vector<8x128xf32>
    %116 = vector.extract_strided_slice %110 {offsets = [0, 640], sizes = [8, 128], strides = [1, 1]} : vector<8x1280xf32> to vector<8x128xf32>
    %117 = vector.extract_strided_slice %110 {offsets = [0, 768], sizes = [8, 128], strides = [1, 1]} : vector<8x1280xf32> to vector<8x128xf32>
    %118 = vector.extract_strided_slice %110 {offsets = [0, 896], sizes = [8, 128], strides = [1, 1]} : vector<8x1280xf32> to vector<8x128xf32>
    %119 = vector.extract_strided_slice %110 {offsets = [0, 1024], sizes = [8, 128], strides = [1, 1]} : vector<8x1280xf32> to vector<8x128xf32>
    %120 = vector.extract_strided_slice %110 {offsets = [0, 1152], sizes = [8, 128], strides = [1, 1]} : vector<8x1280xf32> to vector<8x128xf32>
    %121 = arith.mulf %89, %100 : vector<8x128xf32>
    %122 = arith.mulf %89, %101 : vector<8x128xf32>
    %123 = arith.mulf %89, %102 : vector<8x128xf32>
    %124 = arith.mulf %89, %103 : vector<8x128xf32>
    %125 = arith.mulf %89, %104 : vector<8x128xf32>
    %126 = arith.mulf %89, %105 : vector<8x128xf32>
    %127 = arith.mulf %89, %106 : vector<8x128xf32>
    %128 = arith.mulf %89, %107 : vector<8x128xf32>
    %129 = arith.mulf %89, %108 : vector<8x128xf32>
    %130 = arith.mulf %89, %109 : vector<8x128xf32>
    %131 = arith.maximumf %121, %122 : vector<8x128xf32>
    %132 = arith.maximumf %131, %123 : vector<8x128xf32>
    %133 = arith.maximumf %132, %124 : vector<8x128xf32>
    %134 = arith.maximumf %133, %125 : vector<8x128xf32>
    %135 = arith.maximumf %134, %126 : vector<8x128xf32>
    %136 = arith.maximumf %135, %127 : vector<8x128xf32>
    %137 = arith.maximumf %136, %128 : vector<8x128xf32>
    %138 = arith.maximumf %137, %129 : vector<8x128xf32>
    %139 = arith.maximumf %138, %130 : vector<8x128xf32>
    %140 = arith.subf %121, %139 : vector<8x128xf32>
    %141 = math.exp %140 : vector<8x128xf32>
    %142 = arith.subf %122, %139 : vector<8x128xf32>
    %143 = math.exp %142 : vector<8x128xf32>
    %144 = arith.subf %123, %139 : vector<8x128xf32>
    %145 = math.exp %144 : vector<8x128xf32>
    %146 = arith.subf %124, %139 : vector<8x128xf32>
    %147 = math.exp %146 : vector<8x128xf32>
    %148 = arith.subf %125, %139 : vector<8x128xf32>
    %149 = math.exp %148 : vector<8x128xf32>
    %150 = arith.subf %126, %139 : vector<8x128xf32>
    %151 = math.exp %150 : vector<8x128xf32>
    %152 = arith.subf %127, %139 : vector<8x128xf32>
    %153 = math.exp %152 : vector<8x128xf32>
    %154 = arith.subf %128, %139 : vector<8x128xf32>
    %155 = math.exp %154 : vector<8x128xf32>
    %156 = arith.subf %129, %139 : vector<8x128xf32>
    %157 = math.exp %156 : vector<8x128xf32>
    %158 = arith.subf %130, %139 : vector<8x128xf32>
    %159 = math.exp %158 : vector<8x128xf32>
    %160 = arith.addf %141, %143 : vector<8x128xf32>
    %161 = arith.addf %160, %145 : vector<8x128xf32>
    %162 = arith.addf %161, %147 : vector<8x128xf32>
    %163 = arith.addf %162, %149 : vector<8x128xf32>
    %164 = arith.addf %163, %151 : vector<8x128xf32>
    %165 = arith.addf %164, %153 : vector<8x128xf32>
    %166 = arith.addf %165, %155 : vector<8x128xf32>
    %167 = arith.addf %166, %157 : vector<8x128xf32>
    %168 = arith.addf %167, %159 : vector<8x128xf32>
    %169 = arith.mulf %141, %111 : vector<8x128xf32>
    %170 = arith.mulf %143, %112 : vector<8x128xf32>
    %171 = arith.addf %169, %170 : vector<8x128xf32>
    %172 = arith.mulf %145, %113 : vector<8x128xf32>
    %173 = arith.addf %171, %172 : vector<8x128xf32>
    %174 = arith.mulf %147, %114 : vector<8x128xf32>
    %175 = arith.addf %173, %174 : vector<8x128xf32>
    %176 = arith.mulf %149, %115 : vector<8x128xf32>
    %177 = arith.addf %175, %176 : vector<8x128xf32>
    %178 = arith.mulf %151, %116 : vector<8x128xf32>
    %179 = arith.addf %177, %178 : vector<8x128xf32>
    %180 = arith.mulf %153, %117 : vector<8x128xf32>
    %181 = arith.addf %179, %180 : vector<8x128xf32>
    %182 = arith.mulf %155, %118 : vector<8x128xf32>
    %183 = arith.addf %181, %182 : vector<8x128xf32>
    %184 = arith.mulf %157, %119 : vector<8x128xf32>
    %185 = arith.addf %183, %184 : vector<8x128xf32>
    %186 = arith.mulf %159, %120 : vector<8x128xf32>
    %187 = arith.addf %185, %186 : vector<8x128xf32>
    %188 = tpu.reciprocal %168 {approx = true} : vector<8x128xf32> -> vector<8x128xf32>
    %189 = arith.mulf %187, %188 : vector<8x128xf32>
    %190 = arith.mulf %90, %100 : vector<8x128xf32>
    %191 = arith.mulf %90, %101 : vector<8x128xf32>
    %192 = arith.mulf %90, %102 : vector<8x128xf32>
    %193 = arith.mulf %90, %103 : vector<8x128xf32>
    %194 = arith.mulf %90, %104 : vector<8x128xf32>
    %195 = arith.mulf %90, %105 : vector<8x128xf32>
    %196 = arith.mulf %90, %106 : vector<8x128xf32>
    %197 = arith.mulf %90, %107 : vector<8x128xf32>
    %198 = arith.mulf %90, %108 : vector<8x128xf32>
    %199 = arith.mulf %90, %109 : vector<8x128xf32>
    %200 = arith.maximumf %190, %191 : vector<8x128xf32>
    %201 = arith.maximumf %200, %192 : vector<8x128xf32>
    %202 = arith.maximumf %201, %193 : vector<8x128xf32>
    %203 = arith.maximumf %202, %194 : vector<8x128xf32>
    %204 = arith.maximumf %203, %195 : vector<8x128xf32>
    %205 = arith.maximumf %204, %196 : vector<8x128xf32>
    %206 = arith.maximumf %205, %197 : vector<8x128xf32>
    %207 = arith.maximumf %206, %198 : vector<8x128xf32>
    %208 = arith.maximumf %207, %199 : vector<8x128xf32>
    %209 = arith.subf %190, %208 : vector<8x128xf32>
    %210 = math.exp %209 : vector<8x128xf32>
    %211 = arith.subf %191, %208 : vector<8x128xf32>
    %212 = math.exp %211 : vector<8x128xf32>
    %213 = arith.subf %192, %208 : vector<8x128xf32>
    %214 = math.exp %213 : vector<8x128xf32>
    %215 = arith.subf %193, %208 : vector<8x128xf32>
    %216 = math.exp %215 : vector<8x128xf32>
    %217 = arith.subf %194, %208 : vector<8x128xf32>
    %218 = math.exp %217 : vector<8x128xf32>
    %219 = arith.subf %195, %208 : vector<8x128xf32>
    %220 = math.exp %219 : vector<8x128xf32>
    %221 = arith.subf %196, %208 : vector<8x128xf32>
    %222 = math.exp %221 : vector<8x128xf32>
    %223 = arith.subf %197, %208 : vector<8x128xf32>
    %224 = math.exp %223 : vector<8x128xf32>
    %225 = arith.subf %198, %208 : vector<8x128xf32>
    %226 = math.exp %225 : vector<8x128xf32>
    %227 = arith.subf %199, %208 : vector<8x128xf32>
    %228 = math.exp %227 : vector<8x128xf32>
    %229 = arith.addf %210, %212 : vector<8x128xf32>
    %230 = arith.addf %229, %214 : vector<8x128xf32>
    %231 = arith.addf %230, %216 : vector<8x128xf32>
    %232 = arith.addf %231, %218 : vector<8x128xf32>
    %233 = arith.addf %232, %220 : vector<8x128xf32>
    %234 = arith.addf %233, %222 : vector<8x128xf32>
    %235 = arith.addf %234, %224 : vector<8x128xf32>
    %236 = arith.addf %235, %226 : vector<8x128xf32>
    %237 = arith.addf %236, %228 : vector<8x128xf32>
    %238 = arith.mulf %210, %111 : vector<8x128xf32>
    %239 = arith.mulf %212, %112 : vector<8x128xf32>
    %240 = arith.addf %238, %239 : vector<8x128xf32>
    %241 = arith.mulf %214, %113 : vector<8x128xf32>
    %242 = arith.addf %240, %241 : vector<8x128xf32>
    %243 = arith.mulf %216, %114 : vector<8x128xf32>
    %244 = arith.addf %242, %243 : vector<8x128xf32>
    %245 = arith.mulf %218, %115 : vector<8x128xf32>
    %246 = arith.addf %244, %245 : vector<8x128xf32>
    %247 = arith.mulf %220, %116 : vector<8x128xf32>
    %248 = arith.addf %246, %247 : vector<8x128xf32>
    %249 = arith.mulf %222, %117 : vector<8x128xf32>
    %250 = arith.addf %248, %249 : vector<8x128xf32>
    %251 = arith.mulf %224, %118 : vector<8x128xf32>
    %252 = arith.addf %250, %251 : vector<8x128xf32>
    %253 = arith.mulf %226, %119 : vector<8x128xf32>
    %254 = arith.addf %252, %253 : vector<8x128xf32>
    %255 = arith.mulf %228, %120 : vector<8x128xf32>
    %256 = arith.addf %254, %255 : vector<8x128xf32>
    %257 = tpu.reciprocal %237 {approx = true} : vector<8x128xf32> -> vector<8x128xf32>
    %258 = arith.mulf %256, %257 : vector<8x128xf32>
    %259 = arith.mulf %91, %100 : vector<8x128xf32>
    %260 = arith.mulf %91, %101 : vector<8x128xf32>
    %261 = arith.mulf %91, %102 : vector<8x128xf32>
    %262 = arith.mulf %91, %103 : vector<8x128xf32>
    %263 = arith.mulf %91, %104 : vector<8x128xf32>
    %264 = arith.mulf %91, %105 : vector<8x128xf32>
    %265 = arith.mulf %91, %106 : vector<8x128xf32>
    %266 = arith.mulf %91, %107 : vector<8x128xf32>
    %267 = arith.mulf %91, %108 : vector<8x128xf32>
    %268 = arith.mulf %91, %109 : vector<8x128xf32>
    %269 = arith.maximumf %259, %260 : vector<8x128xf32>
    %270 = arith.maximumf %269, %261 : vector<8x128xf32>
    %271 = arith.maximumf %270, %262 : vector<8x128xf32>
    %272 = arith.maximumf %271, %263 : vector<8x128xf32>
    %273 = arith.maximumf %272, %264 : vector<8x128xf32>
    %274 = arith.maximumf %273, %265 : vector<8x128xf32>
    %275 = arith.maximumf %274, %266 : vector<8x128xf32>
    %276 = arith.maximumf %275, %267 : vector<8x128xf32>
    %277 = arith.maximumf %276, %268 : vector<8x128xf32>
    %278 = arith.subf %259, %277 : vector<8x128xf32>
    %279 = math.exp %278 : vector<8x128xf32>
    %280 = arith.subf %260, %277 : vector<8x128xf32>
    %281 = math.exp %280 : vector<8x128xf32>
    %282 = arith.subf %261, %277 : vector<8x128xf32>
    %283 = math.exp %282 : vector<8x128xf32>
    %284 = arith.subf %262, %277 : vector<8x128xf32>
    %285 = math.exp %284 : vector<8x128xf32>
    %286 = arith.subf %263, %277 : vector<8x128xf32>
    %287 = math.exp %286 : vector<8x128xf32>
    %288 = arith.subf %264, %277 : vector<8x128xf32>
    %289 = math.exp %288 : vector<8x128xf32>
    %290 = arith.subf %265, %277 : vector<8x128xf32>
    %291 = math.exp %290 : vector<8x128xf32>
    %292 = arith.subf %266, %277 : vector<8x128xf32>
    %293 = math.exp %292 : vector<8x128xf32>
    %294 = arith.subf %267, %277 : vector<8x128xf32>
    %295 = math.exp %294 : vector<8x128xf32>
    %296 = arith.subf %268, %277 : vector<8x128xf32>
    %297 = math.exp %296 : vector<8x128xf32>
    %298 = arith.addf %279, %281 : vector<8x128xf32>
    %299 = arith.addf %298, %283 : vector<8x128xf32>
    %300 = arith.addf %299, %285 : vector<8x128xf32>
    %301 = arith.addf %300, %287 : vector<8x128xf32>
    %302 = arith.addf %301, %289 : vector<8x128xf32>
    %303 = arith.addf %302, %291 : vector<8x128xf32>
    %304 = arith.addf %303, %293 : vector<8x128xf32>
    %305 = arith.addf %304, %295 : vector<8x128xf32>
    %306 = arith.addf %305, %297 : vector<8x128xf32>
    %307 = arith.mulf %279, %111 : vector<8x128xf32>
    %308 = arith.mulf %281, %112 : vector<8x128xf32>
    %309 = arith.addf %307, %308 : vector<8x128xf32>
    %310 = arith.mulf %283, %113 : vector<8x128xf32>
    %311 = arith.addf %309, %310 : vector<8x128xf32>
    %312 = arith.mulf %285, %114 : vector<8x128xf32>
    %313 = arith.addf %311, %312 : vector<8x128xf32>
    %314 = arith.mulf %287, %115 : vector<8x128xf32>
    %315 = arith.addf %313, %314 : vector<8x128xf32>
    %316 = arith.mulf %289, %116 : vector<8x128xf32>
    %317 = arith.addf %315, %316 : vector<8x128xf32>
    %318 = arith.mulf %291, %117 : vector<8x128xf32>
    %319 = arith.addf %317, %318 : vector<8x128xf32>
    %320 = arith.mulf %293, %118 : vector<8x128xf32>
    %321 = arith.addf %319, %320 : vector<8x128xf32>
    %322 = arith.mulf %295, %119 : vector<8x128xf32>
    %323 = arith.addf %321, %322 : vector<8x128xf32>
    %324 = arith.mulf %297, %120 : vector<8x128xf32>
    %325 = arith.addf %323, %324 : vector<8x128xf32>
    %326 = tpu.reciprocal %306 {approx = true} : vector<8x128xf32> -> vector<8x128xf32>
    %327 = arith.mulf %325, %326 : vector<8x128xf32>
    %328 = arith.mulf %92, %100 : vector<8x128xf32>
    %329 = arith.mulf %92, %101 : vector<8x128xf32>
    %330 = arith.mulf %92, %102 : vector<8x128xf32>
    %331 = arith.mulf %92, %103 : vector<8x128xf32>
    %332 = arith.mulf %92, %104 : vector<8x128xf32>
    %333 = arith.mulf %92, %105 : vector<8x128xf32>
    %334 = arith.mulf %92, %106 : vector<8x128xf32>
    %335 = arith.mulf %92, %107 : vector<8x128xf32>
    %336 = arith.mulf %92, %108 : vector<8x128xf32>
    %337 = arith.mulf %92, %109 : vector<8x128xf32>
    %338 = arith.maximumf %328, %329 : vector<8x128xf32>
    %339 = arith.maximumf %338, %330 : vector<8x128xf32>
    %340 = arith.maximumf %339, %331 : vector<8x128xf32>
    %341 = arith.maximumf %340, %332 : vector<8x128xf32>
    %342 = arith.maximumf %341, %333 : vector<8x128xf32>
    %343 = arith.maximumf %342, %334 : vector<8x128xf32>
    %344 = arith.maximumf %343, %335 : vector<8x128xf32>
    %345 = arith.maximumf %344, %336 : vector<8x128xf32>
    %346 = arith.maximumf %345, %337 : vector<8x128xf32>
    %347 = arith.subf %328, %346 : vector<8x128xf32>
    %348 = math.exp %347 : vector<8x128xf32>
    %349 = arith.subf %329, %346 : vector<8x128xf32>
    %350 = math.exp %349 : vector<8x128xf32>
    %351 = arith.subf %330, %346 : vector<8x128xf32>
    %352 = math.exp %351 : vector<8x128xf32>
    %353 = arith.subf %331, %346 : vector<8x128xf32>
    %354 = math.exp %353 : vector<8x128xf32>
    %355 = arith.subf %332, %346 : vector<8x128xf32>
    %356 = math.exp %355 : vector<8x128xf32>
    %357 = arith.subf %333, %346 : vector<8x128xf32>
    %358 = math.exp %357 : vector<8x128xf32>
    %359 = arith.subf %334, %346 : vector<8x128xf32>
    %360 = math.exp %359 : vector<8x128xf32>
    %361 = arith.subf %335, %346 : vector<8x128xf32>
    %362 = math.exp %361 : vector<8x128xf32>
    %363 = arith.subf %336, %346 : vector<8x128xf32>
    %364 = math.exp %363 : vector<8x128xf32>
    %365 = arith.subf %337, %346 : vector<8x128xf32>
    %366 = math.exp %365 : vector<8x128xf32>
    %367 = arith.addf %348, %350 : vector<8x128xf32>
    %368 = arith.addf %367, %352 : vector<8x128xf32>
    %369 = arith.addf %368, %354 : vector<8x128xf32>
    %370 = arith.addf %369, %356 : vector<8x128xf32>
    %371 = arith.addf %370, %358 : vector<8x128xf32>
    %372 = arith.addf %371, %360 : vector<8x128xf32>
    %373 = arith.addf %372, %362 : vector<8x128xf32>
    %374 = arith.addf %373, %364 : vector<8x128xf32>
    %375 = arith.addf %374, %366 : vector<8x128xf32>
    %376 = arith.mulf %348, %111 : vector<8x128xf32>
    %377 = arith.mulf %350, %112 : vector<8x128xf32>
    %378 = arith.addf %376, %377 : vector<8x128xf32>
    %379 = arith.mulf %352, %113 : vector<8x128xf32>
    %380 = arith.addf %378, %379 : vector<8x128xf32>
    %381 = arith.mulf %354, %114 : vector<8x128xf32>
    %382 = arith.addf %380, %381 : vector<8x128xf32>
    %383 = arith.mulf %356, %115 : vector<8x128xf32>
    %384 = arith.addf %382, %383 : vector<8x128xf32>
    %385 = arith.mulf %358, %116 : vector<8x128xf32>
    %386 = arith.addf %384, %385 : vector<8x128xf32>
    %387 = arith.mulf %360, %117 : vector<8x128xf32>
    %388 = arith.addf %386, %387 : vector<8x128xf32>
    %389 = arith.mulf %362, %118 : vector<8x128xf32>
    %390 = arith.addf %388, %389 : vector<8x128xf32>
    %391 = arith.mulf %364, %119 : vector<8x128xf32>
    %392 = arith.addf %390, %391 : vector<8x128xf32>
    %393 = arith.mulf %366, %120 : vector<8x128xf32>
    %394 = arith.addf %392, %393 : vector<8x128xf32>
    %395 = tpu.reciprocal %375 {approx = true} : vector<8x128xf32> -> vector<8x128xf32>
    %396 = arith.mulf %394, %395 : vector<8x128xf32>
    %397 = arith.mulf %93, %100 : vector<8x128xf32>
    %398 = arith.mulf %93, %101 : vector<8x128xf32>
    %399 = arith.mulf %93, %102 : vector<8x128xf32>
    %400 = arith.mulf %93, %103 : vector<8x128xf32>
    %401 = arith.mulf %93, %104 : vector<8x128xf32>
    %402 = arith.mulf %93, %105 : vector<8x128xf32>
    %403 = arith.mulf %93, %106 : vector<8x128xf32>
    %404 = arith.mulf %93, %107 : vector<8x128xf32>
    %405 = arith.mulf %93, %108 : vector<8x128xf32>
    %406 = arith.mulf %93, %109 : vector<8x128xf32>
    %407 = arith.maximumf %397, %398 : vector<8x128xf32>
    %408 = arith.maximumf %407, %399 : vector<8x128xf32>
    %409 = arith.maximumf %408, %400 : vector<8x128xf32>
    %410 = arith.maximumf %409, %401 : vector<8x128xf32>
    %411 = arith.maximumf %410, %402 : vector<8x128xf32>
    %412 = arith.maximumf %411, %403 : vector<8x128xf32>
    %413 = arith.maximumf %412, %404 : vector<8x128xf32>
    %414 = arith.maximumf %413, %405 : vector<8x128xf32>
    %415 = arith.maximumf %414, %406 : vector<8x128xf32>
    %416 = arith.subf %397, %415 : vector<8x128xf32>
    %417 = math.exp %416 : vector<8x128xf32>
    %418 = arith.subf %398, %415 : vector<8x128xf32>
    %419 = math.exp %418 : vector<8x128xf32>
    %420 = arith.subf %399, %415 : vector<8x128xf32>
    %421 = math.exp %420 : vector<8x128xf32>
    %422 = arith.subf %400, %415 : vector<8x128xf32>
    %423 = math.exp %422 : vector<8x128xf32>
    %424 = arith.subf %401, %415 : vector<8x128xf32>
    %425 = math.exp %424 : vector<8x128xf32>
    %426 = arith.subf %402, %415 : vector<8x128xf32>
    %427 = math.exp %426 : vector<8x128xf32>
    %428 = arith.subf %403, %415 : vector<8x128xf32>
    %429 = math.exp %428 : vector<8x128xf32>
    %430 = arith.subf %404, %415 : vector<8x128xf32>
    %431 = math.exp %430 : vector<8x128xf32>
    %432 = arith.subf %405, %415 : vector<8x128xf32>
    %433 = math.exp %432 : vector<8x128xf32>
    %434 = arith.subf %406, %415 : vector<8x128xf32>
    %435 = math.exp %434 : vector<8x128xf32>
    %436 = arith.addf %417, %419 : vector<8x128xf32>
    %437 = arith.addf %436, %421 : vector<8x128xf32>
    %438 = arith.addf %437, %423 : vector<8x128xf32>
    %439 = arith.addf %438, %425 : vector<8x128xf32>
    %440 = arith.addf %439, %427 : vector<8x128xf32>
    %441 = arith.addf %440, %429 : vector<8x128xf32>
    %442 = arith.addf %441, %431 : vector<8x128xf32>
    %443 = arith.addf %442, %433 : vector<8x128xf32>
    %444 = arith.addf %443, %435 : vector<8x128xf32>
    %445 = arith.mulf %417, %111 : vector<8x128xf32>
    %446 = arith.mulf %419, %112 : vector<8x128xf32>
    %447 = arith.addf %445, %446 : vector<8x128xf32>
    %448 = arith.mulf %421, %113 : vector<8x128xf32>
    %449 = arith.addf %447, %448 : vector<8x128xf32>
    %450 = arith.mulf %423, %114 : vector<8x128xf32>
    %451 = arith.addf %449, %450 : vector<8x128xf32>
    %452 = arith.mulf %425, %115 : vector<8x128xf32>
    %453 = arith.addf %451, %452 : vector<8x128xf32>
    %454 = arith.mulf %427, %116 : vector<8x128xf32>
    %455 = arith.addf %453, %454 : vector<8x128xf32>
    %456 = arith.mulf %429, %117 : vector<8x128xf32>
    %457 = arith.addf %455, %456 : vector<8x128xf32>
    %458 = arith.mulf %431, %118 : vector<8x128xf32>
    %459 = arith.addf %457, %458 : vector<8x128xf32>
    %460 = arith.mulf %433, %119 : vector<8x128xf32>
    %461 = arith.addf %459, %460 : vector<8x128xf32>
    %462 = arith.mulf %435, %120 : vector<8x128xf32>
    %463 = arith.addf %461, %462 : vector<8x128xf32>
    %464 = tpu.reciprocal %444 {approx = true} : vector<8x128xf32> -> vector<8x128xf32>
    %465 = arith.mulf %463, %464 : vector<8x128xf32>
    %466 = arith.mulf %94, %100 : vector<8x128xf32>
    %467 = arith.mulf %94, %101 : vector<8x128xf32>
    %468 = arith.mulf %94, %102 : vector<8x128xf32>
    %469 = arith.mulf %94, %103 : vector<8x128xf32>
    %470 = arith.mulf %94, %104 : vector<8x128xf32>
    %471 = arith.mulf %94, %105 : vector<8x128xf32>
    %472 = arith.mulf %94, %106 : vector<8x128xf32>
    %473 = arith.mulf %94, %107 : vector<8x128xf32>
    %474 = arith.mulf %94, %108 : vector<8x128xf32>
    %475 = arith.mulf %94, %109 : vector<8x128xf32>
    %476 = arith.maximumf %466, %467 : vector<8x128xf32>
    %477 = arith.maximumf %476, %468 : vector<8x128xf32>
    %478 = arith.maximumf %477, %469 : vector<8x128xf32>
    %479 = arith.maximumf %478, %470 : vector<8x128xf32>
    %480 = arith.maximumf %479, %471 : vector<8x128xf32>
    %481 = arith.maximumf %480, %472 : vector<8x128xf32>
    %482 = arith.maximumf %481, %473 : vector<8x128xf32>
    %483 = arith.maximumf %482, %474 : vector<8x128xf32>
    %484 = arith.maximumf %483, %475 : vector<8x128xf32>
    %485 = arith.subf %466, %484 : vector<8x128xf32>
    %486 = math.exp %485 : vector<8x128xf32>
    %487 = arith.subf %467, %484 : vector<8x128xf32>
    %488 = math.exp %487 : vector<8x128xf32>
    %489 = arith.subf %468, %484 : vector<8x128xf32>
    %490 = math.exp %489 : vector<8x128xf32>
    %491 = arith.subf %469, %484 : vector<8x128xf32>
    %492 = math.exp %491 : vector<8x128xf32>
    %493 = arith.subf %470, %484 : vector<8x128xf32>
    %494 = math.exp %493 : vector<8x128xf32>
    %495 = arith.subf %471, %484 : vector<8x128xf32>
    %496 = math.exp %495 : vector<8x128xf32>
    %497 = arith.subf %472, %484 : vector<8x128xf32>
    %498 = math.exp %497 : vector<8x128xf32>
    %499 = arith.subf %473, %484 : vector<8x128xf32>
    %500 = math.exp %499 : vector<8x128xf32>
    %501 = arith.subf %474, %484 : vector<8x128xf32>
    %502 = math.exp %501 : vector<8x128xf32>
    %503 = arith.subf %475, %484 : vector<8x128xf32>
    %504 = math.exp %503 : vector<8x128xf32>
    %505 = arith.addf %486, %488 : vector<8x128xf32>
    %506 = arith.addf %505, %490 : vector<8x128xf32>
    %507 = arith.addf %506, %492 : vector<8x128xf32>
    %508 = arith.addf %507, %494 : vector<8x128xf32>
    %509 = arith.addf %508, %496 : vector<8x128xf32>
    %510 = arith.addf %509, %498 : vector<8x128xf32>
    %511 = arith.addf %510, %500 : vector<8x128xf32>
    %512 = arith.addf %511, %502 : vector<8x128xf32>
    %513 = arith.addf %512, %504 : vector<8x128xf32>
    %514 = arith.mulf %486, %111 : vector<8x128xf32>
    %515 = arith.mulf %488, %112 : vector<8x128xf32>
    %516 = arith.addf %514, %515 : vector<8x128xf32>
    %517 = arith.mulf %490, %113 : vector<8x128xf32>
    %518 = arith.addf %516, %517 : vector<8x128xf32>
    %519 = arith.mulf %492, %114 : vector<8x128xf32>
    %520 = arith.addf %518, %519 : vector<8x128xf32>
    %521 = arith.mulf %494, %115 : vector<8x128xf32>
    %522 = arith.addf %520, %521 : vector<8x128xf32>
    %523 = arith.mulf %496, %116 : vector<8x128xf32>
    %524 = arith.addf %522, %523 : vector<8x128xf32>
    %525 = arith.mulf %498, %117 : vector<8x128xf32>
    %526 = arith.addf %524, %525 : vector<8x128xf32>
    %527 = arith.mulf %500, %118 : vector<8x128xf32>
    %528 = arith.addf %526, %527 : vector<8x128xf32>
    %529 = arith.mulf %502, %119 : vector<8x128xf32>
    %530 = arith.addf %528, %529 : vector<8x128xf32>
    %531 = arith.mulf %504, %120 : vector<8x128xf32>
    %532 = arith.addf %530, %531 : vector<8x128xf32>
    %533 = tpu.reciprocal %513 {approx = true} : vector<8x128xf32> -> vector<8x128xf32>
    %534 = arith.mulf %532, %533 : vector<8x128xf32>
    %535 = arith.mulf %95, %100 : vector<8x128xf32>
    %536 = arith.mulf %95, %101 : vector<8x128xf32>
    %537 = arith.mulf %95, %102 : vector<8x128xf32>
    %538 = arith.mulf %95, %103 : vector<8x128xf32>
    %539 = arith.mulf %95, %104 : vector<8x128xf32>
    %540 = arith.mulf %95, %105 : vector<8x128xf32>
    %541 = arith.mulf %95, %106 : vector<8x128xf32>
    %542 = arith.mulf %95, %107 : vector<8x128xf32>
    %543 = arith.mulf %95, %108 : vector<8x128xf32>
    %544 = arith.mulf %95, %109 : vector<8x128xf32>
    %545 = arith.maximumf %535, %536 : vector<8x128xf32>
    %546 = arith.maximumf %545, %537 : vector<8x128xf32>
    %547 = arith.maximumf %546, %538 : vector<8x128xf32>
    %548 = arith.maximumf %547, %539 : vector<8x128xf32>
    %549 = arith.maximumf %548, %540 : vector<8x128xf32>
    %550 = arith.maximumf %549, %541 : vector<8x128xf32>
    %551 = arith.maximumf %550, %542 : vector<8x128xf32>
    %552 = arith.maximumf %551, %543 : vector<8x128xf32>
    %553 = arith.maximumf %552, %544 : vector<8x128xf32>
    %554 = arith.subf %535, %553 : vector<8x128xf32>
    %555 = math.exp %554 : vector<8x128xf32>
    %556 = arith.subf %536, %553 : vector<8x128xf32>
    %557 = math.exp %556 : vector<8x128xf32>
    %558 = arith.subf %537, %553 : vector<8x128xf32>
    %559 = math.exp %558 : vector<8x128xf32>
    %560 = arith.subf %538, %553 : vector<8x128xf32>
    %561 = math.exp %560 : vector<8x128xf32>
    %562 = arith.subf %539, %553 : vector<8x128xf32>
    %563 = math.exp %562 : vector<8x128xf32>
    %564 = arith.subf %540, %553 : vector<8x128xf32>
    %565 = math.exp %564 : vector<8x128xf32>
    %566 = arith.subf %541, %553 : vector<8x128xf32>
    %567 = math.exp %566 : vector<8x128xf32>
    %568 = arith.subf %542, %553 : vector<8x128xf32>
    %569 = math.exp %568 : vector<8x128xf32>
    %570 = arith.subf %543, %553 : vector<8x128xf32>
    %571 = math.exp %570 : vector<8x128xf32>
    %572 = arith.subf %544, %553 : vector<8x128xf32>
    %573 = math.exp %572 : vector<8x128xf32>
    %574 = arith.addf %555, %557 : vector<8x128xf32>
    %575 = arith.addf %574, %559 : vector<8x128xf32>
    %576 = arith.addf %575, %561 : vector<8x128xf32>
    %577 = arith.addf %576, %563 : vector<8x128xf32>
    %578 = arith.addf %577, %565 : vector<8x128xf32>
    %579 = arith.addf %578, %567 : vector<8x128xf32>
    %580 = arith.addf %579, %569 : vector<8x128xf32>
    %581 = arith.addf %580, %571 : vector<8x128xf32>
    %582 = arith.addf %581, %573 : vector<8x128xf32>
    %583 = arith.mulf %555, %111 : vector<8x128xf32>
    %584 = arith.mulf %557, %112 : vector<8x128xf32>
    %585 = arith.addf %583, %584 : vector<8x128xf32>
    %586 = arith.mulf %559, %113 : vector<8x128xf32>
    %587 = arith.addf %585, %586 : vector<8x128xf32>
    %588 = arith.mulf %561, %114 : vector<8x128xf32>
    %589 = arith.addf %587, %588 : vector<8x128xf32>
    %590 = arith.mulf %563, %115 : vector<8x128xf32>
    %591 = arith.addf %589, %590 : vector<8x128xf32>
    %592 = arith.mulf %565, %116 : vector<8x128xf32>
    %593 = arith.addf %591, %592 : vector<8x128xf32>
    %594 = arith.mulf %567, %117 : vector<8x128xf32>
    %595 = arith.addf %593, %594 : vector<8x128xf32>
    %596 = arith.mulf %569, %118 : vector<8x128xf32>
    %597 = arith.addf %595, %596 : vector<8x128xf32>
    %598 = arith.mulf %571, %119 : vector<8x128xf32>
    %599 = arith.addf %597, %598 : vector<8x128xf32>
    %600 = arith.mulf %573, %120 : vector<8x128xf32>
    %601 = arith.addf %599, %600 : vector<8x128xf32>
    %602 = tpu.reciprocal %582 {approx = true} : vector<8x128xf32> -> vector<8x128xf32>
    %603 = arith.mulf %601, %602 : vector<8x128xf32>
    %604 = arith.mulf %96, %100 : vector<8x128xf32>
    %605 = arith.mulf %96, %101 : vector<8x128xf32>
    %606 = arith.mulf %96, %102 : vector<8x128xf32>
    %607 = arith.mulf %96, %103 : vector<8x128xf32>
    %608 = arith.mulf %96, %104 : vector<8x128xf32>
    %609 = arith.mulf %96, %105 : vector<8x128xf32>
    %610 = arith.mulf %96, %106 : vector<8x128xf32>
    %611 = arith.mulf %96, %107 : vector<8x128xf32>
    %612 = arith.mulf %96, %108 : vector<8x128xf32>
    %613 = arith.mulf %96, %109 : vector<8x128xf32>
    %614 = arith.maximumf %604, %605 : vector<8x128xf32>
    %615 = arith.maximumf %614, %606 : vector<8x128xf32>
    %616 = arith.maximumf %615, %607 : vector<8x128xf32>
    %617 = arith.maximumf %616, %608 : vector<8x128xf32>
    %618 = arith.maximumf %617, %609 : vector<8x128xf32>
    %619 = arith.maximumf %618, %610 : vector<8x128xf32>
    %620 = arith.maximumf %619, %611 : vector<8x128xf32>
    %621 = arith.maximumf %620, %612 : vector<8x128xf32>
    %622 = arith.maximumf %621, %613 : vector<8x128xf32>
    %623 = arith.subf %604, %622 : vector<8x128xf32>
    %624 = math.exp %623 : vector<8x128xf32>
    %625 = arith.subf %605, %622 : vector<8x128xf32>
    %626 = math.exp %625 : vector<8x128xf32>
    %627 = arith.subf %606, %622 : vector<8x128xf32>
    %628 = math.exp %627 : vector<8x128xf32>
    %629 = arith.subf %607, %622 : vector<8x128xf32>
    %630 = math.exp %629 : vector<8x128xf32>
    %631 = arith.subf %608, %622 : vector<8x128xf32>
    %632 = math.exp %631 : vector<8x128xf32>
    %633 = arith.subf %609, %622 : vector<8x128xf32>
    %634 = math.exp %633 : vector<8x128xf32>
    %635 = arith.subf %610, %622 : vector<8x128xf32>
    %636 = math.exp %635 : vector<8x128xf32>
    %637 = arith.subf %611, %622 : vector<8x128xf32>
    %638 = math.exp %637 : vector<8x128xf32>
    %639 = arith.subf %612, %622 : vector<8x128xf32>
    %640 = math.exp %639 : vector<8x128xf32>
    %641 = arith.subf %613, %622 : vector<8x128xf32>
    %642 = math.exp %641 : vector<8x128xf32>
    %643 = arith.addf %624, %626 : vector<8x128xf32>
    %644 = arith.addf %643, %628 : vector<8x128xf32>
    %645 = arith.addf %644, %630 : vector<8x128xf32>
    %646 = arith.addf %645, %632 : vector<8x128xf32>
    %647 = arith.addf %646, %634 : vector<8x128xf32>
    %648 = arith.addf %647, %636 : vector<8x128xf32>
    %649 = arith.addf %648, %638 : vector<8x128xf32>
    %650 = arith.addf %649, %640 : vector<8x128xf32>
    %651 = arith.addf %650, %642 : vector<8x128xf32>
    %652 = arith.mulf %624, %111 : vector<8x128xf32>
    %653 = arith.mulf %626, %112 : vector<8x128xf32>
    %654 = arith.addf %652, %653 : vector<8x128xf32>
    %655 = arith.mulf %628, %113 : vector<8x128xf32>
    %656 = arith.addf %654, %655 : vector<8x128xf32>
    %657 = arith.mulf %630, %114 : vector<8x128xf32>
    %658 = arith.addf %656, %657 : vector<8x128xf32>
    %659 = arith.mulf %632, %115 : vector<8x128xf32>
    %660 = arith.addf %658, %659 : vector<8x128xf32>
    %661 = arith.mulf %634, %116 : vector<8x128xf32>
    %662 = arith.addf %660, %661 : vector<8x128xf32>
    %663 = arith.mulf %636, %117 : vector<8x128xf32>
    %664 = arith.addf %662, %663 : vector<8x128xf32>
    %665 = arith.mulf %638, %118 : vector<8x128xf32>
    %666 = arith.addf %664, %665 : vector<8x128xf32>
    %667 = arith.mulf %640, %119 : vector<8x128xf32>
    %668 = arith.addf %666, %667 : vector<8x128xf32>
    %669 = arith.mulf %642, %120 : vector<8x128xf32>
    %670 = arith.addf %668, %669 : vector<8x128xf32>
    %671 = tpu.reciprocal %651 {approx = true} : vector<8x128xf32> -> vector<8x128xf32>
    %672 = arith.mulf %670, %671 : vector<8x128xf32>
    %673 = arith.mulf %97, %100 : vector<8x128xf32>
    %674 = arith.mulf %97, %101 : vector<8x128xf32>
    %675 = arith.mulf %97, %102 : vector<8x128xf32>
    %676 = arith.mulf %97, %103 : vector<8x128xf32>
    %677 = arith.mulf %97, %104 : vector<8x128xf32>
    %678 = arith.mulf %97, %105 : vector<8x128xf32>
    %679 = arith.mulf %97, %106 : vector<8x128xf32>
    %680 = arith.mulf %97, %107 : vector<8x128xf32>
    %681 = arith.mulf %97, %108 : vector<8x128xf32>
    %682 = arith.mulf %97, %109 : vector<8x128xf32>
    %683 = arith.maximumf %673, %674 : vector<8x128xf32>
    %684 = arith.maximumf %683, %675 : vector<8x128xf32>
    %685 = arith.maximumf %684, %676 : vector<8x128xf32>
    %686 = arith.maximumf %685, %677 : vector<8x128xf32>
    %687 = arith.maximumf %686, %678 : vector<8x128xf32>
    %688 = arith.maximumf %687, %679 : vector<8x128xf32>
    %689 = arith.maximumf %688, %680 : vector<8x128xf32>
    %690 = arith.maximumf %689, %681 : vector<8x128xf32>
    %691 = arith.maximumf %690, %682 : vector<8x128xf32>
    %692 = arith.subf %673, %691 : vector<8x128xf32>
    %693 = math.exp %692 : vector<8x128xf32>
    %694 = arith.subf %674, %691 : vector<8x128xf32>
    %695 = math.exp %694 : vector<8x128xf32>
    %696 = arith.subf %675, %691 : vector<8x128xf32>
    %697 = math.exp %696 : vector<8x128xf32>
    %698 = arith.subf %676, %691 : vector<8x128xf32>
    %699 = math.exp %698 : vector<8x128xf32>
    %700 = arith.subf %677, %691 : vector<8x128xf32>
    %701 = math.exp %700 : vector<8x128xf32>
    %702 = arith.subf %678, %691 : vector<8x128xf32>
    %703 = math.exp %702 : vector<8x128xf32>
    %704 = arith.subf %679, %691 : vector<8x128xf32>
    %705 = math.exp %704 : vector<8x128xf32>
    %706 = arith.subf %680, %691 : vector<8x128xf32>
    %707 = math.exp %706 : vector<8x128xf32>
    %708 = arith.subf %681, %691 : vector<8x128xf32>
    %709 = math.exp %708 : vector<8x128xf32>
    %710 = arith.subf %682, %691 : vector<8x128xf32>
    %711 = math.exp %710 : vector<8x128xf32>
    %712 = arith.addf %693, %695 : vector<8x128xf32>
    %713 = arith.addf %712, %697 : vector<8x128xf32>
    %714 = arith.addf %713, %699 : vector<8x128xf32>
    %715 = arith.addf %714, %701 : vector<8x128xf32>
    %716 = arith.addf %715, %703 : vector<8x128xf32>
    %717 = arith.addf %716, %705 : vector<8x128xf32>
    %718 = arith.addf %717, %707 : vector<8x128xf32>
    %719 = arith.addf %718, %709 : vector<8x128xf32>
    %720 = arith.addf %719, %711 : vector<8x128xf32>
    %721 = arith.mulf %693, %111 : vector<8x128xf32>
    %722 = arith.mulf %695, %112 : vector<8x128xf32>
    %723 = arith.addf %721, %722 : vector<8x128xf32>
    %724 = arith.mulf %697, %113 : vector<8x128xf32>
    %725 = arith.addf %723, %724 : vector<8x128xf32>
    %726 = arith.mulf %699, %114 : vector<8x128xf32>
    %727 = arith.addf %725, %726 : vector<8x128xf32>
    %728 = arith.mulf %701, %115 : vector<8x128xf32>
    %729 = arith.addf %727, %728 : vector<8x128xf32>
    %730 = arith.mulf %703, %116 : vector<8x128xf32>
    %731 = arith.addf %729, %730 : vector<8x128xf32>
    %732 = arith.mulf %705, %117 : vector<8x128xf32>
    %733 = arith.addf %731, %732 : vector<8x128xf32>
    %734 = arith.mulf %707, %118 : vector<8x128xf32>
    %735 = arith.addf %733, %734 : vector<8x128xf32>
    %736 = arith.mulf %709, %119 : vector<8x128xf32>
    %737 = arith.addf %735, %736 : vector<8x128xf32>
    %738 = arith.mulf %711, %120 : vector<8x128xf32>
    %739 = arith.addf %737, %738 : vector<8x128xf32>
    %740 = tpu.reciprocal %720 {approx = true} : vector<8x128xf32> -> vector<8x128xf32>
    %741 = arith.mulf %739, %740 : vector<8x128xf32>
    %742 = arith.mulf %98, %100 : vector<8x128xf32>
    %743 = arith.mulf %98, %101 : vector<8x128xf32>
    %744 = arith.mulf %98, %102 : vector<8x128xf32>
    %745 = arith.mulf %98, %103 : vector<8x128xf32>
    %746 = arith.mulf %98, %104 : vector<8x128xf32>
    %747 = arith.mulf %98, %105 : vector<8x128xf32>
    %748 = arith.mulf %98, %106 : vector<8x128xf32>
    %749 = arith.mulf %98, %107 : vector<8x128xf32>
    %750 = arith.mulf %98, %108 : vector<8x128xf32>
    %751 = arith.mulf %98, %109 : vector<8x128xf32>
    %752 = arith.maximumf %742, %743 : vector<8x128xf32>
    %753 = arith.maximumf %752, %744 : vector<8x128xf32>
    %754 = arith.maximumf %753, %745 : vector<8x128xf32>
    %755 = arith.maximumf %754, %746 : vector<8x128xf32>
    %756 = arith.maximumf %755, %747 : vector<8x128xf32>
    %757 = arith.maximumf %756, %748 : vector<8x128xf32>
    %758 = arith.maximumf %757, %749 : vector<8x128xf32>
    %759 = arith.maximumf %758, %750 : vector<8x128xf32>
    %760 = arith.maximumf %759, %751 : vector<8x128xf32>
    %761 = arith.subf %742, %760 : vector<8x128xf32>
    %762 = math.exp %761 : vector<8x128xf32>
    %763 = arith.subf %743, %760 : vector<8x128xf32>
    %764 = math.exp %763 : vector<8x128xf32>
    %765 = arith.subf %744, %760 : vector<8x128xf32>
    %766 = math.exp %765 : vector<8x128xf32>
    %767 = arith.subf %745, %760 : vector<8x128xf32>
    %768 = math.exp %767 : vector<8x128xf32>
    %769 = arith.subf %746, %760 : vector<8x128xf32>
    %770 = math.exp %769 : vector<8x128xf32>
    %771 = arith.subf %747, %760 : vector<8x128xf32>
    %772 = math.exp %771 : vector<8x128xf32>
    %773 = arith.subf %748, %760 : vector<8x128xf32>
    %774 = math.exp %773 : vector<8x128xf32>
    %775 = arith.subf %749, %760 : vector<8x128xf32>
    %776 = math.exp %775 : vector<8x128xf32>
    %777 = arith.subf %750, %760 : vector<8x128xf32>
    %778 = math.exp %777 : vector<8x128xf32>
    %779 = arith.subf %751, %760 : vector<8x128xf32>
    %780 = math.exp %779 : vector<8x128xf32>
    %781 = arith.addf %762, %764 : vector<8x128xf32>
    %782 = arith.addf %781, %766 : vector<8x128xf32>
    %783 = arith.addf %782, %768 : vector<8x128xf32>
    %784 = arith.addf %783, %770 : vector<8x128xf32>
    %785 = arith.addf %784, %772 : vector<8x128xf32>
    %786 = arith.addf %785, %774 : vector<8x128xf32>
    %787 = arith.addf %786, %776 : vector<8x128xf32>
    %788 = arith.addf %787, %778 : vector<8x128xf32>
    %789 = arith.addf %788, %780 : vector<8x128xf32>
    %790 = arith.mulf %762, %111 : vector<8x128xf32>
    %791 = arith.mulf %764, %112 : vector<8x128xf32>
    %792 = arith.addf %790, %791 : vector<8x128xf32>
    %793 = arith.mulf %766, %113 : vector<8x128xf32>
    %794 = arith.addf %792, %793 : vector<8x128xf32>
    %795 = arith.mulf %768, %114 : vector<8x128xf32>
    %796 = arith.addf %794, %795 : vector<8x128xf32>
    %797 = arith.mulf %770, %115 : vector<8x128xf32>
    %798 = arith.addf %796, %797 : vector<8x128xf32>
    %799 = arith.mulf %772, %116 : vector<8x128xf32>
    %800 = arith.addf %798, %799 : vector<8x128xf32>
    %801 = arith.mulf %774, %117 : vector<8x128xf32>
    %802 = arith.addf %800, %801 : vector<8x128xf32>
    %803 = arith.mulf %776, %118 : vector<8x128xf32>
    %804 = arith.addf %802, %803 : vector<8x128xf32>
    %805 = arith.mulf %778, %119 : vector<8x128xf32>
    %806 = arith.addf %804, %805 : vector<8x128xf32>
    %807 = arith.mulf %780, %120 : vector<8x128xf32>
    %808 = arith.addf %806, %807 : vector<8x128xf32>
    %809 = tpu.reciprocal %789 {approx = true} : vector<8x128xf32> -> vector<8x128xf32>
    %810 = arith.mulf %808, %809 : vector<8x128xf32>
    %811 = tpu.concatenate %189, %258, %327, %396, %465, %534, %603, %672, %741, %810 in 1 : vector<8x128xf32>, vector<8x128xf32>, vector<8x128xf32>, vector<8x128xf32>, vector<8x128xf32>, vector<8x128xf32>, vector<8x128xf32>, vector<8x128xf32>, vector<8x128xf32>, vector<8x128xf32> -> vector<8x1280xf32>
    %c1_66 = arith.constant 1 : index
    %c0_67 = arith.constant 0 : index
    %c0_68 = arith.constant 0 : index
    %812 = vector.load %arg1[%c1_66, %c0_67, %c0_68] : memref<10x24x16xf32, #tpu.memory_space<vmem>>, vector<1x8x8xf32>
    %813 = vector.shape_cast %812 : vector<1x8x8xf32> to vector<8x8xf32>
    %cst_69 = arith.constant dense<0.000000e+00> : vector<8x1280xf32>
    %814 = tpu.matmul %813, %811, %cst_69 {dimension_numbers = #tpu.dot_dimension_numbers<[1], [0], [0], [1], [0, 0, 1, 1], [], []>} : vector<8x8xf32>, vector<8x1280xf32>, vector<8x1280xf32> -> vector<8x1280xf32>
    %c1_70 = arith.constant 1 : index
    %c0_71 = arith.constant 0 : index
    %c0_72 = arith.constant 0 : index
    %815 = vector.load %arg2[%c1_70, %c0_71, %c0_72] : memref<10x24x1xf32, #tpu.memory_space<vmem>>, vector<1x8x1xf32>
    %816 = vector.shape_cast %815 : vector<1x8x1xf32> to vector<8x1xf32>
    %817 = vector.broadcast %816 : vector<8x1xf32> to vector<8x1280xf32>
    %818 = arith.addf %814, %817 : vector<8x1280xf32>
    %819 = arith.addf %80, %818 : vector<8x1280xf32>
    %c2_73 = arith.constant 2 : index
    %c0_74 = arith.constant 0 : index
    %c0_75 = arith.constant 0 : index
    %820 = vector.load %arg1[%c2_73, %c0_74, %c0_75] : memref<10x24x16xf32, #tpu.memory_space<vmem>>, vector<1x16x8xf32>
    %821 = vector.shape_cast %820 : vector<1x16x8xf32> to vector<16x8xf32>
    %cst_76 = arith.constant dense<0.000000e+00> : vector<16x1280xf32>
    %822 = tpu.matmul %821, %819, %cst_76 {dimension_numbers = #tpu.dot_dimension_numbers<[1], [0], [0], [1], [0, 0, 1, 1], [], []>} : vector<16x8xf32>, vector<8x1280xf32>, vector<16x1280xf32> -> vector<16x1280xf32>
    %c2_77 = arith.constant 2 : index
    %c0_78 = arith.constant 0 : index
    %c0_79 = arith.constant 0 : index
    %823 = vector.load %arg2[%c2_77, %c0_78, %c0_79] : memref<10x24x1xf32, #tpu.memory_space<vmem>>, vector<1x16x1xf32>
    %824 = vector.shape_cast %823 : vector<1x16x1xf32> to vector<16x1xf32>
    %825 = vector.broadcast %824 : vector<16x1xf32> to vector<16x1280xf32>
    %826 = arith.addf %822, %825 : vector<16x1280xf32>
    %cst_80 = arith.constant 0.000000e+00 : f32
    %827 = vector.broadcast %cst_80 : f32 to vector<16x1280xf32>
    %828 = arith.cmpf oge, %826, %827 : vector<16x1280xf32>
    %cst_81 = arith.constant 1.000000e+00 : f32
    %829 = vector.broadcast %cst_81 : f32 to vector<16x1280xf32>
    %830 = arith.mulf %829, %826 : vector<16x1280xf32>
    %831 = arith.select %828, %826, %830 : vector<16x1280xi1>, vector<16x1280xf32>
    %c3_82 = arith.constant 3 : index
    %c0_83 = arith.constant 0 : index
    %c0_84 = arith.constant 0 : index
    %832 = vector.load %arg1[%c3_82, %c0_83, %c0_84] : memref<10x24x16xf32, #tpu.memory_space<vmem>>, vector<1x8x16xf32>
    %833 = vector.shape_cast %832 : vector<1x8x16xf32> to vector<8x16xf32>
    %cst_85 = arith.constant dense<0.000000e+00> : vector<8x1280xf32>
    %834 = tpu.matmul %833, %831, %cst_85 {dimension_numbers = #tpu.dot_dimension_numbers<[1], [0], [0], [1], [0, 0, 1, 1], [], []>} : vector<8x16xf32>, vector<16x1280xf32>, vector<8x1280xf32> -> vector<8x1280xf32>
    %c3_86 = arith.constant 3 : index
    %c0_87 = arith.constant 0 : index
    %c0_88 = arith.constant 0 : index
    %835 = vector.load %arg2[%c3_86, %c0_87, %c0_88] : memref<10x24x1xf32, #tpu.memory_space<vmem>>, vector<1x8x1xf32>
    %836 = vector.shape_cast %835 : vector<1x8x1xf32> to vector<8x1xf32>
    %837 = vector.broadcast %836 : vector<8x1xf32> to vector<8x1280xf32>
    %838 = arith.addf %834, %837 : vector<8x1280xf32>
    %839 = arith.addf %819, %838 : vector<8x1280xf32>
    %c0_89 = arith.constant 0 : index
    %c0_90 = arith.constant 0 : index
    %840 = vector.load %arg5[%c0_89, %c0_90] : memref<8x128xf32, #tpu.memory_space<vmem>>, vector<8x128xf32>
    %c4_91 = arith.constant 4 : index
    %c0_92 = arith.constant 0 : index
    %c0_93 = arith.constant 0 : index
    %841 = vector.load %arg1[%c4_91, %c0_92, %c0_93] : memref<10x24x16xf32, #tpu.memory_space<vmem>>, vector<1x24x8xf32>
    %842 = vector.shape_cast %841 : vector<1x24x8xf32> to vector<24x8xf32>
    %c4_94 = arith.constant 4 : index
    %c0_95 = arith.constant 0 : index
    %c0_96 = arith.constant 0 : index
    %843 = vector.load %arg2[%c4_94, %c0_95, %c0_96] : memref<10x24x1xf32, #tpu.memory_space<vmem>>, vector<1x24x1xf32>
    %844 = vector.shape_cast %843 : vector<1x24x1xf32> to vector<24x1xf32>
    %845 = vector.extract_strided_slice %842 {offsets = [16, 0], sizes = [8, 8], strides = [1, 1]} : vector<24x8xf32> to vector<8x8xf32>
    %cst_97 = arith.constant dense<0.000000e+00> : vector<8x128xf32>
    %846 = tpu.matmul %845, %840, %cst_97 {dimension_numbers = #tpu.dot_dimension_numbers<[1], [0], [0], [1], [0, 0, 1, 1], [], []>} : vector<8x8xf32>, vector<8x128xf32>, vector<8x128xf32> -> vector<8x128xf32>
    %847 = vector.extract_strided_slice %844 {offsets = [16, 0], sizes = [8, 1], strides = [1, 1]} : vector<24x1xf32> to vector<8x1xf32>
    %848 = vector.broadcast %847 : vector<8x1xf32> to vector<8x128xf32>
    %849 = arith.addf %846, %848 : vector<8x128xf32>
    %c5_98 = arith.constant 5 : index
    %c0_99 = arith.constant 0 : index
    %c0_100 = arith.constant 0 : index
    %850 = vector.load %arg1[%c5_98, %c0_99, %c0_100] : memref<10x24x16xf32, #tpu.memory_space<vmem>>, vector<1x8x8xf32>
    %851 = vector.shape_cast %850 : vector<1x8x8xf32> to vector<8x8xf32>
    %cst_101 = arith.constant dense<0.000000e+00> : vector<8x128xf32>
    %852 = tpu.matmul %851, %849, %cst_101 {dimension_numbers = #tpu.dot_dimension_numbers<[1], [0], [0], [1], [0, 0, 1, 1], [], []>} : vector<8x8xf32>, vector<8x128xf32>, vector<8x128xf32> -> vector<8x128xf32>
    %c5_102 = arith.constant 5 : index
    %c0_103 = arith.constant 0 : index
    %c0_104 = arith.constant 0 : index
    %853 = vector.load %arg2[%c5_102, %c0_103, %c0_104] : memref<10x24x1xf32, #tpu.memory_space<vmem>>, vector<1x8x1xf32>
    %854 = vector.shape_cast %853 : vector<1x8x1xf32> to vector<8x1xf32>
    %855 = vector.broadcast %854 : vector<8x1xf32> to vector<8x128xf32>
    %856 = arith.addf %852, %855 : vector<8x128xf32>
    %857 = arith.addf %840, %856 : vector<8x128xf32>
    %c6_105 = arith.constant 6 : index
    %c0_106 = arith.constant 0 : index
    %c0_107 = arith.constant 0 : index
    %858 = vector.load %arg1[%c6_105, %c0_106, %c0_107] : memref<10x24x16xf32, #tpu.memory_space<vmem>>, vector<1x24x8xf32>
    %859 = vector.shape_cast %858 : vector<1x24x8xf32> to vector<24x8xf32>
    %c6_108 = arith.constant 6 : index
    %c0_109 = arith.constant 0 : index
    %c0_110 = arith.constant 0 : index
    %860 = vector.load %arg2[%c6_108, %c0_109, %c0_110] : memref<10x24x1xf32, #tpu.memory_space<vmem>>, vector<1x24x1xf32>
    %861 = vector.shape_cast %860 : vector<1x24x1xf32> to vector<24x1xf32>
    %862 = vector.extract_strided_slice %859 {offsets = [0, 0], sizes = [8, 8], strides = [1, 1]} : vector<24x8xf32> to vector<8x8xf32>
    %cst_111 = arith.constant dense<0.000000e+00> : vector<8x128xf32>
    %863 = tpu.matmul %862, %857, %cst_111 {dimension_numbers = #tpu.dot_dimension_numbers<[1], [0], [0], [1], [0, 0, 1, 1], [], []>} : vector<8x8xf32>, vector<8x128xf32>, vector<8x128xf32> -> vector<8x128xf32>
    %864 = vector.extract_strided_slice %861 {offsets = [0, 0], sizes = [8, 1], strides = [1, 1]} : vector<24x1xf32> to vector<8x1xf32>
    %865 = vector.broadcast %864 : vector<8x1xf32> to vector<8x128xf32>
    %866 = arith.addf %863, %865 : vector<8x128xf32>
    %867 = vector.extract_strided_slice %859 {offsets = [8, 0], sizes = [16, 8], strides = [1, 1]} : vector<24x8xf32> to vector<16x8xf32>
    %cst_112 = arith.constant dense<0.000000e+00> : vector<16x1280xf32>
    %868 = tpu.matmul %867, %839, %cst_112 {dimension_numbers = #tpu.dot_dimension_numbers<[1], [0], [0], [1], [0, 0, 1, 1], [], []>} : vector<16x8xf32>, vector<8x1280xf32>, vector<16x1280xf32> -> vector<16x1280xf32>
    %869 = vector.extract_strided_slice %861 {offsets = [8, 0], sizes = [16, 1], strides = [1, 1]} : vector<24x1xf32> to vector<16x1xf32>
    %870 = vector.broadcast %869 : vector<16x1xf32> to vector<16x1280xf32>
    %871 = arith.addf %868, %870 : vector<16x1280xf32>
    %872 = vector.extract_strided_slice %871 {offsets = [0, 0], sizes = [8, 1280], strides = [1, 1]} : vector<16x1280xf32> to vector<8x1280xf32>
    %873 = vector.extract_strided_slice %872 {offsets = [0, 0], sizes = [8, 128], strides = [1, 1]} : vector<8x1280xf32> to vector<8x128xf32>
    %874 = vector.extract_strided_slice %872 {offsets = [0, 128], sizes = [8, 128], strides = [1, 1]} : vector<8x1280xf32> to vector<8x128xf32>
    %875 = vector.extract_strided_slice %872 {offsets = [0, 256], sizes = [8, 128], strides = [1, 1]} : vector<8x1280xf32> to vector<8x128xf32>
    %876 = vector.extract_strided_slice %872 {offsets = [0, 384], sizes = [8, 128], strides = [1, 1]} : vector<8x1280xf32> to vector<8x128xf32>
    %877 = vector.extract_strided_slice %872 {offsets = [0, 512], sizes = [8, 128], strides = [1, 1]} : vector<8x1280xf32> to vector<8x128xf32>
    %878 = vector.extract_strided_slice %872 {offsets = [0, 640], sizes = [8, 128], strides = [1, 1]} : vector<8x1280xf32> to vector<8x128xf32>
    %879 = vector.extract_strided_slice %872 {offsets = [0, 768], sizes = [8, 128], strides = [1, 1]} : vector<8x1280xf32> to vector<8x128xf32>
    %880 = vector.extract_strided_slice %872 {offsets = [0, 896], sizes = [8, 128], strides = [1, 1]} : vector<8x1280xf32> to vector<8x128xf32>
    %881 = vector.extract_strided_slice %872 {offsets = [0, 1024], sizes = [8, 128], strides = [1, 1]} : vector<8x1280xf32> to vector<8x128xf32>
    %882 = vector.extract_strided_slice %872 {offsets = [0, 1152], sizes = [8, 128], strides = [1, 1]} : vector<8x1280xf32> to vector<8x128xf32>
    %883 = vector.extract_strided_slice %871 {offsets = [8, 0], sizes = [8, 1280], strides = [1, 1]} : vector<16x1280xf32> to vector<8x1280xf32>
    %884 = vector.extract_strided_slice %883 {offsets = [0, 0], sizes = [8, 128], strides = [1, 1]} : vector<8x1280xf32> to vector<8x128xf32>
    %885 = vector.extract_strided_slice %883 {offsets = [0, 128], sizes = [8, 128], strides = [1, 1]} : vector<8x1280xf32> to vector<8x128xf32>
    %886 = vector.extract_strided_slice %883 {offsets = [0, 256], sizes = [8, 128], strides = [1, 1]} : vector<8x1280xf32> to vector<8x128xf32>
    %887 = vector.extract_strided_slice %883 {offsets = [0, 384], sizes = [8, 128], strides = [1, 1]} : vector<8x1280xf32> to vector<8x128xf32>
    %888 = vector.extract_strided_slice %883 {offsets = [0, 512], sizes = [8, 128], strides = [1, 1]} : vector<8x1280xf32> to vector<8x128xf32>
    %889 = vector.extract_strided_slice %883 {offsets = [0, 640], sizes = [8, 128], strides = [1, 1]} : vector<8x1280xf32> to vector<8x128xf32>
    %890 = vector.extract_strided_slice %883 {offsets = [0, 768], sizes = [8, 128], strides = [1, 1]} : vector<8x1280xf32> to vector<8x128xf32>
    %891 = vector.extract_strided_slice %883 {offsets = [0, 896], sizes = [8, 128], strides = [1, 1]} : vector<8x1280xf32> to vector<8x128xf32>
    %892 = vector.extract_strided_slice %883 {offsets = [0, 1024], sizes = [8, 128], strides = [1, 1]} : vector<8x1280xf32> to vector<8x128xf32>
    %893 = vector.extract_strided_slice %883 {offsets = [0, 1152], sizes = [8, 128], strides = [1, 1]} : vector<8x1280xf32> to vector<8x128xf32>
    %894 = arith.mulf %866, %873 : vector<8x128xf32>
    %895 = arith.mulf %866, %874 : vector<8x128xf32>
    %896 = arith.mulf %866, %875 : vector<8x128xf32>
    %897 = arith.mulf %866, %876 : vector<8x128xf32>
    %898 = arith.mulf %866, %877 : vector<8x128xf32>
    %899 = arith.mulf %866, %878 : vector<8x128xf32>
    %900 = arith.mulf %866, %879 : vector<8x128xf32>
    %901 = arith.mulf %866, %880 : vector<8x128xf32>
    %902 = arith.mulf %866, %881 : vector<8x128xf32>
    %903 = arith.mulf %866, %882 : vector<8x128xf32>
    %904 = arith.maximumf %894, %895 : vector<8x128xf32>
    %905 = arith.maximumf %904, %896 : vector<8x128xf32>
    %906 = arith.maximumf %905, %897 : vector<8x128xf32>
    %907 = arith.maximumf %906, %898 : vector<8x128xf32>
    %908 = arith.maximumf %907, %899 : vector<8x128xf32>
    %909 = arith.maximumf %908, %900 : vector<8x128xf32>
    %910 = arith.maximumf %909, %901 : vector<8x128xf32>
    %911 = arith.maximumf %910, %902 : vector<8x128xf32>
    %912 = arith.maximumf %911, %903 : vector<8x128xf32>
    %913 = arith.subf %894, %912 : vector<8x128xf32>
    %914 = math.exp %913 : vector<8x128xf32>
    %915 = arith.subf %895, %912 : vector<8x128xf32>
    %916 = math.exp %915 : vector<8x128xf32>
    %917 = arith.subf %896, %912 : vector<8x128xf32>
    %918 = math.exp %917 : vector<8x128xf32>
    %919 = arith.subf %897, %912 : vector<8x128xf32>
    %920 = math.exp %919 : vector<8x128xf32>
    %921 = arith.subf %898, %912 : vector<8x128xf32>
    %922 = math.exp %921 : vector<8x128xf32>
    %923 = arith.subf %899, %912 : vector<8x128xf32>
    %924 = math.exp %923 : vector<8x128xf32>
    %925 = arith.subf %900, %912 : vector<8x128xf32>
    %926 = math.exp %925 : vector<8x128xf32>
    %927 = arith.subf %901, %912 : vector<8x128xf32>
    %928 = math.exp %927 : vector<8x128xf32>
    %929 = arith.subf %902, %912 : vector<8x128xf32>
    %930 = math.exp %929 : vector<8x128xf32>
    %931 = arith.subf %903, %912 : vector<8x128xf32>
    %932 = math.exp %931 : vector<8x128xf32>
    %933 = arith.addf %914, %916 : vector<8x128xf32>
    %934 = arith.addf %933, %918 : vector<8x128xf32>
    %935 = arith.addf %934, %920 : vector<8x128xf32>
    %936 = arith.addf %935, %922 : vector<8x128xf32>
    %937 = arith.addf %936, %924 : vector<8x128xf32>
    %938 = arith.addf %937, %926 : vector<8x128xf32>
    %939 = arith.addf %938, %928 : vector<8x128xf32>
    %940 = arith.addf %939, %930 : vector<8x128xf32>
    %941 = arith.addf %940, %932 : vector<8x128xf32>
    %942 = arith.mulf %914, %884 : vector<8x128xf32>
    %943 = arith.mulf %916, %885 : vector<8x128xf32>
    %944 = arith.addf %942, %943 : vector<8x128xf32>
    %945 = arith.mulf %918, %886 : vector<8x128xf32>
    %946 = arith.addf %944, %945 : vector<8x128xf32>
    %947 = arith.mulf %920, %887 : vector<8x128xf32>
    %948 = arith.addf %946, %947 : vector<8x128xf32>
    %949 = arith.mulf %922, %888 : vector<8x128xf32>
    %950 = arith.addf %948, %949 : vector<8x128xf32>
    %951 = arith.mulf %924, %889 : vector<8x128xf32>
    %952 = arith.addf %950, %951 : vector<8x128xf32>
    %953 = arith.mulf %926, %890 : vector<8x128xf32>
    %954 = arith.addf %952, %953 : vector<8x128xf32>
    %955 = arith.mulf %928, %891 : vector<8x128xf32>
    %956 = arith.addf %954, %955 : vector<8x128xf32>
    %957 = arith.mulf %930, %892 : vector<8x128xf32>
    %958 = arith.addf %956, %957 : vector<8x128xf32>
    %959 = arith.mulf %932, %893 : vector<8x128xf32>
    %960 = arith.addf %958, %959 : vector<8x128xf32>
    %961 = tpu.reciprocal %941 {approx = true} : vector<8x128xf32> -> vector<8x128xf32>
    %962 = arith.mulf %960, %961 : vector<8x128xf32>
    %c7_113 = arith.constant 7 : index
    %c0_114 = arith.constant 0 : index
    %c0_115 = arith.constant 0 : index
    %963 = vector.load %arg1[%c7_113, %c0_114, %c0_115] : memref<10x24x16xf32, #tpu.memory_space<vmem>>, vector<1x8x8xf32>
    %964 = vector.shape_cast %963 : vector<1x8x8xf32> to vector<8x8xf32>
    %cst_116 = arith.constant dense<0.000000e+00> : vector<8x128xf32>
    %965 = tpu.matmul %964, %962, %cst_116 {dimension_numbers = #tpu.dot_dimension_numbers<[1], [0], [0], [1], [0, 0, 1, 1], [], []>} : vector<8x8xf32>, vector<8x128xf32>, vector<8x128xf32> -> vector<8x128xf32>
    %c7_117 = arith.constant 7 : index
    %c0_118 = arith.constant 0 : index
    %c0_119 = arith.constant 0 : index
    %966 = vector.load %arg2[%c7_117, %c0_118, %c0_119] : memref<10x24x1xf32, #tpu.memory_space<vmem>>, vector<1x8x1xf32>
    %967 = vector.shape_cast %966 : vector<1x8x1xf32> to vector<8x1xf32>
    %968 = vector.broadcast %967 : vector<8x1xf32> to vector<8x128xf32>
    %969 = arith.addf %965, %968 : vector<8x128xf32>
    %970 = arith.addf %857, %969 : vector<8x128xf32>
    %c8_120 = arith.constant 8 : index
    %c0_121 = arith.constant 0 : index
    %c0_122 = arith.constant 0 : index
    %971 = vector.load %arg1[%c8_120, %c0_121, %c0_122] : memref<10x24x16xf32, #tpu.memory_space<vmem>>, vector<1x16x8xf32>
    %972 = vector.shape_cast %971 : vector<1x16x8xf32> to vector<16x8xf32>
    %cst_123 = arith.constant dense<0.000000e+00> : vector<16x128xf32>
    %973 = tpu.matmul %972, %970, %cst_123 {dimension_numbers = #tpu.dot_dimension_numbers<[1], [0], [0], [1], [0, 0, 1, 1], [], []>} : vector<16x8xf32>, vector<8x128xf32>, vector<16x128xf32> -> vector<16x128xf32>
    %c8_124 = arith.constant 8 : index
    %c0_125 = arith.constant 0 : index
    %c0_126 = arith.constant 0 : index
    %974 = vector.load %arg2[%c8_124, %c0_125, %c0_126] : memref<10x24x1xf32, #tpu.memory_space<vmem>>, vector<1x16x1xf32>
    %975 = vector.shape_cast %974 : vector<1x16x1xf32> to vector<16x1xf32>
    %976 = vector.broadcast %975 : vector<16x1xf32> to vector<16x128xf32>
    %977 = arith.addf %973, %976 : vector<16x128xf32>
    %cst_127 = arith.constant 0.000000e+00 : f32
    %978 = vector.broadcast %cst_127 : f32 to vector<16x128xf32>
    %979 = arith.cmpf oge, %977, %978 : vector<16x128xf32>
    %cst_128 = arith.constant 1.000000e+00 : f32
    %980 = vector.broadcast %cst_128 : f32 to vector<16x128xf32>
    %981 = arith.mulf %980, %977 : vector<16x128xf32>
    %982 = arith.select %979, %977, %981 : vector<16x128xi1>, vector<16x128xf32>
    %c9_129 = arith.constant 9 : index
    %c0_130 = arith.constant 0 : index
    %c0_131 = arith.constant 0 : index
    %983 = vector.load %arg1[%c9_129, %c0_130, %c0_131] : memref<10x24x16xf32, #tpu.memory_space<vmem>>, vector<1x8x16xf32>
    %984 = vector.shape_cast %983 : vector<1x8x16xf32> to vector<8x16xf32>
    %cst_132 = arith.constant dense<0.000000e+00> : vector<8x128xf32>
    %985 = tpu.matmul %984, %982, %cst_132 {dimension_numbers = #tpu.dot_dimension_numbers<[1], [0], [0], [1], [0, 0, 1, 1], [], []>} : vector<8x16xf32>, vector<16x128xf32>, vector<8x128xf32> -> vector<8x128xf32>
    %c9_133 = arith.constant 9 : index
    %c0_134 = arith.constant 0 : index
    %c0_135 = arith.constant 0 : index
    %986 = vector.load %arg2[%c9_133, %c0_134, %c0_135] : memref<10x24x1xf32, #tpu.memory_space<vmem>>, vector<1x8x1xf32>
    %987 = vector.shape_cast %986 : vector<1x8x1xf32> to vector<8x1xf32>
    %988 = vector.broadcast %987 : vector<8x1xf32> to vector<8x128xf32>
    %989 = arith.addf %985, %988 : vector<8x128xf32>
    %990 = arith.addf %970, %989 : vector<8x128xf32>
    %cst_136 = arith.constant 0.000000e+00 : f32
    %991 = vector.broadcast %cst_136 : f32 to vector<8x128xf32>
    %992 = arith.subf %991, %990 : vector<8x128xf32>
    %993 = math.exp %992 : vector<8x128xf32>
    %cst_137 = arith.constant 1.000000e+00 : f32
    %994 = vector.broadcast %cst_137 : f32 to vector<8x128xf32>
    %995 = arith.addf %994, %993 : vector<8x128xf32>
    %cst_138 = arith.constant 1.000000e+00 : f32
    %996 = vector.broadcast %cst_138 : f32 to vector<8x128xf32>
    %997 = arith.divf %996, %995 : vector<8x128xf32>
    %c0_139 = arith.constant 0 : index
    %c0_140 = arith.constant 0 : index
    %998 = vector.load %arg6[%c0_139, %c0_140] : memref<8x128xf32, #tpu.memory_space<vmem>>, vector<8x128xf32>
    tpu.vector_store %arg6[%c0_139, %c0_140], %997 {strides = array<i32>} : memref<8x128xf32, #tpu.memory_space<vmem>>, vector<8x128xf32>,
    return
  }
  func.func @transform_0(%arg0: i32) -> (i32, i32, i32) {
    %c0_i32 = arith.constant 0 : i32
    %c0_i32_0 = arith.constant 0 : i32
    %c0_i32_1 = arith.constant 0 : i32
    %c0_i32_2 = arith.constant 0 : i32
    return %c0_i32, %c0_i32_0, %c0_i32_1 : i32, i32, i32
  }
  func.func @transform_1(%arg0: i32) -> (i32, i32, i32) {
    %c0_i32 = arith.constant 0 : i32
    %c0_i32_0 = arith.constant 0 : i32
    %c0_i32_1 = arith.constant 0 : i32
    %c0_i32_2 = arith.constant 0 : i32
    return %c0_i32, %c0_i32_0, %c0_i32_1 : i32, i32, i32
  }
  func.func @transform_2(%arg0: i32) -> (i32, i32, i32) {
    %c0_i32 = arith.constant 0 : i32
    %c0_i32_0 = arith.constant 0 : i32
    %c0_i32_1 = arith.constant 0 : i32
    %c0_i32_2 = arith.constant 0 : i32
    return %c0_i32, %c0_i32_0, %c0_i32_1 : i32, i32, i32
  }
  func.func @transform_3(%arg0: i32) -> (i32, i32, i32) {
    %c0_i32 = arith.constant 0 : i32
    %c0_i32_0 = arith.constant 0 : i32
    %c0_i32_1 = arith.constant 0 : i32
    return %c0_i32, %c0_i32_0, %arg0 : i32, i32, i32
  }
  func.func @transform_4(%arg0: i32) -> (i32, i32) {
    %c0_i32 = arith.constant 0 : i32
    %c0_i32_0 = arith.constant 0 : i32
    return %c0_i32, %arg0 : i32, i32
  }
  func.func @transform_5(%arg0: i32) -> (i32, i32) {
    %c0_i32 = arith.constant 0 : i32
    %c0_i32_0 = arith.constant 0 : i32
    return %c0_i32, %arg0 : i32, i32
  }
}

</mosaic_0001>

<llo_original>
// kernel: tranad_basic_forward.1
$region0: #{tranad_basic_forward.1}
  #allocation0 [shape = 'u32[]', space=smem, size = 0x4, offset = 0x4, fixed_abs, tag = 'smem constant byte address 0x4 - core index']
  #allocation1 [shape = 'u32[144,128]{1,0:T(1,128)}', space=vmem, size = 0x12000, scoped, tag = 'internal scratch']
  %s0 = inlined_call_operand.hbm [shape: f32[10,24,16], index: 0, kind: input, shape index: {}]
  %s1 = inlined_call_operand.hbm [shape: f32[10,24,1], index: 1, kind: input, shape index: {}]
  %s2 = inlined_call_operand.vmem [shape: f32[10,8,1], index: 2, kind: input, shape index: {}]
  %s3 = inlined_call_operand.hbm [shape: f32[10,8,256], index: 3, kind: input, shape index: {}]
  %s4 = inlined_call_operand.vmem [shape: f32[8,256], index: 4, kind: input, shape index: {}]
  %s5 = inlined_call_operand.hbm [shape: f32[8,256], index: 5, kind: output, shape index: {}]
  %s6 = sld [smem:[#allocation0]]
  $region65: #{tranad_basic_forward.1} parent=0
    _
  %s8 = ssub.s32 1, %s6
  %s9 = scalar_select 0, %s8, %s6
  $region1: #{tranad_basic_forward.1} parent=0
    #allocation2 [shape = 'u8[122880]{0}', space=vmem, size = 0x1e000, scoped, tag = 'input window, operand 0, single buffered']
    #allocation3 [shape = 's32[2]{0}', space=sflag, size = 0x8, scoped, tag = 'scoped memory for tranad_basic_forward.1']
    #allocation4 [shape = 's32[2]{0}', space=sflag, size = 0x8, scoped, tag = 'scoped memory for tranad_basic_forward.1']
    #allocation5 [shape = 'u8[122880]{0}', space=vmem, size = 0x1e000, scoped, tag = 'input window, operand 1, single buffered']
    #allocation6 [shape = 's32[1]{0}', space=sflag, size = 0x4, scoped, tag = 'scoped memory for tranad_basic_forward.1']
    #allocation7 [shape = 'u8[81920]{0}', space=vmem, size = 0x14000, scoped, tag = 'input window, operand 3']
    #allocation8 [shape = 'u8[8192]{0}', space=vmem, size = 0x2000, scoped, tag = 'output window, operand 0']
    %10 = vsyncpa [#allocation3], 0
    %11 = vsyncpa [#allocation6], 0
    %12 = vsyncpa [#allocation4], 0
    %s13 = scalar_lea.sflag [#allocation4], 1
    %14 = vsyncpa %s13, 0
    loop: start=0, step=1, limit=4
    $region2: #{tranad_basic_forward.1} parent=1 // loop_pre_header
      _
    $region3: #{tranad_basic_forward.1} parent=1 // loop_header
      %s16 = sphi 0, %s20
      %p17 = scmp.ge.s32.totalorder %s16, 4
      %s24 = sphi 0, %s24
      %s26 = sphi 0, %s24
      %s27 = sphi 0, %s26
      %s41 = sphi 0, %s27
      %s45 = sphi 0, %s45
      %s47 = sphi 0, %s45
      %s48 = sphi 0, %s47
      %s62 = sphi 0, %s48
      %s66 = sphi 0, %s66
      %s68 = sphi 0, %s66
      %s69 = sphi 0, %s68
      %s83 = sphi 0, %s69
      %s89 = sphi 0, %s91
      %s92 = sphi 0, %s89
      %s93 = sphi 0, %s92
      %s109 = sphi 0, %s93
      %s115 = sphi 0, %s117
      %s118 = sphi 0, %s115
      %s119 = sphi 0, %s118
      %s135 = sphi 0, %s119
      %s141 = sphi 0, %s143
      %s144 = sphi 0, %s141
      %s145 = sphi 0, %s144
      %s161 = sphi 0, %s145
    $region4: #{tranad_basic_forward.1} parent=1 // loop_header_branch
      %19 = sbr.rel (%p17) target = $region8
    $region5: #{tranad_basic_forward.1} parent=1 // loop_body
      %s21 = ssub.s32 %s16, 1
      %s22 = ssub.s32 %s16, 2
      %s23 = sadd.s32 %s16, 1
      %s25 = sadd.s32 %s24, 1
      %p28 = scmp.eq.s32.totalorder %s16, 1
      %p29 = scmp.ne.s32.totalorder %s24, %s26
      %p30 = scmp.eq.s32.totalorder %s16, 0
      %p31 = por %p29, %p30
      %p32 = scmp.ne.s32.totalorder %s24, %s26
      %p33 = scmp.eq.s32.totalorder %s21, 1
      %p34 = por %p32, %p33
      %p35 = scmp.ne.s32.totalorder %s26, %s27
      %p36 = scmp.eq.s32.totalorder %s21, 0
      %p37 = por %p35, %p36
      %p38 = scmp.ne.s32.totalorder %s26, %s27
      %p39 = scmp.eq.s32.totalorder %s22, 1
      %p40 = por %p38, %p39
      %p42 = scmp.ne.s32.totalorder %s27, %s41
      %p43 = scmp.eq.s32.totalorder %s22, 0
      %p44 = por %p42, %p43
      %s46 = sadd.s32 %s45, 1
      %p49 = scmp.eq.s32.totalorder %s16, 1
      %p50 = scmp.ne.s32.totalorder %s45, %s47
      %p51 = scmp.eq.s32.totalorder %s16, 0
      %p52 = por %p50, %p51
      %p53 = scmp.ne.s32.totalorder %s45, %s47
      %p54 = scmp.eq.s32.totalorder %s21, 1
      %p55 = por %p53, %p54
      %p56 = scmp.ne.s32.totalorder %s47, %s48
      %p57 = scmp.eq.s32.totalorder %s21, 0
      %p58 = por %p56, %p57
      %p59 = scmp.ne.s32.totalorder %s47, %s48
      %p60 = scmp.eq.s32.totalorder %s22, 1
      %p61 = por %p59, %p60
      %p63 = scmp.ne.s32.totalorder %s48, %s62
      %p64 = scmp.eq.s32.totalorder %s22, 0
      %p65 = por %p63, %p64
      %s67 = sadd.s32 %s66, 1
      %p70 = scmp.eq.s32.totalorder %s16, 1
      %p71 = scmp.ne.s32.totalorder %s66, %s68
      %p72 = scmp.eq.s32.totalorder %s16, 0
      %p73 = por %p71, %p72
      %p74 = scmp.ne.s32.totalorder %s66, %s68
      %p75 = scmp.eq.s32.totalorder %s21, 1
      %p76 = por %p74, %p75
      %p77 = scmp.ne.s32.totalorder %s68, %s69
      %p78 = scmp.eq.s32.totalorder %s21, 0
      %p79 = por %p77, %p78
      %p80 = scmp.ne.s32.totalorder %s68, %s69
      %p81 = scmp.eq.s32.totalorder %s22, 1
      %p82 = por %p80, %p81
      %p84 = scmp.ne.s32.totalorder %s69, %s83
      %p85 = scmp.eq.s32.totalorder %s22, 0
      %p86 = por %p84, %p85
      %s87 = ssub.s32 %s16, %s23
      %p88 = scmp.eq.s32.totalorder %s87, 0
      %s90 = sadd.s32 %s89, 1
      %s91 = scalar_select %p88, %s89, %s90
      %p94 = pneg %p88
      %p95 = scmp.eq.s32.totalorder %s16, 1
      %p96 = por %p94, %p95
      %p97 = scmp.ne.s32.totalorder %s89, %s92
      %p98 = scmp.eq.s32.totalorder %s16, 0
      %p99 = por %p97, %p98
      %p100 = scmp.ne.s32.totalorder %s89, %s92
      %p101 = scmp.eq.s32.totalorder %s21, 1
      %p102 = por %p100, %p101
      %p103 = scmp.ne.s32.totalorder %s92, %s93
      %p104 = scmp.eq.s32.totalorder %s21, 0
      %p105 = por %p103, %p104
      %p106 = scmp.ne.s32.totalorder %s92, %s93
      %p107 = scmp.eq.s32.totalorder %s22, 1
      %p108 = por %p106, %p107
      %p110 = scmp.ne.s32.totalorder %s93, %s109
      %p111 = scmp.eq.s32.totalorder %s22, 0
      %p112 = por %p110, %p111
      %s113 = ssub.s32 %s16, %s23
      %p114 = scmp.eq.s32.totalorder %s113, 0
      %s116 = sadd.s32 %s115, 1
      %s117 = scalar_select %p114, %s115, %s116
      %p120 = pneg %p114
      %p121 = scmp.eq.s32.totalorder %s16, 1
      %p122 = por %p120, %p121
      %p123 = scmp.ne.s32.totalorder %s115, %s118
      %p124 = scmp.eq.s32.totalorder %s16, 0
      %p125 = por %p123, %p124
      %p126 = scmp.ne.s32.totalorder %s115, %s118
      %p127 = scmp.eq.s32.totalorder %s21, 1
      %p128 = por %p126, %p127
      %p129 = scmp.ne.s32.totalorder %s118, %s119
      %p130 = scmp.eq.s32.totalorder %s21, 0
      %p131 = por %p129, %p130
      %p132 = scmp.ne.s32.totalorder %s118, %s119
      %p133 = scmp.eq.s32.totalorder %s22, 1
      %p134 = por %p132, %p133
      %p136 = scmp.ne.s32.totalorder %s119, %s135
      %p137 = scmp.eq.s32.totalorder %s22, 0
      %p138 = por %p136, %p137
      %s139 = ssub.s32 %s16, %s23
      %p140 = scmp.eq.s32.totalorder %s139, 0
      %s142 = sadd.s32 %s141, 1
      %s143 = scalar_select %p140, %s141, %s142
      %p146 = pneg %p140
      %p147 = scmp.eq.s32.totalorder %s16, 1
      %p148 = por %p146, %p147
      %p149 = scmp.ne.s32.totalorder %s141, %s144
      %p150 = scmp.eq.s32.totalorder %s16, 0
      %p151 = por %p149, %p150
      %p152 = scmp.ne.s32.totalorder %s141, %s144
      %p153 = scmp.eq.s32.totalorder %s21, 1
      %p154 = por %p152, %p153
      %p155 = scmp.ne.s32.totalorder %s144, %s145
      %p156 = scmp.eq.s32.totalorder %s21, 0
      %p157 = por %p155, %p156
      %p158 = scmp.ne.s32.totalorder %s144, %s145
      %p159 = scmp.eq.s32.totalorder %s22, 1
      %p160 = por %p158, %p159
      %p162 = scmp.ne.s32.totalorder %s145, %s161
      %p163 = scmp.eq.s32.totalorder %s22, 0
      %p164 = por %p162, %p163
      %p165 = scmp.le.s32.totalorder 1, %s16
      %p166 = scmp.lt.s32.totalorder %s16, 3
      %p167 = pnand %p165, %p166
      %p168 = pneg %p167
      // Predicated region
      $region9: #{tranad_basic_forward.1} parent=5 // pred_check
        _
      $region10: #{tranad_basic_forward.1} parent=5 // pred_check_branch
        %170 = sbr.rel (%p167) target = $region12
      $region11: #{tranad_basic_forward.1} parent=5 // pred_region
        %s171 = ssub.s32 %s16, 1
        // Predicated region
        $region13: #{tranad_basic_forward.1} parent=11 // pred_check
          %p172 = pneg %p37
        $region14: #{tranad_basic_forward.1} parent=11 // pred_check_branch
          %174 = sbr.rel (%p172) target = $region16
        $region15: #{tranad_basic_forward.1} parent=11 // pred_region
          %s176 = ssub.s32 3840, 3840
          %177 = vsyncadd [#allocation3], %s176
          %s178 = sshll.u32 [#allocation2], 4
          %s179 = int_to_ptr.vmem [resolvable:$true] %s178
          %184 = dma.hbm_to_vmem [thread:$0]  %s0, 3840, %s179, [#allocation3], 128, 128, 8
        $region16: #{tranad_basic_forward.1} parent=11 // pred_fallthru
          _
        // Predicated region
        $region17: #{tranad_basic_forward.1} parent=11 // pred_check
          %p185 = pneg %p58
        $region18: #{tranad_basic_forward.1} parent=11 // pred_check_branch
          %187 = sbr.rel (%p185) target = $region20
        $region19: #{tranad_basic_forward.1} parent=11 // pred_region
          %s189 = ssub.s32 3840, 3840
          %190 = vsyncadd [#allocation6], %s189
          %s191 = sshll.u32 [#allocation5], 4
          %s192 = int_to_ptr.vmem [resolvable:$true] %s191
          %197 = dma.hbm_to_vmem [thread:$0]  %s1, 3840, %s192, [#allocation6], 128, 128, 8
        $region20: #{tranad_basic_forward.1} parent=11 // pred_fallthru
          _
        // Predicated region
        $region21: #{tranad_basic_forward.1} parent=11 // pred_check
          %p198 = pneg %p79
        $region22: #{tranad_basic_forward.1} parent=11 // pred_check_branch
          %200 = sbr.rel (%p198) target = $region24
        $region23: #{tranad_basic_forward.1} parent=11 // pred_region
          _
        $region24: #{tranad_basic_forward.1} parent=11 // pred_fallthru
          _
      $region12: #{tranad_basic_forward.1} parent=5 // pred_fallthru
        _
      %p201 = scmp.lt.s32.totalorder %s16, 2
      // Predicated region
      $region25: #{tranad_basic_forward.1} parent=5 // pred_check
        %p202 = pneg %p201
      $region26: #{tranad_basic_forward.1} parent=5 // pred_check_branch
        %204 = sbr.rel (%p202) target = $region28
      $region27: #{tranad_basic_forward.1} parent=5 // pred_region
        // Predicated region
        $region29: #{tranad_basic_forward.1} parent=27 // pred_check
          %p205 = pneg %p99
        $region30: #{tranad_basic_forward.1} parent=27 // pred_check_branch
          %207 = sbr.rel (%p205) target = $region32
        $region31: #{tranad_basic_forward.1} parent=27 // pred_region
          %s208 = sand.u32 %s16, 1
          %s209 = scalar_lea.sflag [#allocation3], %s208
          %s210 = sand.u32 %s89, 1
          %s211 = smul.addr %s210, 80
          %s212 = scalar_lea.vmem [#allocation7], %s211
          %s214 = ssub.s32 1280, 1280
          %215 = vsyncadd %s209, %s214
          %s216 = smul.addr %s16, 128
          %s217 = scalar_lea.hbm %s3, %s216
          %s218 = sshll.u32 %s212, 4
          %s219 = int_to_ptr.vmem [resolvable:$true] %s218
          %224 = dma.hbm_to_vmem [thread:$0]  %s217, 1280, %s219, %s209, 256, 128, 8
        $region32: #{tranad_basic_forward.1} parent=27 // pred_fallthru
          _
        // Predicated region
        $region33: #{tranad_basic_forward.1} parent=27 // pred_check
          %p225 = pneg %p125
        $region34: #{tranad_basic_forward.1} parent=27 // pred_check_branch
          %227 = sbr.rel (%p225) target = $region36
        $region35: #{tranad_basic_forward.1} parent=27 // pred_region
          %p228 = scmp.lt.s32.totalorder %s16, 1
          %s229 = scalar_select %p228, %s16, 1
          %s230 = smul.addr %s229, 8
          %s231 = scalar_lea.vmem %s4, %s230
        $region36: #{tranad_basic_forward.1} parent=27 // pred_fallthru
          _
      $region28: #{tranad_basic_forward.1} parent=5 // pred_fallthru
        _
      %p232 = scmp.le.s32.totalorder 1, %s16
      %p233 = scmp.lt.s32.totalorder %s16, 3
      %p234 = pnand %p232, %p233
      %p235 = pneg %p234
      // Predicated region
      $region37: #{tranad_basic_forward.1} parent=5 // pred_check
        _
      $region38: #{tranad_basic_forward.1} parent=5 // pred_check_branch
        %237 = sbr.rel (%p234) target = $region40
      $region39: #{tranad_basic_forward.1} parent=5 // pred_region
        %s238 = ssub.s32 %s16, 1
        // Predicated region
        $region41: #{tranad_basic_forward.1} parent=39 // pred_check
          %p239 = pneg %p37
        $region42: #{tranad_basic_forward.1} parent=39 // pred_check_branch
          %241 = sbr.rel (%p239) target = $region44
        $region43: #{tranad_basic_forward.1} parent=39 // pred_region
          %242 = dma.done [#allocation3], 3840
        $region44: #{tranad_basic_forward.1} parent=39 // pred_fallthru
          _
        // Predicated region
        $region45: #{tranad_basic_forward.1} parent=39 // pred_check
          %p243 = pneg %p58
        $region46: #{tranad_basic_forward.1} parent=39 // pred_check_branch
          %245 = sbr.rel (%p243) target = $region48
        $region47: #{tranad_basic_forward.1} parent=39 // pred_region
          %246 = dma.done [#allocation6], 3840
        $region48: #{tranad_basic_forward.1} parent=39 // pred_fallthru
          _
        %s247 = sand.u32 %s21, 1
        %s248 = scalar_lea.sflag [#allocation3], %s247
        %s249 = sand.u32 %s92, 1
        %s250 = smul.addr %s249, 80
        %s251 = scalar_lea.vmem [#allocation7], %s250
        // Predicated region
        $region49: #{tranad_basic_forward.1} parent=39 // pred_check
          %p252 = pneg %p105
        $region50: #{tranad_basic_forward.1} parent=39 // pred_check_branch
          %254 = sbr.rel (%p252) target = $region52
        $region51: #{tranad_basic_forward.1} parent=39 // pred_region
          %255 = dma.done %s248, 1280
        $region52: #{tranad_basic_forward.1} parent=39 // pred_fallthru
          _
        %p256 = pneg %p37
        %p257 = pneg %p34
        %p258 = pneg %p58
        %p259 = pneg %p55
        %p260 = pneg %p79
        %p261 = pneg %p76
        %s262 = sand.u32 %s21, 1
        %s263 = scalar_lea.sflag [#allocation3], %s262
        %s264 = sand.u32 %s92, 1
        %s265 = smul.addr %s264, 80
        %s266 = scalar_lea.vmem [#allocation7], %s265
        %p267 = pneg %p105
        %p268 = pneg %p102
        %p269 = scmp.lt.s32.totalorder %s21, 1
        %s270 = scalar_select %p269, %s21, 1
        %s271 = smul.addr %s270, 8
        %s272 = scalar_lea.vmem %s4, %s271
        %p273 = pneg %p131
        %p274 = pneg %p128
        %p275 = pneg %p157
        %p276 = pneg %p154
        %s277 = sand.u32 %s144, 1
        %s278 = scalar_lea.sflag [#allocation4], %s277
        %s279 = sand.u32 %s144, 1
        %s280 = smul.addr %s279, 8
        %s281 = scalar_lea.vmem [#allocation8], %s280
        %p282 = scmp.lt.s32.totalorder %s21, 1
        %s283 = scalar_select %p282, %s21, 1
        %s284 = smul.addr %s283, 8
        %s285 = scalar_lea.vmem %s4, %s284
        %v286 = vld [vmem:[%s251] sm:$0xff]
        %v287 = vmul.f32 %v286, 2.828427
        %v288 = vld [vmem:[%s2] sm:$0xff]
        %290 = vset.pattern.permute.xlu0 0
        %291 = vperm.xlu0 %290, %v288
        %v292 = vpop.permute.xlu0 %291
        %v294 = vadd.f32 %v287, %v292
        %s295 = scalar_lea.vmem %s251, 8 [#allocation7]
        %v296 = vld [vmem:[%s295] sm:$0xff]
        %v297 = vmul.f32 %v296, 2.828427
        %s298 = scalar_lea.vmem %s2, 8
        %v299 = vld [vmem:[%s298] sm:$0xff]
        %301 = vset.pattern.permute.xlu0 0
        %302 = vperm.xlu0 %301, %v299
        %v303 = vpop.permute.xlu0 %302
        %v305 = vadd.f32 %v297, %v303
        %s306 = scalar_lea.vmem %s251, 16 [#allocation7]
        %v307 = vld [vmem:[%s306] sm:$0xff]
        %v308 = vmul.f32 %v307, 2.828427
        %s309 = scalar_lea.vmem %s2, 16
        %v310 = vld [vmem:[%s309] sm:$0xff]
        %312 = vset.pattern.permute.xlu0 0
        %313 = vperm.xlu0 %312, %v310
        %v314 = vpop.permute.xlu0 %313
        %v316 = vadd.f32 %v308, %v314
        %s317 = scalar_lea.vmem %s251, 24 [#allocation7]
        %v318 = vld [vmem:[%s317] sm:$0xff]
        %v319 = vmul.f32 %v318, 2.828427
        %s320 = scalar_lea.vmem %s2, 24
        %v321 = vld [vmem:[%s320] sm:$0xff]
        %323 = vset.pattern.permute.xlu0 0
        %324 = vperm.xlu0 %323, %v321
        %v325 = vpop.permute.xlu0 %324
        %v327 = vadd.f32 %v319, %v325
        %s328 = scalar_lea.vmem %s251, 32 [#allocation7]
        %v329 = vld [vmem:[%s328] sm:$0xff]
        %v330 = vmul.f32 %v329, 2.828427
        %s331 = scalar_lea.vmem %s2, 32
        %v332 = vld [vmem:[%s331] sm:$0xff]
        %334 = vset.pattern.permute.xlu0 0
        %335 = vperm.xlu0 %334, %v332
        %v336 = vpop.permute.xlu0 %335
        %v338 = vadd.f32 %v330, %v336
        %s339 = scalar_lea.vmem %s251, 40 [#allocation7]
        %v340 = vld [vmem:[%s339] sm:$0xff]
        %v341 = vmul.f32 %v340, 2.828427
        %s342 = scalar_lea.vmem %s2, 40
        %v343 = vld [vmem:[%s342] sm:$0xff]
        %345 = vset.pattern.permute.xlu0 0
        %346 = vperm.xlu0 %345, %v343
        %v347 = vpop.permute.xlu0 %346
        %v349 = vadd.f32 %v341, %v347
        %s350 = scalar_lea.vmem %s251, 48 [#allocation7]
        %v351 = vld [vmem:[%s350] sm:$0xff]
        %v352 = vmul.f32 %v351, 2.828427
        %s353 = scalar_lea.vmem %s2, 48
        %v354 = vld [vmem:[%s353] sm:$0xff]
        %356 = vset.pattern.permute.xlu0 0
        %357 = vperm.xlu0 %356, %v354
        %v358 = vpop.permute.xlu0 %357
        %v360 = vadd.f32 %v352, %v358
        %s361 = scalar_lea.vmem %s251, 56 [#allocation7]
        %v362 = vld [vmem:[%s361] sm:$0xff]
        %v363 = vmul.f32 %v362, 2.828427
        %s364 = scalar_lea.vmem %s2, 56
        %v365 = vld [vmem:[%s364] sm:$0xff]
        %367 = vset.pattern.permute.xlu0 0
        %368 = vperm.xlu0 %367, %v365
        %v369 = vpop.permute.xlu0 %368
        %v371 = vadd.f32 %v363, %v369
        %s372 = scalar_lea.vmem %s251, 64 [#allocation7]
        %v373 = vld [vmem:[%s372] sm:$0xff]
        %v374 = vmul.f32 %v373, 2.828427
        %s375 = scalar_lea.vmem %s2, 64
        %v376 = vld [vmem:[%s375] sm:$0xff]
        %378 = vset.pattern.permute.xlu0 0
        %379 = vperm.xlu0 %378, %v376
        %v380 = vpop.permute.xlu0 %379
        %v382 = vadd.f32 %v374, %v380
        %s383 = scalar_lea.vmem %s251, 72 [#allocation7]
        %v384 = vld [vmem:[%s383] sm:$0xff]
        %v385 = vmul.f32 %v384, 2.828427
        %s386 = scalar_lea.vmem %s2, 72
        %v387 = vld [vmem:[%s386] sm:$0xff]
        %389 = vset.pattern.permute.xlu0 0
        %390 = vperm.xlu0 %389, %v387
        %v391 = vpop.permute.xlu0 %390
        %v393 = vadd.f32 %v385, %v391
        %v394 = vld [vmem:[#allocation2] sm:$0xff]
        %v395 = vld [vmem:[#allocation2 + $0x8] sm:$0xff]
        %v396 = vld [vmem:[#allocation2 + $0x10] sm:$0xff]
        %v397 = vld [vmem:[#allocation5] sm:$0xff]
        %v398 = vld [vmem:[#allocation5 + $0x8] sm:$0xff]
        %v399 = vld [vmem:[#allocation5 + $0x10] sm:$0xff]
        %401 = vset.pattern.permute.xlu0 0
        %402 = vperm.xlu0 %401, %v397
        %v403 = vpop.permute.xlu0 %402
        %406 = vset.pattern.permute.xlu0 0
        %407 = vperm.xlu0 %406, %v398
        %v408 = vpop.permute.xlu0 %407
        %411 = vset.pattern.permute.xlu0 0
        %412 = vperm.xlu0 %411, %v399
        %v413 = vpop.permute.xlu0 %412
        %vm415 = vcmask 64512
        %v417 = vsel %vm415, %v394, 0
        %v420 = vsel %vm415, %v395, 0
        %v423 = vsel %vm415, %v396, 0
        %425 = vmatprep.subr.mxu0 0.0
        %426 = vmatpush1.msra.mxu0 0.0
        %427 = vmatprep.subr.mxu0 0.0
        %428 = vmatpush1.msra.mxu0 0.0
        %429 = vmatprep.subr.mxu0 0.0
        %430 = vmatpush1.msra.mxu0 0.0
        %431 = vmatprep.subr.mxu0 0.0
        %432 = vmatpush1.msra.mxu0 0.0
        %433 = vmatprep.subr.mxu0 0.0
        %434 = vmatpush1.msra.mxu0 0.0
        %435 = vmatprep.subr.mxu0 0.0
        %436 = vmatpush1.msra.mxu0 0.0
        %437 = vmatprep.subr.mxu0 0.0
        %438 = vmatpush1.msra.mxu0 0.0
        %439 = vmatprep.subr.mxu0 0.0
        %440 = vmatpush1.msra.mxu0 0.0
        %441 = vmatprep.subr.mxu0 0.0
        %442 = vmatpush1.msra.mxu0 0.0
        %443 = vmatprep.subr.mxu0 0.0
        %444 = vmatpush1.msra.mxu0 0.0
        %445 = vmatprep.subr.mxu0 0.0
        %446 = vmatpush1.msra.mxu0 0.0
        %447 = vmatprep.subr.mxu0 0.0
        %448 = vmatpush1.msra.mxu0 0.0
        %449 = vmatprep.subr.mxu0 0.0
        %450 = vmatpush1.msra.mxu0 0.0
        %451 = vmatprep.subr.mxu0 0.0
        %452 = vmatpush1.msra.mxu0 0.0
        %453 = vmatprep.subr.mxu0 0.0
        %454 = vmatpush1.msra.mxu0 0.0
        %455 = vmatprep.subr.mxu0 %v305
        %456 = vmatpush1.msra.mxu0 %v294
        %457 = vmatprep.subr.mxu0 0.0
        %458 = vmatpush2.msra.mxu0 0.0
        %459 = vmatprep.subr.mxu0 0.0
        %460 = vmatpush2.msra.mxu0 0.0
        %461 = vmatprep.subr.mxu0 0.0
        %462 = vmatpush2.msra.mxu0 0.0
        %463 = vmatprep.subr.mxu0 0.0
        %464 = vmatpush2.msra.mxu0 0.0
        %465 = vmatprep.subr.mxu0 0.0
        %466 = vmatpush2.msra.mxu0 0.0
        %467 = vmatprep.subr.mxu0 0.0
        %468 = vmatpush2.msra.mxu0 0.0
        %469 = vmatprep.subr.mxu0 0.0
        %470 = vmatpush2.msra.mxu0 0.0
        %471 = vmatprep.subr.mxu0 0.0
        %472 = vmatpush2.msra.mxu0 0.0
        %473 = vmatprep.subr.mxu0 0.0
        %474 = vmatpush2.msra.mxu0 0.0
        %475 = vmatprep.subr.mxu0 0.0
        %476 = vmatpush2.msra.mxu0 0.0
        %477 = vmatprep.subr.mxu0 0.0
        %478 = vmatpush2.msra.mxu0 0.0
        %479 = vmatprep.subr.mxu0 0.0
        %480 = vmatpush2.msra.mxu0 0.0
        %481 = vmatprep.subr.mxu0 0.0
        %482 = vmatpush2.msra.mxu0 0.0
        %483 = vmatprep.subr.mxu0 0.0
        %484 = vmatpush2.msra.mxu0 0.0
        %485 = vmatprep.subr.mxu0 0.0
        %486 = vmatpush2.msra.mxu0 0.0
        %487 = vmatprep.subr.mxu0 0.0
        %488 = vmatpush2.msra.mxu0 0.0
        %489 = vmatprep.mubr.f32.mxu0 0.0
        %490 = vmatmul.mubr.f32.gmra.mxu0 %v417
        %v491 = vpop.f32.mrf.mxu0
        %v492 = vadd.f32 %v403, %v491
        %v493 = vpop.f32.mrf.mxu0
        %v494 = vadd.f32 %v403, %v493
        %495 = vmatprep.mubr.f32.mxu0 0.0
        %496 = vmatmul.mubr.f32.gmra.mxu0 %v420
        %v497 = vpop.f32.mrf.mxu0
        %v498 = vadd.f32 %v408, %v497
        %v499 = vpop.f32.mrf.mxu0
        %v500 = vadd.f32 %v408, %v499
        %501 = vmatprep.mubr.f32.mxu0 0.0
        %502 = vmatmul.mubr.f32.gmra.mxu0 %v423
        %v503 = vpop.f32.mrf.mxu0
        %v504 = vadd.f32 %v413, %v503
        %v505 = vpop.f32.mrf.mxu0
        %v506 = vadd.f32 %v413, %v505
        %507 = vdwg.mxu0
        %508 = vmatprep.subr.mxu0 0.0
        %509 = vmatpush1.msra.mxu0 0.0
        %510 = vmatprep.subr.mxu0 0.0
        %511 = vmatpush1.msra.mxu0 0.0
        %512 = vmatprep.subr.mxu0 0.0
        %513 = vmatpush1.msra.mxu0 0.0
        %514 = vmatprep.subr.mxu0 0.0
        %515 = vmatpush1.msra.mxu0 0.0
        %516 = vmatprep.subr.mxu0 0.0
        %517 = vmatpush1.msra.mxu0 0.0
        %518 = vmatprep.subr.mxu0 0.0
        %519 = vmatpush1.msra.mxu0 0.0
        %520 = vmatprep.subr.mxu0 0.0
        %521 = vmatpush1.msra.mxu0 0.0
        %522 = vmatprep.subr.mxu0 0.0
        %523 = vmatpush1.msra.mxu0 0.0
        %524 = vmatprep.subr.mxu0 0.0
        %525 = vmatpush1.msra.mxu0 0.0
        %526 = vmatprep.subr.mxu0 0.0
        %527 = vmatpush1.msra.mxu0 0.0
        %528 = vmatprep.subr.mxu0 0.0
        %529 = vmatpush1.msra.mxu0 0.0
        %530 = vmatprep.subr.mxu0 0.0
        %531 = vmatpush1.msra.mxu0 0.0
        %532 = vmatprep.subr.mxu0 0.0
        %533 = vmatpush1.msra.mxu0 0.0
        %534 = vmatprep.subr.mxu0 0.0
        %535 = vmatpush1.msra.mxu0 0.0
        %536 = vmatprep.subr.mxu0 0.0
        %537 = vmatpush1.msra.mxu0 0.0
        %538 = vmatprep.subr.mxu0 %v327
        %539 = vmatpush1.msra.mxu0 %v316
        %540 = vmatprep.subr.mxu0 0.0
        %541 = vmatpush2.msra.mxu0 0.0
        %542 = vmatprep.subr.mxu0 0.0
        %543 = vmatpush2.msra.mxu0 0.0
        %544 = vmatprep.subr.mxu0 0.0
        %545 = vmatpush2.msra.mxu0 0.0
        %546 = vmatprep.subr.mxu0 0.0
        %547 = vmatpush2.msra.mxu0 0.0
        %548 = vmatprep.subr.mxu0 0.0
        %549 = vmatpush2.msra.mxu0 0.0
        %550 = vmatprep.subr.mxu0 0.0
        %551 = vmatpush2.msra.mxu0 0.0
        %552 = vmatprep.subr.mxu0 0.0
        %553 = vmatpush2.msra.mxu0 0.0
        %554 = vmatprep.subr.mxu0 0.0
        %555 = vmatpush2.msra.mxu0 0.0
        %556 = vmatprep.subr.mxu0 0.0
        %557 = vmatpush2.msra.mxu0 0.0
        %558 = vmatprep.subr.mxu0 0.0
        %559 = vmatpush2.msra.mxu0 0.0
        %560 = vmatprep.subr.mxu0 0.0
        %561 = vmatpush2.msra.mxu0 0.0
        %562 = vmatprep.subr.mxu0 0.0
        %563 = vmatpush2.msra.mxu0 0.0
        %564 = vmatprep.subr.mxu0 0.0
        %565 = vmatpush2.msra.mxu0 0.0
        %566 = vmatprep.subr.mxu0 0.0
        %567 = vmatpush2.msra.mxu0 0.0
        %568 = vmatprep.subr.mxu0 0.0
        %569 = vmatpush2.msra.mxu0 0.0
        %570 = vmatprep.subr.mxu0 0.0
        %571 = vmatpush2.msra.mxu0 0.0
        %572 = vmatprep.mubr.f32.mxu0 0.0
        %573 = vmatmul.mubr.f32.gmra.mxu0 %v417
        %v574 = vpop.f32.mrf.mxu0
        %v575 = vadd.f32 %v403, %v574
        %v576 = vpop.f32.mrf.mxu0
        %v577 = vadd.f32 %v403, %v576
        %578 = vmatprep.mubr.f32.mxu0 0.0
        %579 = vmatmul.mubr.f32.gmra.mxu0 %v420
        %v580 = vpop.f32.mrf.mxu0
        %v581 = vadd.f32 %v408, %v580
        %v582 = vpop.f32.mrf.mxu0
        %v583 = vadd.f32 %v408, %v582
        %584 = vmatprep.mubr.f32.mxu0 0.0
        %585 = vmatmul.mubr.f32.gmra.mxu0 %v423
        %v586 = vpop.f32.mrf.mxu0
        %v587 = vadd.f32 %v413, %v586
        %v588 = vpop.f32.mrf.mxu0
        %v589 = vadd.f32 %v413, %v588
        %590 = vdwg.mxu0
        %591 = vmatprep.subr.mxu0 0.0
        %592 = vmatpush1.msra.mxu0 0.0
        %593 = vmatprep.subr.mxu0 0.0
        %594 = vmatpush1.msra.mxu0 0.0
        %595 = vmatprep.subr.mxu0 0.0
        %596 = vmatpush1.msra.mxu0 0.0
        %597 = vmatprep.subr.mxu0 0.0
        %598 = vmatpush1.msra.mxu0 0.0
        %599 = vmatprep.subr.mxu0 0.0
        %600 = vmatpush1.msra.mxu0 0.0
        %601 = vmatprep.subr.mxu0 0.0
        %602 = vmatpush1.msra.mxu0 0.0
        %603 = vmatprep.subr.mxu0 0.0
        %604 = vmatpush1.msra.mxu0 0.0
        %605 = vmatprep.subr.mxu0 0.0
        %606 = vmatpush1.msra.mxu0 0.0
        %607 = vmatprep.subr.mxu0 0.0
        %608 = vmatpush1.msra.mxu0 0.0
        %609 = vmatprep.subr.mxu0 0.0
        %610 = vmatpush1.msra.mxu0 0.0
        %611 = vmatprep.subr.mxu0 0.0
        %612 = vmatpush1.msra.mxu0 0.0
        %613 = vmatprep.subr.mxu0 0.0
        %614 = vmatpush1.msra.mxu0 0.0
        %615 = vmatprep.subr.mxu0 0.0
        %616 = vmatpush1.msra.mxu0 0.0
        %617 = vmatprep.subr.mxu0 0.0
        %618 = vmatpush1.msra.mxu0 0.0
        %619 = vmatprep.subr.mxu0 0.0
        %620 = vmatpush1.msra.mxu0 0.0
        %621 = vmatprep.subr.mxu0 %v349
        %622 = vmatpush1.msra.mxu0 %v338
        %623 = vmatprep.subr.mxu0 0.0
        %624 = vmatpush2.msra.mxu0 0.0
        %625 = vmatprep.subr.mxu0 0.0
        %626 = vmatpush2.msra.mxu0 0.0
        %627 = vmatprep.subr.mxu0 0.0
        %628 = vmatpush2.msra.mxu0 0.0
        %629 = vmatprep.subr.mxu0 0.0
        %630 = vmatpush2.msra.mxu0 0.0
        %631 = vmatprep.subr.mxu0 0.0
        %632 = vmatpush2.msra.mxu0 0.0
        %633 = vmatprep.subr.mxu0 0.0
        %634 = vmatpush2.msra.mxu0 0.0
        %635 = vmatprep.subr.mxu0 0.0
        %636 = vmatpush2.msra.mxu0 0.0
        %637 = vmatprep.subr.mxu0 0.0
        %638 = vmatpush2.msra.mxu0 0.0
        %639 = vmatprep.subr.mxu0 0.0
        %640 = vmatpush2.msra.mxu0 0.0
        %641 = vmatprep.subr.mxu0 0.0
        %642 = vmatpush2.msra.mxu0 0.0
        %643 = vmatprep.subr.mxu0 0.0
        %644 = vmatpush2.msra.mxu0 0.0
        %645 = vmatprep.subr.mxu0 0.0
        %646 = vmatpush2.msra.mxu0 0.0
        %647 = vmatprep.subr.mxu0 0.0
        %648 = vmatpush2.msra.mxu0 0.0
        %649 = vmatprep.subr.mxu0 0.0
        %650 = vmatpush2.msra.mxu0 0.0
        %651 = vmatprep.subr.mxu0 0.0
        %652 = vmatpush2.msra.mxu0 0.0
        %653 = vmatprep.subr.mxu0 0.0
        %654 = vmatpush2.msra.mxu0 0.0
        %655 = vmatprep.mubr.f32.mxu0 0.0
        %656 = vmatmul.mubr.f32.gmra.mxu0 %v417
        %v657 = vpop.f32.mrf.mxu0
        %v658 = vadd.f32 %v403, %v657
        %v659 = vpop.f32.mrf.mxu0
        %v660 = vadd.f32 %v403, %v659
        %661 = vmatprep.mubr.f32.mxu0 0.0
        %662 = vmatmul.mubr.f32.gmra.mxu0 %v420
        %v663 = vpop.f32.mrf.mxu0
        %v664 = vadd.f32 %v408, %v663
        %v665 = vpop.f32.mrf.mxu0
        %v666 = vadd.f32 %v408, %v665
        %667 = vmatprep.mubr.f32.mxu0 0.0
        %668 = vmatmul.mubr.f32.gmra.mxu0 %v423
        %v669 = vpop.f32.mrf.mxu0
        %v670 = vadd.f32 %v413, %v669
        %v671 = vpop.f32.mrf.mxu0
        %v672 = vadd.f32 %v413, %v671
        %673 = vdwg.mxu0
        %674 = vmatprep.subr.mxu0 0.0
        %675 = vmatpush1.msra.mxu0 0.0
        %676 = vmatprep.subr.mxu0 0.0
        %677 = vmatpush1.msra.mxu0 0.0
        %678 = vmatprep.subr.mxu0 0.0
        %679 = vmatpush1.msra.mxu0 0.0
        %680 = vmatprep.subr.mxu0 0.0
        %681 = vmatpush1.msra.mxu0 0.0
        %682 = vmatprep.subr.mxu0 0.0
        %683 = vmatpush1.msra.mxu0 0.0
        %684 = vmatprep.subr.mxu0 0.0
        %685 = vmatpush1.msra.mxu0 0.0
        %686 = vmatprep.subr.mxu0 0.0
        %687 = vmatpush1.msra.mxu0 0.0
        %688 = vmatprep.subr.mxu0 0.0
        %689 = vmatpush1.msra.mxu0 0.0
        %690 = vmatprep.subr.mxu0 0.0
        %691 = vmatpush1.msra.mxu0 0.0
        %692 = vmatprep.subr.mxu0 0.0
        %693 = vmatpush1.msra.mxu0 0.0
        %694 = vmatprep.subr.mxu0 0.0
        %695 = vmatpush1.msra.mxu0 0.0
        %696 = vmatprep.subr.mxu0 0.0
        %697 = vmatpush1.msra.mxu0 0.0
        %698 = vmatprep.subr.mxu0 0.0
        %699 = vmatpush1.msra.mxu0 0.0
        %700 = vmatprep.subr.mxu0 0.0
        %701 = vmatpush1.msra.mxu0 0.0
        %702 = vmatprep.subr.mxu0 0.0
        %703 = vmatpush1.msra.mxu0 0.0
        %704 = vmatprep.subr.mxu0 %v371
        %705 = vmatpush1.msra.mxu0 %v360
        %706 = vmatprep.subr.mxu0 0.0
        %707 = vmatpush2.msra.mxu0 0.0
        %708 = vmatprep.subr.mxu0 0.0
        %709 = vmatpush2.msra.mxu0 0.0
        %710 = vmatprep.subr.mxu0 0.0
        %711 = vmatpush2.msra.mxu0 0.0
        %712 = vmatprep.subr.mxu0 0.0
        %713 = vmatpush2.msra.mxu0 0.0
        %714 = vmatprep.subr.mxu0 0.0
        %715 = vmatpush2.msra.mxu0 0.0
        %716 = vmatprep.subr.mxu0 0.0
        %717 = vmatpush2.msra.mxu0 0.0
        %718 = vmatprep.subr.mxu0 0.0
        %719 = vmatpush2.msra.mxu0 0.0
        %720 = vmatprep.subr.mxu0 0.0
        %721 = vmatpush2.msra.mxu0 0.0
        %722 = vmatprep.subr.mxu0 0.0
        %723 = vmatpush2.msra.mxu0 0.0
        %724 = vmatprep.subr.mxu0 0.0
        %725 = vmatpush2.msra.mxu0 0.0
        %726 = vmatprep.subr.mxu0 0.0
        %727 = vmatpush2.msra.mxu0 0.0
        %728 = vmatprep.subr.mxu0 0.0
        %729 = vmatpush2.msra.mxu0 0.0
        %730 = vmatprep.subr.mxu0 0.0
        %731 = vmatpush2.msra.mxu0 0.0
        %732 = vmatprep.subr.mxu0 0.0
        %733 = vmatpush2.msra.mxu0 0.0
        %734 = vmatprep.subr.mxu0 0.0
        %735 = vmatpush2.msra.mxu0 0.0
        %736 = vmatprep.subr.mxu0 0.0
        %737 = vmatpush2.msra.mxu0 0.0
        %738 = vmatprep.mubr.f32.mxu0 0.0
        %739 = vmatmul.mubr.f32.gmra.mxu0 %v417
        %v740 = vpop.f32.mrf.mxu0
        %v741 = vadd.f32 %v403, %v740
        %v742 = vpop.f32.mrf.mxu0
        %v743 = vadd.f32 %v403, %v742
        %744 = vmatprep.mubr.f32.mxu0 0.0
        %745 = vmatmul.mubr.f32.gmra.mxu0 %v420
        %v746 = vpop.f32.mrf.mxu0
        %v747 = vadd.f32 %v408, %v746
        %v748 = vpop.f32.mrf.mxu0
        %v749 = vadd.f32 %v408, %v748
        %750 = vmatprep.mubr.f32.mxu0 0.0
        %751 = vmatmul.mubr.f32.gmra.mxu0 %v423
        %v752 = vpop.f32.mrf.mxu0
        %v753 = vadd.f32 %v413, %v752
        %v754 = vpop.f32.mrf.mxu0
        %v755 = vadd.f32 %v413, %v754
        %756 = vdwg.mxu0
        %757 = vmatprep.subr.mxu0 0.0
        %758 = vmatpush1.msra.mxu0 0.0
        %759 = vmatprep.subr.mxu0 0.0
        %760 = vmatpush1.msra.mxu0 0.0
        %761 = vmatprep.subr.mxu0 0.0
        %762 = vmatpush1.msra.mxu0 0.0
        %763 = vmatprep.subr.mxu0 0.0
        %764 = vmatpush1.msra.mxu0 0.0
        %765 = vmatprep.subr.mxu0 0.0
        %766 = vmatpush1.msra.mxu0 0.0
        %767 = vmatprep.subr.mxu0 0.0
        %768 = vmatpush1.msra.mxu0 0.0
        %769 = vmatprep.subr.mxu0 0.0
        %770 = vmatpush1.msra.mxu0 0.0
        %771 = vmatprep.subr.mxu0 0.0
        %772 = vmatpush1.msra.mxu0 0.0
        %773 = vmatprep.subr.mxu0 0.0
        %774 = vmatpush1.msra.mxu0 0.0
        %775 = vmatprep.subr.mxu0 0.0
        %776 = vmatpush1.msra.mxu0 0.0
        %777 = vmatprep.subr.mxu0 0.0
        %778 = vmatpush1.msra.mxu0 0.0
        %779 = vmatprep.subr.mxu0 0.0
        %780 = vmatpush1.msra.mxu0 0.0
        %781 = vmatprep.subr.mxu0 0.0
        %782 = vmatpush1.msra.mxu0 0.0
        %783 = vmatprep.subr.mxu0 0.0
        %784 = vmatpush1.msra.mxu0 0.0
        %785 = vmatprep.subr.mxu0 0.0
        %786 = vmatpush1.msra.mxu0 0.0
        %787 = vmatprep.subr.mxu0 %v393
        %788 = vmatpush1.msra.mxu0 %v382
        %789 = vmatprep.subr.mxu0 0.0
        %790 = vmatpush2.msra.mxu0 0.0
        %791 = vmatprep.subr.mxu0 0.0
        %792 = vmatpush2.msra.mxu0 0.0
        %793 = vmatprep.subr.mxu0 0.0
        %794 = vmatpush2.msra.mxu0 0.0
        %795 = vmatprep.subr.mxu0 0.0
        %796 = vmatpush2.msra.mxu0 0.0
        %797 = vmatprep.subr.mxu0 0.0
        %798 = vmatpush2.msra.mxu0 0.0
        %799 = vmatprep.subr.mxu0 0.0
        %800 = vmatpush2.msra.mxu0 0.0
        %801 = vmatprep.subr.mxu0 0.0
        %802 = vmatpush2.msra.mxu0 0.0
        %803 = vmatprep.subr.mxu0 0.0
        %804 = vmatpush2.msra.mxu0 0.0
        %805 = vmatprep.subr.mxu0 0.0
        %806 = vmatpush2.msra.mxu0 0.0
        %807 = vmatprep.subr.mxu0 0.0
        %808 = vmatpush2.msra.mxu0 0.0
        %809 = vmatprep.subr.mxu0 0.0
        %810 = vmatpush2.msra.mxu0 0.0
        %811 = vmatprep.subr.mxu0 0.0
        %812 = vmatpush2.msra.mxu0 0.0
        %813 = vmatprep.subr.mxu0 0.0
        %814 = vmatpush2.msra.mxu0 0.0
        %815 = vmatprep.subr.mxu0 0.0
        %816 = vmatpush2.msra.mxu0 0.0
        %817 = vmatprep.subr.mxu0 0.0
        %818 = vmatpush2.msra.mxu0 0.0
        %819 = vmatprep.subr.mxu0 0.0
        %820 = vmatpush2.msra.mxu0 0.0
        %821 = vmatprep.mubr.f32.mxu0 0.0
        %822 = vmatmul.mubr.f32.gmra.mxu0 %v417
        %v823 = vpop.f32.mrf.mxu0
        %v824 = vadd.f32 %v403, %v823
        %v825 = vpop.f32.mrf.mxu0
        %v826 = vadd.f32 %v403, %v825
        %827 = vmatprep.mubr.f32.mxu0 0.0
        %828 = vmatmul.mubr.f32.gmra.mxu0 %v420
        %v829 = vpop.f32.mrf.mxu0
        %v830 = vadd.f32 %v408, %v829
        %v831 = vpop.f32.mrf.mxu0
        %v832 = vadd.f32 %v408, %v831
        %833 = vmatprep.mubr.f32.mxu0 0.0
        %834 = vmatmul.mubr.f32.gmra.mxu0 %v423
        %v835 = vpop.f32.mrf.mxu0
        %v836 = vadd.f32 %v413, %v835
        %v837 = vpop.f32.mrf.mxu0
        %v838 = vadd.f32 %v413, %v837
        %839 = vdwg.mxu0
        %v840 = vmul.f32 %v492, %v498
        %v841 = vmul.f32 %v492, %v500
        %v842 = vmul.f32 %v492, %v581
        %v843 = vmul.f32 %v492, %v583
        %v844 = vmul.f32 %v492, %v664
        %v845 = vmul.f32 %v492, %v666
        %v846 = vmul.f32 %v492, %v747
        %v847 = vmul.f32 %v492, %v749
        %v848 = vmul.f32 %v492, %v830
        %v849 = vmul.f32 %v492, %v832
        %v850 = vmax.f32 %v840, %v841
        %v851 = vmax.f32 %v850, %v842
        %v852 = vmax.f32 %v851, %v843
        %v853 = vmax.f32 %v852, %v844
        %v854 = vmax.f32 %v853, %v845
        %v855 = vmax.f32 %v854, %v846
        %v856 = vmax.f32 %v855, %v847
        %v857 = vmax.f32 %v856, %v848
        %v858 = vmax.f32 %v857, %v849
        %v859 = vsub.f32 %v840, %v858
        %v860 = vmul.f32 %v859, 1.442695
        %v861 = vpow.pop %v860
        %v862 = vsub.f32 %v841, %v858
        %v863 = vmul.f32 %v862, 1.442695
        %v864 = vpow.pop %v863
        %v865 = vsub.f32 %v842, %v858
        %v866 = vmul.f32 %v865, 1.442695
        %v867 = vpow.pop %v866
        %v868 = vsub.f32 %v843, %v858
        %v869 = vmul.f32 %v868, 1.442695
        %v870 = vpow.pop %v869
        %v871 = vsub.f32 %v844, %v858
        %v872 = vmul.f32 %v871, 1.442695
        %v873 = vpow.pop %v872
        %v874 = vsub.f32 %v845, %v858
        %v875 = vmul.f32 %v874, 1.442695
        %v876 = vpow.pop %v875
        %v877 = vsub.f32 %v846, %v858
        %v878 = vmul.f32 %v877, 1.442695
        %v879 = vpow.pop %v878
        %v880 = vsub.f32 %v847, %v858
        %v881 = vmul.f32 %v880, 1.442695
        %v882 = vpow.pop %v881
        %v883 = vsub.f32 %v848, %v858
        %v884 = vmul.f32 %v883, 1.442695
        %v885 = vpow.pop %v884
        %v886 = vsub.f32 %v849, %v858
        %v887 = vmul.f32 %v886, 1.442695
        %v888 = vpow.pop %v887
        %v889 = vadd.f32 %v861, %v864
        %v890 = vadd.f32 %v889, %v867
        %v891 = vadd.f32 %v890, %v870
        %v892 = vadd.f32 %v891, %v873
        %v893 = vadd.f32 %v892, %v876
        %v894 = vadd.f32 %v893, %v879
        %v895 = vadd.f32 %v894, %v882
        %v896 = vadd.f32 %v895, %v885
        %v897 = vadd.f32 %v896, %v888
        %v898 = vmul.f32 %v861, %v504
        %v899 = vmul.f32 %v864, %v506
        %v900 = vadd.f32 %v898, %v899
        %v901 = vmul.f32 %v867, %v587
        %v902 = vadd.f32 %v900, %v901
        %v903 = vmul.f32 %v870, %v589
        %v904 = vadd.f32 %v902, %v903
        %v905 = vmul.f32 %v873, %v670
        %v906 = vadd.f32 %v904, %v905
        %v907 = vmul.f32 %v876, %v672
        %v908 = vadd.f32 %v906, %v907
        %v909 = vmul.f32 %v879, %v753
        %v910 = vadd.f32 %v908, %v909
        %v911 = vmul.f32 %v882, %v755
        %v912 = vadd.f32 %v910, %v911
        %v913 = vmul.f32 %v885, %v836
        %v914 = vadd.f32 %v912, %v913
        %v915 = vmul.f32 %v888, %v838
        %v916 = vadd.f32 %v914, %v915
        %v917 = vrcp.pop %v897
        %v918 = vmul.f32 %v916, %v917
        %v919 = vmul.f32 %v494, %v498
        %v920 = vmul.f32 %v494, %v500
        %v921 = vmul.f32 %v494, %v581
        %v922 = vmul.f32 %v494, %v583
        %v923 = vmul.f32 %v494, %v664
        %v924 = vmul.f32 %v494, %v666
        %v925 = vmul.f32 %v494, %v747
        %v926 = vmul.f32 %v494, %v749
        %v927 = vmul.f32 %v494, %v830
        %v928 = vmul.f32 %v494, %v832
        %v929 = vmax.f32 %v919, %v920
        %v930 = vmax.f32 %v929, %v921
        %v931 = vmax.f32 %v930, %v922
        %v932 = vmax.f32 %v931, %v923
        %v933 = vmax.f32 %v932, %v924
        %v934 = vmax.f32 %v933, %v925
        %v935 = vmax.f32 %v934, %v926
        %v936 = vmax.f32 %v935, %v927
        %v937 = vmax.f32 %v936, %v928
        %v938 = vsub.f32 %v919, %v937
        %v939 = vmul.f32 %v938, 1.442695
        %v940 = vpow.pop %v939
        %v941 = vsub.f32 %v920, %v937
        %v942 = vmul.f32 %v941, 1.442695
        %v943 = vpow.pop %v942
        %v944 = vsub.f32 %v921, %v937
        %v945 = vmul.f32 %v944, 1.442695
        %v946 = vpow.pop %v945
        %v947 = vsub.f32 %v922, %v937
        %v948 = vmul.f32 %v947, 1.442695
        %v949 = vpow.pop %v948
        %v950 = vsub.f32 %v923, %v937
        %v951 = vmul.f32 %v950, 1.442695
        %v952 = vpow.pop %v951
        %v953 = vsub.f32 %v924, %v937
        %v954 = vmul.f32 %v953, 1.442695
        %v955 = vpow.pop %v954
        %v956 = vsub.f32 %v925, %v937
        %v957 = vmul.f32 %v956, 1.442695
        %v958 = vpow.pop %v957
        %v959 = vsub.f32 %v926, %v937
        %v960 = vmul.f32 %v959, 1.442695
        %v961 = vpow.pop %v960
        %v962 = vsub.f32 %v927, %v937
        %v963 = vmul.f32 %v962, 1.442695
        %v964 = vpow.pop %v963
        %v965 = vsub.f32 %v928, %v937
        %v966 = vmul.f32 %v965, 1.442695
        %v967 = vpow.pop %v966
        %v968 = vadd.f32 %v940, %v943
        %v969 = vadd.f32 %v968, %v946
        %v970 = vadd.f32 %v969, %v949
        %v971 = vadd.f32 %v970, %v952
        %v972 = vadd.f32 %v971, %v955
        %v973 = vadd.f32 %v972, %v958
        %v974 = vadd.f32 %v973, %v961
        %v975 = vadd.f32 %v974, %v964
        %v976 = vadd.f32 %v975, %v967
        %v977 = vmul.f32 %v940, %v504
        %v978 = vmul.f32 %v943, %v506
        %v979 = vadd.f32 %v977, %v978
        %v980 = vmul.f32 %v946, %v587
        %v981 = vadd.f32 %v979, %v980
        %v982 = vmul.f32 %v949, %v589
        %v983 = vadd.f32 %v981, %v982
        %v984 = vmul.f32 %v952, %v670
        %v985 = vadd.f32 %v983, %v984
        %v986 = vmul.f32 %v955, %v672
        %v987 = vadd.f32 %v985, %v986
        %v988 = vmul.f32 %v958, %v753
        %v989 = vadd.f32 %v987, %v988
        %v990 = vmul.f32 %v961, %v755
        %v991 = vadd.f32 %v989, %v990
        %v992 = vmul.f32 %v964, %v836
        %v993 = vadd.f32 %v991, %v992
        %v994 = vmul.f32 %v967, %v838
        %v995 = vadd.f32 %v993, %v994
        %v996 = vrcp.pop %v976
        %v997 = vmul.f32 %v995, %v996
        %v998 = vmul.f32 %v575, %v498
        %v999 = vmul.f32 %v575, %v500
        %v1000 = vmul.f32 %v575, %v581
        %v1001 = vmul.f32 %v575, %v583
        %v1002 = vmul.f32 %v575, %v664
        %v1003 = vmul.f32 %v575, %v666
        %v1004 = vmul.f32 %v575, %v747
        %v1005 = vmul.f32 %v575, %v749
        %v1006 = vmul.f32 %v575, %v830
        %v1007 = vmul.f32 %v575, %v832
        %v1008 = vmax.f32 %v998, %v999
        %v1009 = vmax.f32 %v1008, %v1000
        %v1010 = vmax.f32 %v1009, %v1001
        %v1011 = vmax.f32 %v1010, %v1002
        %v1012 = vmax.f32 %v1011, %v1003
        %v1013 = vmax.f32 %v1012, %v1004
        %v1014 = vmax.f32 %v1013, %v1005
        %v1015 = vmax.f32 %v1014, %v1006
        %v1016 = vmax.f32 %v1015, %v1007
        %v1017 = vsub.f32 %v998, %v1016
        %v1018 = vmul.f32 %v1017, 1.442695
        %v1019 = vpow.pop %v1018
        %v1020 = vsub.f32 %v999, %v1016
        %v1021 = vmul.f32 %v1020, 1.442695
        %v1022 = vpow.pop %v1021
        %v1023 = vsub.f32 %v1000, %v1016
        %v1024 = vmul.f32 %v1023, 1.442695
        %v1025 = vpow.pop %v1024
        %v1026 = vsub.f32 %v1001, %v1016
        %v1027 = vmul.f32 %v1026, 1.442695
        %v1028 = vpow.pop %v1027
        %v1029 = vsub.f32 %v1002, %v1016
        %v1030 = vmul.f32 %v1029, 1.442695
        %v1031 = vpow.pop %v1030
        %v1032 = vsub.f32 %v1003, %v1016
        %v1033 = vmul.f32 %v1032, 1.442695
        %v1034 = vpow.pop %v1033
        %v1035 = vsub.f32 %v1004, %v1016
        %v1036 = vmul.f32 %v1035, 1.442695
        %v1037 = vpow.pop %v1036
        %v1038 = vsub.f32 %v1005, %v1016
        %v1039 = vmul.f32 %v1038, 1.442695
        %v1040 = vpow.pop %v1039
        %v1041 = vsub.f32 %v1006, %v1016
        %v1042 = vmul.f32 %v1041, 1.442695
        %v1043 = vpow.pop %v1042
        %v1044 = vsub.f32 %v1007, %v1016
        %v1045 = vmul.f32 %v1044, 1.442695
        %v1046 = vpow.pop %v1045
        %v1047 = vadd.f32 %v1019, %v1022
        %v1048 = vadd.f32 %v1047, %v1025
        %v1049 = vadd.f32 %v1048, %v1028
        %v1050 = vadd.f32 %v1049, %v1031
        %v1051 = vadd.f32 %v1050, %v1034
        %v1052 = vadd.f32 %v1051, %v1037
        %v1053 = vadd.f32 %v1052, %v1040
        %v1054 = vadd.f32 %v1053, %v1043
        %v1055 = vadd.f32 %v1054, %v1046
        %v1056 = vmul.f32 %v1019, %v504
        %v1057 = vmul.f32 %v1022, %v506
        %v1058 = vadd.f32 %v1056, %v1057
        %v1059 = vmul.f32 %v1025, %v587
        %v1060 = vadd.f32 %v1058, %v1059
        %v1061 = vmul.f32 %v1028, %v589
        %v1062 = vadd.f32 %v1060, %v1061
        %v1063 = vmul.f32 %v1031, %v670
        %v1064 = vadd.f32 %v1062, %v1063
        %v1065 = vmul.f32 %v1034, %v672
        %v1066 = vadd.f32 %v1064, %v1065
        %v1067 = vmul.f32 %v1037, %v753
        %v1068 = vadd.f32 %v1066, %v1067
        %v1069 = vmul.f32 %v1040, %v755
        %v1070 = vadd.f32 %v1068, %v1069
        %v1071 = vmul.f32 %v1043, %v836
        %v1072 = vadd.f32 %v1070, %v1071
        %v1073 = vmul.f32 %v1046, %v838
        %v1074 = vadd.f32 %v1072, %v1073
        %v1075 = vrcp.pop %v1055
        %v1076 = vmul.f32 %v1074, %v1075
        %v1077 = vmul.f32 %v577, %v498
        %v1078 = vmul.f32 %v577, %v500
        %v1079 = vmul.f32 %v577, %v581
        %v1080 = vmul.f32 %v577, %v583
        %v1081 = vmul.f32 %v577, %v664
        %v1082 = vmul.f32 %v577, %v666
        %v1083 = vmul.f32 %v577, %v747
        %v1084 = vmul.f32 %v577, %v749
        %v1085 = vmul.f32 %v577, %v830
        %v1086 = vmul.f32 %v577, %v832
        %v1087 = vmax.f32 %v1077, %v1078
        %v1088 = vmax.f32 %v1087, %v1079
        %v1089 = vmax.f32 %v1088, %v1080
        %v1090 = vmax.f32 %v1089, %v1081
        %v1091 = vmax.f32 %v1090, %v1082
        %v1092 = vmax.f32 %v1091, %v1083
        %v1093 = vmax.f32 %v1092, %v1084
        %v1094 = vmax.f32 %v1093, %v1085
        %v1095 = vmax.f32 %v1094, %v1086
        %v1096 = vsub.f32 %v1077, %v1095
        %v1097 = vmul.f32 %v1096, 1.442695
        %v1098 = vpow.pop %v1097
        %v1099 = vsub.f32 %v1078, %v1095
        %v1100 = vmul.f32 %v1099, 1.442695
        %v1101 = vpow.pop %v1100
        %v1102 = vsub.f32 %v1079, %v1095
        %v1103 = vmul.f32 %v1102, 1.442695
        %v1104 = vpow.pop %v1103
        %v1105 = vsub.f32 %v1080, %v1095
        %v1106 = vmul.f32 %v1105, 1.442695
        %v1107 = vpow.pop %v1106
        %v1108 = vsub.f32 %v1081, %v1095
        %v1109 = vmul.f32 %v1108, 1.442695
        %v1110 = vpow.pop %v1109
        %v1111 = vsub.f32 %v1082, %v1095
        %v1112 = vmul.f32 %v1111, 1.442695
        %v1113 = vpow.pop %v1112
        %v1114 = vsub.f32 %v1083, %v1095
        %v1115 = vmul.f32 %v1114, 1.442695
        %v1116 = vpow.pop %v1115
        %v1117 = vsub.f32 %v1084, %v1095
        %v1118 = vmul.f32 %v1117, 1.442695
        %v1119 = vpow.pop %v1118
        %v1120 = vsub.f32 %v1085, %v1095
        %v1121 = vmul.f32 %v1120, 1.442695
        %v1122 = vpow.pop %v1121
        %v1123 = vsub.f32 %v1086, %v1095
        %v1124 = vmul.f32 %v1123, 1.442695
        %v1125 = vpow.pop %v1124
        %v1126 = vadd.f32 %v1098, %v1101
        %v1127 = vadd.f32 %v1126, %v1104
        %v1128 = vadd.f32 %v1127, %v1107
        %v1129 = vadd.f32 %v1128, %v1110
        %v1130 = vadd.f32 %v1129, %v1113
        %v1131 = vadd.f32 %v1130, %v1116
        %v1132 = vadd.f32 %v1131, %v1119
        %v1133 = vadd.f32 %v1132, %v1122
        %v1134 = vadd.f32 %v1133, %v1125
        %v1135 = vmul.f32 %v1098, %v504
        %v1136 = vmul.f32 %v1101, %v506
        %v1137 = vadd.f32 %v1135, %v1136
        %v1138 = vmul.f32 %v1104, %v587
        %v1139 = vadd.f32 %v1137, %v1138
        %v1140 = vmul.f32 %v1107, %v589
        %v1141 = vadd.f32 %v1139, %v1140
        %v1142 = vmul.f32 %v1110, %v670
        %v1143 = vadd.f32 %v1141, %v1142
        %v1144 = vmul.f32 %v1113, %v672
        %v1145 = vadd.f32 %v1143, %v1144
        %v1146 = vmul.f32 %v1116, %v753
        %v1147 = vadd.f32 %v1145, %v1146
        %v1148 = vmul.f32 %v1119, %v755
        %v1149 = vadd.f32 %v1147, %v1148
        %v1150 = vmul.f32 %v1122, %v836
        %v1151 = vadd.f32 %v1149, %v1150
        %v1152 = vmul.f32 %v1125, %v838
        %v1153 = vadd.f32 %v1151, %v1152
        %v1154 = vrcp.pop %v1134
        %v1155 = vmul.f32 %v1153, %v1154
        %v1156 = vmul.f32 %v658, %v498
        %v1157 = vmul.f32 %v658, %v500
        %v1158 = vmul.f32 %v658, %v581
        %v1159 = vmul.f32 %v658, %v583
        %v1160 = vmul.f32 %v658, %v664
        %v1161 = vmul.f32 %v658, %v666
        %v1162 = vmul.f32 %v658, %v747
        %v1163 = vmul.f32 %v658, %v749
        %v1164 = vmul.f32 %v658, %v830
        %v1165 = vmul.f32 %v658, %v832
        %v1166 = vmax.f32 %v1156, %v1157
        %v1167 = vmax.f32 %v1166, %v1158
        %v1168 = vmax.f32 %v1167, %v1159
        %v1169 = vmax.f32 %v1168, %v1160
        %v1170 = vmax.f32 %v1169, %v1161
        %v1171 = vmax.f32 %v1170, %v1162
        %v1172 = vmax.f32 %v1171, %v1163
        %v1173 = vmax.f32 %v1172, %v1164
        %v1174 = vmax.f32 %v1173, %v1165
        %v1175 = vsub.f32 %v1156, %v1174
        %v1176 = vmul.f32 %v1175, 1.442695
        %v1177 = vpow.pop %v1176
        %v1178 = vsub.f32 %v1157, %v1174
        %v1179 = vmul.f32 %v1178, 1.442695
        %v1180 = vpow.pop %v1179
        %v1181 = vsub.f32 %v1158, %v1174
        %v1182 = vmul.f32 %v1181, 1.442695
        %v1183 = vpow.pop %v1182
        %v1184 = vsub.f32 %v1159, %v1174
        %v1185 = vmul.f32 %v1184, 1.442695
        %v1186 = vpow.pop %v1185
        %v1187 = vsub.f32 %v1160, %v1174
        %v1188 = vmul.f32 %v1187, 1.442695
        %v1189 = vpow.pop %v1188
        %v1190 = vsub.f32 %v1161, %v1174
        %v1191 = vmul.f32 %v1190, 1.442695
        %v1192 = vpow.pop %v1191
        %v1193 = vsub.f32 %v1162, %v1174
        %v1194 = vmul.f32 %v1193, 1.442695
        %v1195 = vpow.pop %v1194
        %v1196 = vsub.f32 %v1163, %v1174
        %v1197 = vmul.f32 %v1196, 1.442695
        %v1198 = vpow.pop %v1197
        %v1199 = vsub.f32 %v1164, %v1174
        %v1200 = vmul.f32 %v1199, 1.442695
        %v1201 = vpow.pop %v1200
        %v1202 = vsub.f32 %v1165, %v1174
        %v1203 = vmul.f32 %v1202, 1.442695
        %v1204 = vpow.pop %v1203
        %v1205 = vadd.f32 %v1177, %v1180
        %v1206 = vadd.f32 %v1205, %v1183
        %v1207 = vadd.f32 %v1206, %v1186
        %v1208 = vadd.f32 %v1207, %v1189
        %v1209 = vadd.f32 %v1208, %v1192
        %v1210 = vadd.f32 %v1209, %v1195
        %v1211 = vadd.f32 %v1210, %v1198
        %v1212 = vadd.f32 %v1211, %v1201
        %v1213 = vadd.f32 %v1212, %v1204
        %v1214 = vmul.f32 %v1177, %v504
        %v1215 = vmul.f32 %v1180, %v506
        %v1216 = vadd.f32 %v1214, %v1215
        %v1217 = vmul.f32 %v1183, %v587
        %v1218 = vadd.f32 %v1216, %v1217
        %v1219 = vmul.f32 %v1186, %v589
        %v1220 = vadd.f32 %v1218, %v1219
        %v1221 = vmul.f32 %v1189, %v670
        %v1222 = vadd.f32 %v1220, %v1221
        %v1223 = vmul.f32 %v1192, %v672
        %v1224 = vadd.f32 %v1222, %v1223
        %v1225 = vmul.f32 %v1195, %v753
        %v1226 = vadd.f32 %v1224, %v1225
        %v1227 = vmul.f32 %v1198, %v755
        %v1228 = vadd.f32 %v1226, %v1227
        %v1229 = vmul.f32 %v1201, %v836
        %v1230 = vadd.f32 %v1228, %v1229
        %v1231 = vmul.f32 %v1204, %v838
        %v1232 = vadd.f32 %v1230, %v1231
        %v1233 = vrcp.pop %v1213
        %v1234 = vmul.f32 %v1232, %v1233
        %v1235 = vmul.f32 %v660, %v498
        %v1236 = vmul.f32 %v660, %v500
        %v1237 = vmul.f32 %v660, %v581
        %v1238 = vmul.f32 %v660, %v583
        %v1239 = vmul.f32 %v660, %v664
        %v1240 = vmul.f32 %v660, %v666
        %v1241 = vmul.f32 %v660, %v747
        %v1242 = vmul.f32 %v660, %v749
        %v1243 = vmul.f32 %v660, %v830
        %v1244 = vmul.f32 %v660, %v832
        %v1245 = vmax.f32 %v1235, %v1236
        %v1246 = vmax.f32 %v1245, %v1237
        %v1247 = vmax.f32 %v1246, %v1238
        %v1248 = vmax.f32 %v1247, %v1239
        %v1249 = vmax.f32 %v1248, %v1240
        %v1250 = vmax.f32 %v1249, %v1241
        %v1251 = vmax.f32 %v1250, %v1242
        %v1252 = vmax.f32 %v1251, %v1243
        %v1253 = vmax.f32 %v1252, %v1244
        %v1254 = vsub.f32 %v1235, %v1253
        %v1255 = vmul.f32 %v1254, 1.442695
        %v1256 = vpow.pop %v1255
        %v1257 = vsub.f32 %v1236, %v1253
        %v1258 = vmul.f32 %v1257, 1.442695
        %v1259 = vpow.pop %v1258
        %v1260 = vsub.f32 %v1237, %v1253
        %v1261 = vmul.f32 %v1260, 1.442695
        %v1262 = vpow.pop %v1261
        %v1263 = vsub.f32 %v1238, %v1253
        %v1264 = vmul.f32 %v1263, 1.442695
        %v1265 = vpow.pop %v1264
        %v1266 = vsub.f32 %v1239, %v1253
        %v1267 = vmul.f32 %v1266, 1.442695
        %v1268 = vpow.pop %v1267
        %v1269 = vsub.f32 %v1240, %v1253
        %v1270 = vmul.f32 %v1269, 1.442695
        %v1271 = vpow.pop %v1270
        %v1272 = vsub.f32 %v1241, %v1253
        %v1273 = vmul.f32 %v1272, 1.442695
        %v1274 = vpow.pop %v1273
        %v1275 = vsub.f32 %v1242, %v1253
        %v1276 = vmul.f32 %v1275, 1.442695
        %v1277 = vpow.pop %v1276
        %v1278 = vsub.f32 %v1243, %v1253
        %v1279 = vmul.f32 %v1278, 1.442695
        %v1280 = vpow.pop %v1279
        %v1281 = vsub.f32 %v1244, %v1253
        %v1282 = vmul.f32 %v1281, 1.442695
        %v1283 = vpow.pop %v1282
        %v1284 = vadd.f32 %v1256, %v1259
        %v1285 = vadd.f32 %v1284, %v1262
        %v1286 = vadd.f32 %v1285, %v1265
        %v1287 = vadd.f32 %v1286, %v1268
        %v1288 = vadd.f32 %v1287, %v1271
        %v1289 = vadd.f32 %v1288, %v1274
        %v1290 = vadd.f32 %v1289, %v1277
        %v1291 = vadd.f32 %v1290, %v1280
        %v1292 = vadd.f32 %v1291, %v1283
        %v1293 = vmul.f32 %v1256, %v504
        %v1294 = vmul.f32 %v1259, %v506
        %v1295 = vadd.f32 %v1293, %v1294
        %v1296 = vmul.f32 %v1262, %v587
        %v1297 = vadd.f32 %v1295, %v1296
        %v1298 = vmul.f32 %v1265, %v589
        %v1299 = vadd.f32 %v1297, %v1298
        %v1300 = vmul.f32 %v1268, %v670
        %v1301 = vadd.f32 %v1299, %v1300
        %v1302 = vmul.f32 %v1271, %v672
        %v1303 = vadd.f32 %v1301, %v1302
        %v1304 = vmul.f32 %v1274, %v753
        %v1305 = vadd.f32 %v1303, %v1304
        %v1306 = vmul.f32 %v1277, %v755
        %v1307 = vadd.f32 %v1305, %v1306
        %v1308 = vmul.f32 %v1280, %v836
        %v1309 = vadd.f32 %v1307, %v1308
        %v1310 = vmul.f32 %v1283, %v838
        %v1311 = vadd.f32 %v1309, %v1310
        %v1312 = vrcp.pop %v1292
        %v1313 = vmul.f32 %v1311, %v1312
        %v1314 = vmul.f32 %v741, %v498
        %v1315 = vmul.f32 %v741, %v500
        %v1316 = vmul.f32 %v741, %v581
        %v1317 = vmul.f32 %v741, %v583
        %v1318 = vmul.f32 %v741, %v664
        %v1319 = vmul.f32 %v741, %v666
        %v1320 = vmul.f32 %v741, %v747
        %v1321 = vmul.f32 %v741, %v749
        %v1322 = vmul.f32 %v741, %v830
        %v1323 = vmul.f32 %v741, %v832
        %v1324 = vmax.f32 %v1314, %v1315
        %v1325 = vmax.f32 %v1324, %v1316
        %v1326 = vmax.f32 %v1325, %v1317
        %v1327 = vmax.f32 %v1326, %v1318
        %v1328 = vmax.f32 %v1327, %v1319
        %v1329 = vmax.f32 %v1328, %v1320
        %v1330 = vmax.f32 %v1329, %v1321
        %v1331 = vmax.f32 %v1330, %v1322
        %v1332 = vmax.f32 %v1331, %v1323
        %v1333 = vsub.f32 %v1314, %v1332
        %v1334 = vmul.f32 %v1333, 1.442695
        %v1335 = vpow.pop %v1334
        %v1336 = vsub.f32 %v1315, %v1332
        %v1337 = vmul.f32 %v1336, 1.442695
        %v1338 = vpow.pop %v1337
        %v1339 = vsub.f32 %v1316, %v1332
        %v1340 = vmul.f32 %v1339, 1.442695
        %v1341 = vpow.pop %v1340
        %v1342 = vsub.f32 %v1317, %v1332
        %v1343 = vmul.f32 %v1342, 1.442695
        %v1344 = vpow.pop %v1343
        %v1345 = vsub.f32 %v1318, %v1332
        %v1346 = vmul.f32 %v1345, 1.442695
        %v1347 = vpow.pop %v1346
        %v1348 = vsub.f32 %v1319, %v1332
        %v1349 = vmul.f32 %v1348, 1.442695
        %v1350 = vpow.pop %v1349
        %v1351 = vsub.f32 %v1320, %v1332
        %v1352 = vmul.f32 %v1351, 1.442695
        %v1353 = vpow.pop %v1352
        %v1354 = vsub.f32 %v1321, %v1332
        %v1355 = vmul.f32 %v1354, 1.442695
        %v1356 = vpow.pop %v1355
        %v1357 = vsub.f32 %v1322, %v1332
        %v1358 = vmul.f32 %v1357, 1.442695
        %v1359 = vpow.pop %v1358
        %v1360 = vsub.f32 %v1323, %v1332
        %v1361 = vmul.f32 %v1360, 1.442695
        %v1362 = vpow.pop %v1361
        %v1363 = vadd.f32 %v1335, %v1338
        %v1364 = vadd.f32 %v1363, %v1341
        %v1365 = vadd.f32 %v1364, %v1344
        %v1366 = vadd.f32 %v1365, %v1347
        %v1367 = vadd.f32 %v1366, %v1350
        %v1368 = vadd.f32 %v1367, %v1353
        %v1369 = vadd.f32 %v1368, %v1356
        %v1370 = vadd.f32 %v1369, %v1359
        %v1371 = vadd.f32 %v1370, %v1362
        %v1372 = vmul.f32 %v1335, %v504
        %v1373 = vmul.f32 %v1338, %v506
        %v1374 = vadd.f32 %v1372, %v1373
        %v1375 = vmul.f32 %v1341, %v587
        %v1376 = vadd.f32 %v1374, %v1375
        %v1377 = vmul.f32 %v1344, %v589
        %v1378 = vadd.f32 %v1376, %v1377
        %v1379 = vmul.f32 %v1347, %v670
        %v1380 = vadd.f32 %v1378, %v1379
        %v1381 = vmul.f32 %v1350, %v672
        %v1382 = vadd.f32 %v1380, %v1381
        %v1383 = vmul.f32 %v1353, %v753
        %v1384 = vadd.f32 %v1382, %v1383
        %v1385 = vmul.f32 %v1356, %v755
        %v1386 = vadd.f32 %v1384, %v1385
        %v1387 = vmul.f32 %v1359, %v836
        %v1388 = vadd.f32 %v1386, %v1387
        %v1389 = vmul.f32 %v1362, %v838
        %v1390 = vadd.f32 %v1388, %v1389
        %v1391 = vrcp.pop %v1371
        %v1392 = vmul.f32 %v1390, %v1391
        %v1393 = vmul.f32 %v743, %v498
        %v1394 = vmul.f32 %v743, %v500
        %v1395 = vmul.f32 %v743, %v581
        %v1396 = vmul.f32 %v743, %v583
        %v1397 = vmul.f32 %v743, %v664
        %v1398 = vmul.f32 %v743, %v666
        %v1399 = vmul.f32 %v743, %v747
        %v1400 = vmul.f32 %v743, %v749
        %v1401 = vmul.f32 %v743, %v830
        %v1402 = vmul.f32 %v743, %v832
        %v1403 = vmax.f32 %v1393, %v1394
        %v1404 = vmax.f32 %v1403, %v1395
        %v1405 = vmax.f32 %v1404, %v1396
        %v1406 = vmax.f32 %v1405, %v1397
        %v1407 = vmax.f32 %v1406, %v1398
        %v1408 = vmax.f32 %v1407, %v1399
        %v1409 = vmax.f32 %v1408, %v1400
        %v1410 = vmax.f32 %v1409, %v1401
        %v1411 = vmax.f32 %v1410, %v1402
        %v1412 = vsub.f32 %v1393, %v1411
        %v1413 = vmul.f32 %v1412, 1.442695
        %v1414 = vpow.pop %v1413
        %v1415 = vsub.f32 %v1394, %v1411
        %v1416 = vmul.f32 %v1415, 1.442695
        %v1417 = vpow.pop %v1416
        %v1418 = vsub.f32 %v1395, %v1411
        %v1419 = vmul.f32 %v1418, 1.442695
        %v1420 = vpow.pop %v1419
        %v1421 = vsub.f32 %v1396, %v1411
        %v1422 = vmul.f32 %v1421, 1.442695
        %v1423 = vpow.pop %v1422
        %v1424 = vsub.f32 %v1397, %v1411
        %v1425 = vmul.f32 %v1424, 1.442695
        %v1426 = vpow.pop %v1425
        %v1427 = vsub.f32 %v1398, %v1411
        %v1428 = vmul.f32 %v1427, 1.442695
        %v1429 = vpow.pop %v1428
        %v1430 = vsub.f32 %v1399, %v1411
        %v1431 = vmul.f32 %v1430, 1.442695
        %v1432 = vpow.pop %v1431
        %v1433 = vsub.f32 %v1400, %v1411
        %v1434 = vmul.f32 %v1433, 1.442695
        %v1435 = vpow.pop %v1434
        %v1436 = vsub.f32 %v1401, %v1411
        %v1437 = vmul.f32 %v1436, 1.442695
        %v1438 = vpow.pop %v1437
        %v1439 = vsub.f32 %v1402, %v1411
        %v1440 = vmul.f32 %v1439, 1.442695
        %v1441 = vpow.pop %v1440
        %v1442 = vadd.f32 %v1414, %v1417
        %v1443 = vadd.f32 %v1442, %v1420
        %v1444 = vadd.f32 %v1443, %v1423
        %v1445 = vadd.f32 %v1444, %v1426
        %v1446 = vadd.f32 %v1445, %v1429
        %v1447 = vadd.f32 %v1446, %v1432
        %v1448 = vadd.f32 %v1447, %v1435
        %v1449 = vadd.f32 %v1448, %v1438
        %v1450 = vadd.f32 %v1449, %v1441
        %v1451 = vmul.f32 %v1414, %v504
        %v1452 = vmul.f32 %v1417, %v506
        %v1453 = vadd.f32 %v1451, %v1452
        %v1454 = vmul.f32 %v1420, %v587
        %v1455 = vadd.f32 %v1453, %v1454
        %v1456 = vmul.f32 %v1423, %v589
        %v1457 = vadd.f32 %v1455, %v1456
        %v1458 = vmul.f32 %v1426, %v670
        %v1459 = vadd.f32 %v1457, %v1458
        %v1460 = vmul.f32 %v1429, %v672
        %v1461 = vadd.f32 %v1459, %v1460
        %v1462 = vmul.f32 %v1432, %v753
        %v1463 = vadd.f32 %v1461, %v1462
        %v1464 = vmul.f32 %v1435, %v755
        %v1465 = vadd.f32 %v1463, %v1464
        %v1466 = vmul.f32 %v1438, %v836
        %v1467 = vadd.f32 %v1465, %v1466
        %v1468 = vmul.f32 %v1441, %v838
        %v1469 = vadd.f32 %v1467, %v1468
        %v1470 = vrcp.pop %v1450
        %v1471 = vmul.f32 %v1469, %v1470
        %v1472 = vmul.f32 %v824, %v498
        %v1473 = vmul.f32 %v824, %v500
        %v1474 = vmul.f32 %v824, %v581
        %v1475 = vmul.f32 %v824, %v583
        %v1476 = vmul.f32 %v824, %v664
        %v1477 = vmul.f32 %v824, %v666
        %v1478 = vmul.f32 %v824, %v747
        %v1479 = vmul.f32 %v824, %v749
        %v1480 = vmul.f32 %v824, %v830
        %v1481 = vmul.f32 %v824, %v832
        %v1482 = vmax.f32 %v1472, %v1473
        %v1483 = vmax.f32 %v1482, %v1474
        %v1484 = vmax.f32 %v1483, %v1475
        %v1485 = vmax.f32 %v1484, %v1476
        %v1486 = vmax.f32 %v1485, %v1477
        %v1487 = vmax.f32 %v1486, %v1478
        %v1488 = vmax.f32 %v1487, %v1479
        %v1489 = vmax.f32 %v1488, %v1480
        %v1490 = vmax.f32 %v1489, %v1481
        %v1491 = vsub.f32 %v1472, %v1490
        %v1492 = vmul.f32 %v1491, 1.442695
        %v1493 = vpow.pop %v1492
        %v1494 = vsub.f32 %v1473, %v1490
        %v1495 = vmul.f32 %v1494, 1.442695
        %v1496 = vpow.pop %v1495
        %v1497 = vsub.f32 %v1474, %v1490
        %v1498 = vmul.f32 %v1497, 1.442695
        %v1499 = vpow.pop %v1498
        %v1500 = vsub.f32 %v1475, %v1490
        %v1501 = vmul.f32 %v1500, 1.442695
        %v1502 = vpow.pop %v1501
        %v1503 = vsub.f32 %v1476, %v1490
        %v1504 = vmul.f32 %v1503, 1.442695
        %v1505 = vpow.pop %v1504
        %v1506 = vsub.f32 %v1477, %v1490
        %v1507 = vmul.f32 %v1506, 1.442695
        %v1508 = vpow.pop %v1507
        %v1509 = vsub.f32 %v1478, %v1490
        %v1510 = vmul.f32 %v1509, 1.442695
        %v1511 = vpow.pop %v1510
        %v1512 = vsub.f32 %v1479, %v1490
        %v1513 = vmul.f32 %v1512, 1.442695
        %v1514 = vpow.pop %v1513
        %v1515 = vsub.f32 %v1480, %v1490
        %v1516 = vmul.f32 %v1515, 1.442695
        %v1517 = vpow.pop %v1516
        %v1518 = vsub.f32 %v1481, %v1490
        %v1519 = vmul.f32 %v1518, 1.442695
        %v1520 = vpow.pop %v1519
        %v1521 = vadd.f32 %v1493, %v1496
        %v1522 = vadd.f32 %v1521, %v1499
        %v1523 = vadd.f32 %v1522, %v1502
        %v1524 = vadd.f32 %v1523, %v1505
        %v1525 = vadd.f32 %v1524, %v1508
        %v1526 = vadd.f32 %v1525, %v1511
        %v1527 = vadd.f32 %v1526, %v1514
        %v1528 = vadd.f32 %v1527, %v1517
        %v1529 = vadd.f32 %v1528, %v1520
        %v1530 = vmul.f32 %v1493, %v504
        %v1531 = vmul.f32 %v1496, %v506
        %v1532 = vadd.f32 %v1530, %v1531
        %v1533 = vmul.f32 %v1499, %v587
        %v1534 = vadd.f32 %v1532, %v1533
        %v1535 = vmul.f32 %v1502, %v589
        %v1536 = vadd.f32 %v1534, %v1535
        %v1537 = vmul.f32 %v1505, %v670
        %v1538 = vadd.f32 %v1536, %v1537
        %v1539 = vmul.f32 %v1508, %v672
        %v1540 = vadd.f32 %v1538, %v1539
        %v1541 = vmul.f32 %v1511, %v753
        %v1542 = vadd.f32 %v1540, %v1541
        %v1543 = vmul.f32 %v1514, %v755
        %v1544 = vadd.f32 %v1542, %v1543
        %v1545 = vmul.f32 %v1517, %v836
        %v1546 = vadd.f32 %v1544, %v1545
        %v1547 = vmul.f32 %v1520, %v838
        %v1548 = vadd.f32 %v1546, %v1547
        %v1549 = vrcp.pop %v1529
        %v1550 = vmul.f32 %v1548, %v1549
        %v1551 = vmul.f32 %v826, %v498
        %v1552 = vmul.f32 %v826, %v500
        %v1553 = vmul.f32 %v826, %v581
        %v1554 = vmul.f32 %v826, %v583
        %v1555 = vmul.f32 %v826, %v664
        %v1556 = vmul.f32 %v826, %v666
        %v1557 = vmul.f32 %v826, %v747
        %v1558 = vmul.f32 %v826, %v749
        %v1559 = vmul.f32 %v826, %v830
        %v1560 = vmul.f32 %v826, %v832
        %v1561 = vmax.f32 %v1551, %v1552
        %v1562 = vmax.f32 %v1561, %v1553
        %v1563 = vmax.f32 %v1562, %v1554
        %v1564 = vmax.f32 %v1563, %v1555
        %v1565 = vmax.f32 %v1564, %v1556
        %v1566 = vmax.f32 %v1565, %v1557
        %v1567 = vmax.f32 %v1566, %v1558
        %v1568 = vmax.f32 %v1567, %v1559
        %v1569 = vmax.f32 %v1568, %v1560
        %v1570 = vsub.f32 %v1551, %v1569
        %v1571 = vmul.f32 %v1570, 1.442695
        %v1572 = vpow.pop %v1571
        %v1573 = vsub.f32 %v1552, %v1569
        %v1574 = vmul.f32 %v1573, 1.442695
        %v1575 = vpow.pop %v1574
        %v1576 = vsub.f32 %v1553, %v1569
        %v1577 = vmul.f32 %v1576, 1.442695
        %v1578 = vpow.pop %v1577
        %v1579 = vsub.f32 %v1554, %v1569
        %v1580 = vmul.f32 %v1579, 1.442695
        %v1581 = vpow.pop %v1580
        %v1582 = vsub.f32 %v1555, %v1569
        %v1583 = vmul.f32 %v1582, 1.442695
        %v1584 = vpow.pop %v1583
        %v1585 = vsub.f32 %v1556, %v1569
        %v1586 = vmul.f32 %v1585, 1.442695
        %v1587 = vpow.pop %v1586
        %v1588 = vsub.f32 %v1557, %v1569
        %v1589 = vmul.f32 %v1588, 1.442695
        %v1590 = vpow.pop %v1589
        %v1591 = vsub.f32 %v1558, %v1569
        %v1592 = vmul.f32 %v1591, 1.442695
        %v1593 = vpow.pop %v1592
        %v1594 = vsub.f32 %v1559, %v1569
        %v1595 = vmul.f32 %v1594, 1.442695
        %v1596 = vpow.pop %v1595
        %v1597 = vsub.f32 %v1560, %v1569
        %v1598 = vmul.f32 %v1597, 1.442695
        %v1599 = vpow.pop %v1598
        %v1600 = vadd.f32 %v1572, %v1575
        %v1601 = vadd.f32 %v1600, %v1578
        %v1602 = vadd.f32 %v1601, %v1581
        %v1603 = vadd.f32 %v1602, %v1584
        %v1604 = vadd.f32 %v1603, %v1587
        %v1605 = vadd.f32 %v1604, %v1590
        %v1606 = vadd.f32 %v1605, %v1593
        %v1607 = vadd.f32 %v1606, %v1596
        %v1608 = vadd.f32 %v1607, %v1599
        %v1609 = vmul.f32 %v1572, %v504
        %v1610 = vmul.f32 %v1575, %v506
        %v1611 = vadd.f32 %v1609, %v1610
        %v1612 = vmul.f32 %v1578, %v587
        %v1613 = vadd.f32 %v1611, %v1612
        %v1614 = vmul.f32 %v1581, %v589
        %v1615 = vadd.f32 %v1613, %v1614
        %v1616 = vmul.f32 %v1584, %v670
        %v1617 = vadd.f32 %v1615, %v1616
        %v1618 = vmul.f32 %v1587, %v672
        %v1619 = vadd.f32 %v1617, %v1618
        %v1620 = vmul.f32 %v1590, %v753
        %v1621 = vadd.f32 %v1619, %v1620
        %v1622 = vmul.f32 %v1593, %v755
        %v1623 = vadd.f32 %v1621, %v1622
        %v1624 = vmul.f32 %v1596, %v836
        %v1625 = vadd.f32 %v1623, %v1624
        %v1626 = vmul.f32 %v1599, %v838
        %v1627 = vadd.f32 %v1625, %v1626
        %v1628 = vrcp.pop %v1608
        %v1629 = vmul.f32 %v1627, %v1628
        %s1630 = scalar_lea.vmem [#allocation2], 24
        %v1631 = vld [vmem:[%s1630] sm:$0xff]
        %s1632 = scalar_lea.vmem [#allocation5], 24
        %v1633 = vld [vmem:[%s1632] sm:$0xff]
        %1635 = vset.pattern.permute.xlu0 0
        %1636 = vperm.xlu0 %1635, %v1633
        %v1637 = vpop.permute.xlu0 %1636
        %v1640 = vsel %vm415, %v1631, 0
        %1642 = vmatprep.subr.mxu0 0.0
        %1643 = vmatpush1.msra.mxu0 0.0
        %1644 = vmatprep.subr.mxu0 0.0
        %1645 = vmatpush1.msra.mxu0 0.0
        %1646 = vmatprep.subr.mxu0 0.0
        %1647 = vmatpush1.msra.mxu0 0.0
        %1648 = vmatprep.subr.mxu0 0.0
        %1649 = vmatpush1.msra.mxu0 0.0
        %1650 = vmatprep.subr.mxu0 0.0
        %1651 = vmatpush1.msra.mxu0 0.0
        %1652 = vmatprep.subr.mxu0 0.0
        %1653 = vmatpush1.msra.mxu0 0.0
        %1654 = vmatprep.subr.mxu0 0.0
        %1655 = vmatpush1.msra.mxu0 0.0
        %1656 = vmatprep.subr.mxu0 0.0
        %1657 = vmatpush1.msra.mxu0 0.0
        %1658 = vmatprep.subr.mxu0 0.0
        %1659 = vmatpush1.msra.mxu0 0.0
        %1660 = vmatprep.subr.mxu0 0.0
        %1661 = vmatpush1.msra.mxu0 0.0
        %1662 = vmatprep.subr.mxu0 0.0
        %1663 = vmatpush1.msra.mxu0 0.0
        %1664 = vmatprep.subr.mxu0 0.0
        %1665 = vmatpush1.msra.mxu0 0.0
        %1666 = vmatprep.subr.mxu0 0.0
        %1667 = vmatpush1.msra.mxu0 0.0
        %1668 = vmatprep.subr.mxu0 0.0
        %1669 = vmatpush1.msra.mxu0 0.0
        %1670 = vmatprep.subr.mxu0 0.0
        %1671 = vmatpush1.msra.mxu0 0.0
        %1672 = vmatprep.subr.mxu0 %v997
        %1673 = vmatpush1.msra.mxu0 %v918
        %1674 = vmatprep.subr.mxu0 0.0
        %1675 = vmatpush2.msra.mxu0 0.0
        %1676 = vmatprep.subr.mxu0 0.0
        %1677 = vmatpush2.msra.mxu0 0.0
        %1678 = vmatprep.subr.mxu0 0.0
        %1679 = vmatpush2.msra.mxu0 0.0
        %1680 = vmatprep.subr.mxu0 0.0
        %1681 = vmatpush2.msra.mxu0 0.0
        %1682 = vmatprep.subr.mxu0 0.0
        %1683 = vmatpush2.msra.mxu0 0.0
        %1684 = vmatprep.subr.mxu0 0.0
        %1685 = vmatpush2.msra.mxu0 0.0
        %1686 = vmatprep.subr.mxu0 0.0
        %1687 = vmatpush2.msra.mxu0 0.0
        %1688 = vmatprep.subr.mxu0 0.0
        %1689 = vmatpush2.msra.mxu0 0.0
        %1690 = vmatprep.subr.mxu0 0.0
        %1691 = vmatpush2.msra.mxu0 0.0
        %1692 = vmatprep.subr.mxu0 0.0
        %1693 = vmatpush2.msra.mxu0 0.0
        %1694 = vmatprep.subr.mxu0 0.0
        %1695 = vmatpush2.msra.mxu0 0.0
        %1696 = vmatprep.subr.mxu0 0.0
        %1697 = vmatpush2.msra.mxu0 0.0
        %1698 = vmatprep.subr.mxu0 0.0
        %1699 = vmatpush2.msra.mxu0 0.0
        %1700 = vmatprep.subr.mxu0 0.0
        %1701 = vmatpush2.msra.mxu0 0.0
        %1702 = vmatprep.subr.mxu0 0.0
        %1703 = vmatpush2.msra.mxu0 0.0
        %1704 = vmatprep.subr.mxu0 0.0
        %1705 = vmatpush2.msra.mxu0 0.0
        %1706 = vmatprep.mubr.f32.mxu0 0.0
        %1707 = vmatmul.mubr.f32.gmra.mxu0 %v1640
        %v1708 = vpop.f32.mrf.mxu0
        %v1709 = vadd.f32 %v1637, %v1708
        %v1710 = vpop.f32.mrf.mxu0
        %v1711 = vadd.f32 %v1637, %v1710
        %1712 = vdwg.mxu0
        %1713 = vmatprep.subr.mxu0 0.0
        %1714 = vmatpush1.msra.mxu0 0.0
        %1715 = vmatprep.subr.mxu0 0.0
        %1716 = vmatpush1.msra.mxu0 0.0
        %1717 = vmatprep.subr.mxu0 0.0
        %1718 = vmatpush1.msra.mxu0 0.0
        %1719 = vmatprep.subr.mxu0 0.0
        %1720 = vmatpush1.msra.mxu0 0.0
        %1721 = vmatprep.subr.mxu0 0.0
        %1722 = vmatpush1.msra.mxu0 0.0
        %1723 = vmatprep.subr.mxu0 0.0
        %1724 = vmatpush1.msra.mxu0 0.0
        %1725 = vmatprep.subr.mxu0 0.0
        %1726 = vmatpush1.msra.mxu0 0.0
        %1727 = vmatprep.subr.mxu0 0.0
        %1728 = vmatpush1.msra.mxu0 0.0
        %1729 = vmatprep.subr.mxu0 0.0
        %1730 = vmatpush1.msra.mxu0 0.0
        %1731 = vmatprep.subr.mxu0 0.0
        %1732 = vmatpush1.msra.mxu0 0.0
        %1733 = vmatprep.subr.mxu0 0.0
        %1734 = vmatpush1.msra.mxu0 0.0
        %1735 = vmatprep.subr.mxu0 0.0
        %1736 = vmatpush1.msra.mxu0 0.0
        %1737 = vmatprep.subr.mxu0 0.0
        %1738 = vmatpush1.msra.mxu0 0.0
        %1739 = vmatprep.subr.mxu0 0.0
        %1740 = vmatpush1.msra.mxu0 0.0
        %1741 = vmatprep.subr.mxu0 0.0
        %1742 = vmatpush1.msra.mxu0 0.0
        %1743 = vmatprep.subr.mxu0 %v1155
        %1744 = vmatpush1.msra.mxu0 %v1076
        %1745 = vmatprep.subr.mxu0 0.0
        %1746 = vmatpush2.msra.mxu0 0.0
        %1747 = vmatprep.subr.mxu0 0.0
        %1748 = vmatpush2.msra.mxu0 0.0
        %1749 = vmatprep.subr.mxu0 0.0
        %1750 = vmatpush2.msra.mxu0 0.0
        %1751 = vmatprep.subr.mxu0 0.0
        %1752 = vmatpush2.msra.mxu0 0.0
        %1753 = vmatprep.subr.mxu0 0.0
        %1754 = vmatpush2.msra.mxu0 0.0
        %1755 = vmatprep.subr.mxu0 0.0
        %1756 = vmatpush2.msra.mxu0 0.0
        %1757 = vmatprep.subr.mxu0 0.0
        %1758 = vmatpush2.msra.mxu0 0.0
        %1759 = vmatprep.subr.mxu0 0.0
        %1760 = vmatpush2.msra.mxu0 0.0
        %1761 = vmatprep.subr.mxu0 0.0
        %1762 = vmatpush2.msra.mxu0 0.0
        %1763 = vmatprep.subr.mxu0 0.0
        %1764 = vmatpush2.msra.mxu0 0.0
        %1765 = vmatprep.subr.mxu0 0.0
        %1766 = vmatpush2.msra.mxu0 0.0
        %1767 = vmatprep.subr.mxu0 0.0
        %1768 = vmatpush2.msra.mxu0 0.0
        %1769 = vmatprep.subr.mxu0 0.0
        %1770 = vmatpush2.msra.mxu0 0.0
        %1771 = vmatprep.subr.mxu0 0.0
        %1772 = vmatpush2.msra.mxu0 0.0
        %1773 = vmatprep.subr.mxu0 0.0
        %1774 = vmatpush2.msra.mxu0 0.0
        %1775 = vmatprep.subr.mxu0 0.0
        %1776 = vmatpush2.msra.mxu0 0.0
        %1777 = vmatprep.mubr.f32.mxu0 0.0
        %1778 = vmatmul.mubr.f32.gmra.mxu0 %v1640
        %v1779 = vpop.f32.mrf.mxu0
        %v1780 = vadd.f32 %v1637, %v1779
        %v1781 = vpop.f32.mrf.mxu0
        %v1782 = vadd.f32 %v1637, %v1781
        %1783 = vdwg.mxu0
        %1784 = vmatprep.subr.mxu0 0.0
        %1785 = vmatpush1.msra.mxu0 0.0
        %1786 = vmatprep.subr.mxu0 0.0
        %1787 = vmatpush1.msra.mxu0 0.0
        %1788 = vmatprep.subr.mxu0 0.0
        %1789 = vmatpush1.msra.mxu0 0.0
        %1790 = vmatprep.subr.mxu0 0.0
        %1791 = vmatpush1.msra.mxu0 0.0
        %1792 = vmatprep.subr.mxu0 0.0
        %1793 = vmatpush1.msra.mxu0 0.0
        %1794 = vmatprep.subr.mxu0 0.0
        %1795 = vmatpush1.msra.mxu0 0.0
        %1796 = vmatprep.subr.mxu0 0.0
        %1797 = vmatpush1.msra.mxu0 0.0
        %1798 = vmatprep.subr.mxu0 0.0
        %1799 = vmatpush1.msra.mxu0 0.0
        %1800 = vmatprep.subr.mxu0 0.0
        %1801 = vmatpush1.msra.mxu0 0.0
        %1802 = vmatprep.subr.mxu0 0.0
        %1803 = vmatpush1.msra.mxu0 0.0
        %1804 = vmatprep.subr.mxu0 0.0
        %1805 = vmatpush1.msra.mxu0 0.0
        %1806 = vmatprep.subr.mxu0 0.0
        %1807 = vmatpush1.msra.mxu0 0.0
        %1808 = vmatprep.subr.mxu0 0.0
        %1809 = vmatpush1.msra.mxu0 0.0
        %1810 = vmatprep.subr.mxu0 0.0
        %1811 = vmatpush1.msra.mxu0 0.0
        %1812 = vmatprep.subr.mxu0 0.0
        %1813 = vmatpush1.msra.mxu0 0.0
        %1814 = vmatprep.subr.mxu0 %v1313
        %1815 = vmatpush1.msra.mxu0 %v1234
        %1816 = vmatprep.subr.mxu0 0.0
        %1817 = vmatpush2.msra.mxu0 0.0
        %1818 = vmatprep.subr.mxu0 0.0
        %1819 = vmatpush2.msra.mxu0 0.0
        %1820 = vmatprep.subr.mxu0 0.0
        %1821 = vmatpush2.msra.mxu0 0.0
        %1822 = vmatprep.subr.mxu0 0.0
        %1823 = vmatpush2.msra.mxu0 0.0
        %1824 = vmatprep.subr.mxu0 0.0
        %1825 = vmatpush2.msra.mxu0 0.0
        %1826 = vmatprep.subr.mxu0 0.0
        %1827 = vmatpush2.msra.mxu0 0.0
        %1828 = vmatprep.subr.mxu0 0.0
        %1829 = vmatpush2.msra.mxu0 0.0
        %1830 = vmatprep.subr.mxu0 0.0
        %1831 = vmatpush2.msra.mxu0 0.0
        %1832 = vmatprep.subr.mxu0 0.0
        %1833 = vmatpush2.msra.mxu0 0.0
        %1834 = vmatprep.subr.mxu0 0.0
        %1835 = vmatpush2.msra.mxu0 0.0
        %1836 = vmatprep.subr.mxu0 0.0
        %1837 = vmatpush2.msra.mxu0 0.0
        %1838 = vmatprep.subr.mxu0 0.0
        %1839 = vmatpush2.msra.mxu0 0.0
        %1840 = vmatprep.subr.mxu0 0.0
        %1841 = vmatpush2.msra.mxu0 0.0
        %1842 = vmatprep.subr.mxu0 0.0
        %1843 = vmatpush2.msra.mxu0 0.0
        %1844 = vmatprep.subr.mxu0 0.0
        %1845 = vmatpush2.msra.mxu0 0.0
        %1846 = vmatprep.subr.mxu0 0.0
        %1847 = vmatpush2.msra.mxu0 0.0
        %1848 = vmatprep.mubr.f32.mxu0 0.0
        %1849 = vmatmul.mubr.f32.gmra.mxu0 %v1640
        %v1850 = vpop.f32.mrf.mxu0
        %v1851 = vadd.f32 %v1637, %v1850
        %v1852 = vpop.f32.mrf.mxu0
        %v1853 = vadd.f32 %v1637, %v1852
        %1854 = vdwg.mxu0
        %1855 = vmatprep.subr.mxu0 0.0
        %1856 = vmatpush1.msra.mxu0 0.0
        %1857 = vmatprep.subr.mxu0 0.0
        %1858 = vmatpush1.msra.mxu0 0.0
        %1859 = vmatprep.subr.mxu0 0.0
        %1860 = vmatpush1.msra.mxu0 0.0
        %1861 = vmatprep.subr.mxu0 0.0
        %1862 = vmatpush1.msra.mxu0 0.0
        %1863 = vmatprep.subr.mxu0 0.0
        %1864 = vmatpush1.msra.mxu0 0.0
        %1865 = vmatprep.subr.mxu0 0.0
        %1866 = vmatpush1.msra.mxu0 0.0
        %1867 = vmatprep.subr.mxu0 0.0
        %1868 = vmatpush1.msra.mxu0 0.0
        %1869 = vmatprep.subr.mxu0 0.0
        %1870 = vmatpush1.msra.mxu0 0.0
        %1871 = vmatprep.subr.mxu0 0.0
        %1872 = vmatpush1.msra.mxu0 0.0
        %1873 = vmatprep.subr.mxu0 0.0
        %1874 = vmatpush1.msra.mxu0 0.0
        %1875 = vmatprep.subr.mxu0 0.0
        %1876 = vmatpush1.msra.mxu0 0.0
        %1877 = vmatprep.subr.mxu0 0.0
        %1878 = vmatpush1.msra.mxu0 0.0
        %1879 = vmatprep.subr.mxu0 0.0
        %1880 = vmatpush1.msra.mxu0 0.0
        %1881 = vmatprep.subr.mxu0 0.0
        %1882 = vmatpush1.msra.mxu0 0.0
        %1883 = vmatprep.subr.mxu0 0.0
        %1884 = vmatpush1.msra.mxu0 0.0
        %1885 = vmatprep.subr.mxu0 %v1471
        %1886 = vmatpush1.msra.mxu0 %v1392
        %1887 = vmatprep.subr.mxu0 0.0
        %1888 = vmatpush2.msra.mxu0 0.0
        %1889 = vmatprep.subr.mxu0 0.0
        %1890 = vmatpush2.msra.mxu0 0.0
        %1891 = vmatprep.subr.mxu0 0.0
        %1892 = vmatpush2.msra.mxu0 0.0
        %1893 = vmatprep.subr.mxu0 0.0
        %1894 = vmatpush2.msra.mxu0 0.0
        %1895 = vmatprep.subr.mxu0 0.0
        %1896 = vmatpush2.msra.mxu0 0.0
        %1897 = vmatprep.subr.mxu0 0.0
        %1898 = vmatpush2.msra.mxu0 0.0
        %1899 = vmatprep.subr.mxu0 0.0
        %1900 = vmatpush2.msra.mxu0 0.0
        %1901 = vmatprep.subr.mxu0 0.0
        %1902 = vmatpush2.msra.mxu0 0.0
        %1903 = vmatprep.subr.mxu0 0.0
        %1904 = vmatpush2.msra.mxu0 0.0
        %1905 = vmatprep.subr.mxu0 0.0
        %1906 = vmatpush2.msra.mxu0 0.0
        %1907 = vmatprep.subr.mxu0 0.0
        %1908 = vmatpush2.msra.mxu0 0.0
        %1909 = vmatprep.subr.mxu0 0.0
        %1910 = vmatpush2.msra.mxu0 0.0
        %1911 = vmatprep.subr.mxu0 0.0
        %1912 = vmatpush2.msra.mxu0 0.0
        %1913 = vmatprep.subr.mxu0 0.0
        %1914 = vmatpush2.msra.mxu0 0.0
        %1915 = vmatprep.subr.mxu0 0.0
        %1916 = vmatpush2.msra.mxu0 0.0
        %1917 = vmatprep.subr.mxu0 0.0
        %1918 = vmatpush2.msra.mxu0 0.0
        %1919 = vmatprep.mubr.f32.mxu0 0.0
        %1920 = vmatmul.mubr.f32.gmra.mxu0 %v1640
        %v1921 = vpop.f32.mrf.mxu0
        %v1922 = vadd.f32 %v1637, %v1921
        %v1923 = vpop.f32.mrf.mxu0
        %v1924 = vadd.f32 %v1637, %v1923
        %1925 = vdwg.mxu0
        %1926 = vmatprep.subr.mxu0 0.0
        %1927 = vmatpush1.msra.mxu0 0.0
        %1928 = vmatprep.subr.mxu0 0.0
        %1929 = vmatpush1.msra.mxu0 0.0
        %1930 = vmatprep.subr.mxu0 0.0
        %1931 = vmatpush1.msra.mxu0 0.0
        %1932 = vmatprep.subr.mxu0 0.0
        %1933 = vmatpush1.msra.mxu0 0.0
        %1934 = vmatprep.subr.mxu0 0.0
        %1935 = vmatpush1.msra.mxu0 0.0
        %1936 = vmatprep.subr.mxu0 0.0
        %1937 = vmatpush1.msra.mxu0 0.0
        %1938 = vmatprep.subr.mxu0 0.0
        %1939 = vmatpush1.msra.mxu0 0.0
        %1940 = vmatprep.subr.mxu0 0.0
        %1941 = vmatpush1.msra.mxu0 0.0
        %1942 = vmatprep.subr.mxu0 0.0
        %1943 = vmatpush1.msra.mxu0 0.0
        %1944 = vmatprep.subr.mxu0 0.0
        %1945 = vmatpush1.msra.mxu0 0.0
        %1946 = vmatprep.subr.mxu0 0.0
        %1947 = vmatpush1.msra.mxu0 0.0
        %1948 = vmatprep.subr.mxu0 0.0
        %1949 = vmatpush1.msra.mxu0 0.0
        %1950 = vmatprep.subr.mxu0 0.0
        %1951 = vmatpush1.msra.mxu0 0.0
        %1952 = vmatprep.subr.mxu0 0.0
        %1953 = vmatpush1.msra.mxu0 0.0
        %1954 = vmatprep.subr.mxu0 0.0
        %1955 = vmatpush1.msra.mxu0 0.0
        %1956 = vmatprep.subr.mxu0 %v1629
        %1957 = vmatpush1.msra.mxu0 %v1550
        %1958 = vmatprep.subr.mxu0 0.0
        %1959 = vmatpush2.msra.mxu0 0.0
        %1960 = vmatprep.subr.mxu0 0.0
        %1961 = vmatpush2.msra.mxu0 0.0
        %1962 = vmatprep.subr.mxu0 0.0
        %1963 = vmatpush2.msra.mxu0 0.0
        %1964 = vmatprep.subr.mxu0 0.0
        %1965 = vmatpush2.msra.mxu0 0.0
        %1966 = vmatprep.subr.mxu0 0.0
        %1967 = vmatpush2.msra.mxu0 0.0
        %1968 = vmatprep.subr.mxu0 0.0
        %1969 = vmatpush2.msra.mxu0 0.0
        %1970 = vmatprep.subr.mxu0 0.0
        %1971 = vmatpush2.msra.mxu0 0.0
        %1972 = vmatprep.subr.mxu0 0.0
        %1973 = vmatpush2.msra.mxu0 0.0
        %1974 = vmatprep.subr.mxu0 0.0
        %1975 = vmatpush2.msra.mxu0 0.0
        %1976 = vmatprep.subr.mxu0 0.0
        %1977 = vmatpush2.msra.mxu0 0.0
        %1978 = vmatprep.subr.mxu0 0.0
        %1979 = vmatpush2.msra.mxu0 0.0
        %1980 = vmatprep.subr.mxu0 0.0
        %1981 = vmatpush2.msra.mxu0 0.0
        %1982 = vmatprep.subr.mxu0 0.0
        %1983 = vmatpush2.msra.mxu0 0.0
        %1984 = vmatprep.subr.mxu0 0.0
        %1985 = vmatpush2.msra.mxu0 0.0
        %1986 = vmatprep.subr.mxu0 0.0
        %1987 = vmatpush2.msra.mxu0 0.0
        %1988 = vmatprep.subr.mxu0 0.0
        %1989 = vmatpush2.msra.mxu0 0.0
        %1990 = vmatprep.mubr.f32.mxu0 0.0
        %1991 = vmatmul.mubr.f32.gmra.mxu0 %v1640
        %v1992 = vpop.f32.mrf.mxu0
        %v1993 = vadd.f32 %v1637, %v1992
        %v1994 = vpop.f32.mrf.mxu0
        %v1995 = vadd.f32 %v1637, %v1994
        %1996 = vdwg.mxu0
        %v1997 = vadd.f32 %v294, %v1709
        %v1998 = vadd.f32 %v305, %v1711
        %v1999 = vadd.f32 %v316, %v1780
        %v2000 = vadd.f32 %v327, %v1782
        %v2001 = vadd.f32 %v338, %v1851
        %v2002 = vadd.f32 %v349, %v1853
        %v2003 = vadd.f32 %v360, %v1922
        %v2004 = vadd.f32 %v371, %v1924
        %v2005 = vadd.f32 %v382, %v1993
        %v2006 = vadd.f32 %v393, %v1995
        %s2007 = scalar_lea.vmem [#allocation2], 48
        %v2008 = vld [vmem:[%s2007] sm:$0xff]
        %v2009 = vld [vmem:[%s2007 + $0x8] sm:$0xff]
        %s2010 = scalar_lea.vmem [#allocation5], 48
        %v2011 = vld [vmem:[%s2010] sm:$0xff]
        %v2012 = vld [vmem:[%s2010 + $0x8] sm:$0xff]
        %2014 = vset.pattern.permute.xlu0 0
        %2015 = vperm.xlu0 %2014, %v2011
        %v2016 = vpop.permute.xlu0 %2015
        %2019 = vset.pattern.permute.xlu0 0
        %2020 = vperm.xlu0 %2019, %v2012
        %v2021 = vpop.permute.xlu0 %2020
        %v2024 = vsel %vm415, %v2008, 0
        %v2027 = vsel %vm415, %v2009, 0
        %2029 = vmatprep.subr.mxu0 0.0
        %2030 = vmatpush1.msra.mxu0 0.0
        %2031 = vmatprep.subr.mxu0 0.0
        %2032 = vmatpush1.msra.mxu0 0.0
        %2033 = vmatprep.subr.mxu0 0.0
        %2034 = vmatpush1.msra.mxu0 0.0
        %2035 = vmatprep.subr.mxu0 0.0
        %2036 = vmatpush1.msra.mxu0 0.0
        %2037 = vmatprep.subr.mxu0 0.0
        %2038 = vmatpush1.msra.mxu0 0.0
        %2039 = vmatprep.subr.mxu0 0.0
        %2040 = vmatpush1.msra.mxu0 0.0
        %2041 = vmatprep.subr.mxu0 0.0
        %2042 = vmatpush1.msra.mxu0 0.0
        %2043 = vmatprep.subr.mxu0 0.0
        %2044 = vmatpush1.msra.mxu0 0.0
        %2045 = vmatprep.subr.mxu0 0.0
        %2046 = vmatpush1.msra.mxu0 0.0
        %2047 = vmatprep.subr.mxu0 0.0
        %2048 = vmatpush1.msra.mxu0 0.0
        %2049 = vmatprep.subr.mxu0 0.0
        %2050 = vmatpush1.msra.mxu0 0.0
        %2051 = vmatprep.subr.mxu0 0.0
        %2052 = vmatpush1.msra.mxu0 0.0
        %2053 = vmatprep.subr.mxu0 0.0
        %2054 = vmatpush1.msra.mxu0 0.0
        %2055 = vmatprep.subr.mxu0 0.0
        %2056 = vmatpush1.msra.mxu0 0.0
        %2057 = vmatprep.subr.mxu0 0.0
        %2058 = vmatpush1.msra.mxu0 0.0
        %2059 = vmatprep.subr.mxu0 %v1998
        %2060 = vmatpush1.msra.mxu0 %v1997
        %2061 = vmatprep.subr.mxu0 0.0
        %2062 = vmatpush2.msra.mxu0 0.0
        %2063 = vmatprep.subr.mxu0 0.0
        %2064 = vmatpush2.msra.mxu0 0.0
        %2065 = vmatprep.subr.mxu0 0.0
        %2066 = vmatpush2.msra.mxu0 0.0
        %2067 = vmatprep.subr.mxu0 0.0
        %2068 = vmatpush2.msra.mxu0 0.0
        %2069 = vmatprep.subr.mxu0 0.0
        %2070 = vmatpush2.msra.mxu0 0.0
        %2071 = vmatprep.subr.mxu0 0.0
        %2072 = vmatpush2.msra.mxu0 0.0
        %2073 = vmatprep.subr.mxu0 0.0
        %2074 = vmatpush2.msra.mxu0 0.0
        %2075 = vmatprep.subr.mxu0 0.0
        %2076 = vmatpush2.msra.mxu0 0.0
        %2077 = vmatprep.subr.mxu0 0.0
        %2078 = vmatpush2.msra.mxu0 0.0
        %2079 = vmatprep.subr.mxu0 0.0
        %2080 = vmatpush2.msra.mxu0 0.0
        %2081 = vmatprep.subr.mxu0 0.0
        %2082 = vmatpush2.msra.mxu0 0.0
        %2083 = vmatprep.subr.mxu0 0.0
        %2084 = vmatpush2.msra.mxu0 0.0
        %2085 = vmatprep.subr.mxu0 0.0
        %2086 = vmatpush2.msra.mxu0 0.0
        %2087 = vmatprep.subr.mxu0 0.0
        %2088 = vmatpush2.msra.mxu0 0.0
        %2089 = vmatprep.subr.mxu0 0.0
        %2090 = vmatpush2.msra.mxu0 0.0
        %2091 = vmatprep.subr.mxu0 0.0
        %2092 = vmatpush2.msra.mxu0 0.0
        %2093 = vmatprep.mubr.f32.mxu0 0.0
        %2094 = vmatmul.mubr.f32.gmra.mxu0 %v2024
        %v2095 = vpop.f32.mrf.mxu0
        %v2096 = vadd.f32 %v2016, %v2095
        %v2097 = vpop.f32.mrf.mxu0
        %v2098 = vadd.f32 %v2016, %v2097
        %2099 = vmatprep.mubr.f32.mxu0 0.0
        %2100 = vmatmul.mubr.f32.gmra.mxu0 %v2027
        %v2101 = vpop.f32.mrf.mxu0
        %v2102 = vadd.f32 %v2021, %v2101
        %v2103 = vpop.f32.mrf.mxu0
        %v2104 = vadd.f32 %v2021, %v2103
        %2105 = vdwg.mxu0
        %2106 = vmatprep.subr.mxu0 0.0
        %2107 = vmatpush1.msra.mxu0 0.0
        %2108 = vmatprep.subr.mxu0 0.0
        %2109 = vmatpush1.msra.mxu0 0.0
        %2110 = vmatprep.subr.mxu0 0.0
        %2111 = vmatpush1.msra.mxu0 0.0
        %2112 = vmatprep.subr.mxu0 0.0
        %2113 = vmatpush1.msra.mxu0 0.0
        %2114 = vmatprep.subr.mxu0 0.0
        %2115 = vmatpush1.msra.mxu0 0.0
        %2116 = vmatprep.subr.mxu0 0.0
        %2117 = vmatpush1.msra.mxu0 0.0
        %2118 = vmatprep.subr.mxu0 0.0
        %2119 = vmatpush1.msra.mxu0 0.0
        %2120 = vmatprep.subr.mxu0 0.0
        %2121 = vmatpush1.msra.mxu0 0.0
        %2122 = vmatprep.subr.mxu0 0.0
        %2123 = vmatpush1.msra.mxu0 0.0
        %2124 = vmatprep.subr.mxu0 0.0
        %2125 = vmatpush1.msra.mxu0 0.0
        %2126 = vmatprep.subr.mxu0 0.0
        %2127 = vmatpush1.msra.mxu0 0.0
        %2128 = vmatprep.subr.mxu0 0.0
        %2129 = vmatpush1.msra.mxu0 0.0
        %2130 = vmatprep.subr.mxu0 0.0
        %2131 = vmatpush1.msra.mxu0 0.0
        %2132 = vmatprep.subr.mxu0 0.0
        %2133 = vmatpush1.msra.mxu0 0.0
        %2134 = vmatprep.subr.mxu0 0.0
        %2135 = vmatpush1.msra.mxu0 0.0
        %2136 = vmatprep.subr.mxu0 %v2000
        %2137 = vmatpush1.msra.mxu0 %v1999
        %2138 = vmatprep.subr.mxu0 0.0
        %2139 = vmatpush2.msra.mxu0 0.0
        %2140 = vmatprep.subr.mxu0 0.0
        %2141 = vmatpush2.msra.mxu0 0.0
        %2142 = vmatprep.subr.mxu0 0.0
        %2143 = vmatpush2.msra.mxu0 0.0
        %2144 = vmatprep.subr.mxu0 0.0
        %2145 = vmatpush2.msra.mxu0 0.0
        %2146 = vmatprep.subr.mxu0 0.0
        %2147 = vmatpush2.msra.mxu0 0.0
        %2148 = vmatprep.subr.mxu0 0.0
        %2149 = vmatpush2.msra.mxu0 0.0
        %2150 = vmatprep.subr.mxu0 0.0
        %2151 = vmatpush2.msra.mxu0 0.0
        %2152 = vmatprep.subr.mxu0 0.0
        %2153 = vmatpush2.msra.mxu0 0.0
        %2154 = vmatprep.subr.mxu0 0.0
        %2155 = vmatpush2.msra.mxu0 0.0
        %2156 = vmatprep.subr.mxu0 0.0
        %2157 = vmatpush2.msra.mxu0 0.0
        %2158 = vmatprep.subr.mxu0 0.0
        %2159 = vmatpush2.msra.mxu0 0.0
        %2160 = vmatprep.subr.mxu0 0.0
        %2161 = vmatpush2.msra.mxu0 0.0
        %2162 = vmatprep.subr.mxu0 0.0
        %2163 = vmatpush2.msra.mxu0 0.0
        %2164 = vmatprep.subr.mxu0 0.0
        %2165 = vmatpush2.msra.mxu0 0.0
        %2166 = vmatprep.subr.mxu0 0.0
        %2167 = vmatpush2.msra.mxu0 0.0
        %2168 = vmatprep.subr.mxu0 0.0
        %2169 = vmatpush2.msra.mxu0 0.0
        %2170 = vmatprep.mubr.f32.mxu0 0.0
        %2171 = vmatmul.mubr.f32.gmra.mxu0 %v2024
        %v2172 = vpop.f32.mrf.mxu0
        %v2173 = vadd.f32 %v2016, %v2172
        %v2174 = vpop.f32.mrf.mxu0
        %v2175 = vadd.f32 %v2016, %v2174
        %2176 = vmatprep.mubr.f32.mxu0 0.0
        %2177 = vmatmul.mubr.f32.gmra.mxu0 %v2027
        %v2178 = vpop.f32.mrf.mxu0
        %v2179 = vadd.f32 %v2021, %v2178
        %v2180 = vpop.f32.mrf.mxu0
        %v2181 = vadd.f32 %v2021, %v2180
        %2182 = vdwg.mxu0
        %2183 = vmatprep.subr.mxu0 0.0
        %2184 = vmatpush1.msra.mxu0 0.0
        %2185 = vmatprep.subr.mxu0 0.0
        %2186 = vmatpush1.msra.mxu0 0.0
        %2187 = vmatprep.subr.mxu0 0.0
        %2188 = vmatpush1.msra.mxu0 0.0
        %2189 = vmatprep.subr.mxu0 0.0
        %2190 = vmatpush1.msra.mxu0 0.0
        %2191 = vmatprep.subr.mxu0 0.0
        %2192 = vmatpush1.msra.mxu0 0.0
        %2193 = vmatprep.subr.mxu0 0.0
        %2194 = vmatpush1.msra.mxu0 0.0
        %2195 = vmatprep.subr.mxu0 0.0
        %2196 = vmatpush1.msra.mxu0 0.0
        %2197 = vmatprep.subr.mxu0 0.0
        %2198 = vmatpush1.msra.mxu0 0.0
        %2199 = vmatprep.subr.mxu0 0.0
        %2200 = vmatpush1.msra.mxu0 0.0
        %2201 = vmatprep.subr.mxu0 0.0
        %2202 = vmatpush1.msra.mxu0 0.0
        %2203 = vmatprep.subr.mxu0 0.0
        %2204 = vmatpush1.msra.mxu0 0.0
        %2205 = vmatprep.subr.mxu0 0.0
        %2206 = vmatpush1.msra.mxu0 0.0
        %2207 = vmatprep.subr.mxu0 0.0
        %2208 = vmatpush1.msra.mxu0 0.0
        %2209 = vmatprep.subr.mxu0 0.0
        %2210 = vmatpush1.msra.mxu0 0.0
        %2211 = vmatprep.subr.mxu0 0.0
        %2212 = vmatpush1.msra.mxu0 0.0
        %2213 = vmatprep.subr.mxu0 %v2002
        %2214 = vmatpush1.msra.mxu0 %v2001
        %2215 = vmatprep.subr.mxu0 0.0
        %2216 = vmatpush2.msra.mxu0 0.0
        %2217 = vmatprep.subr.mxu0 0.0
        %2218 = vmatpush2.msra.mxu0 0.0
        %2219 = vmatprep.subr.mxu0 0.0
        %2220 = vmatpush2.msra.mxu0 0.0
        %2221 = vmatprep.subr.mxu0 0.0
        %2222 = vmatpush2.msra.mxu0 0.0
        %2223 = vmatprep.subr.mxu0 0.0
        %2224 = vmatpush2.msra.mxu0 0.0
        %2225 = vmatprep.subr.mxu0 0.0
        %2226 = vmatpush2.msra.mxu0 0.0
        %2227 = vmatprep.subr.mxu0 0.0
        %2228 = vmatpush2.msra.mxu0 0.0
        %2229 = vmatprep.subr.mxu0 0.0
        %2230 = vmatpush2.msra.mxu0 0.0
        %2231 = vmatprep.subr.mxu0 0.0
        %2232 = vmatpush2.msra.mxu0 0.0
        %2233 = vmatprep.subr.mxu0 0.0
        %2234 = vmatpush2.msra.mxu0 0.0
        %2235 = vmatprep.subr.mxu0 0.0
        %2236 = vmatpush2.msra.mxu0 0.0
        %2237 = vmatprep.subr.mxu0 0.0
        %2238 = vmatpush2.msra.mxu0 0.0
        %2239 = vmatprep.subr.mxu0 0.0
        %2240 = vmatpush2.msra.mxu0 0.0
        %2241 = vmatprep.subr.mxu0 0.0
        %2242 = vmatpush2.msra.mxu0 0.0
        %2243 = vmatprep.subr.mxu0 0.0
        %2244 = vmatpush2.msra.mxu0 0.0
        %2245 = vmatprep.subr.mxu0 0.0
        %2246 = vmatpush2.msra.mxu0 0.0
        %2247 = vmatprep.mubr.f32.mxu0 0.0
        %2248 = vmatmul.mubr.f32.gmra.mxu0 %v2024
        %v2249 = vpop.f32.mrf.mxu0
        %v2250 = vadd.f32 %v2016, %v2249
        %v2251 = vpop.f32.mrf.mxu0
        %v2252 = vadd.f32 %v2016, %v2251
        %2253 = vmatprep.mubr.f32.mxu0 0.0
        %2254 = vmatmul.mubr.f32.gmra.mxu0 %v2027
        %v2255 = vpop.f32.mrf.mxu0
        %v2256 = vadd.f32 %v2021, %v2255
        %v2257 = vpop.f32.mrf.mxu0
        %v2258 = vadd.f32 %v2021, %v2257
        %2259 = vdwg.mxu0
        %2260 = vmatprep.subr.mxu0 0.0
        %2261 = vmatpush1.msra.mxu0 0.0
        %2262 = vmatprep.subr.mxu0 0.0
        %2263 = vmatpush1.msra.mxu0 0.0
        %2264 = vmatprep.subr.mxu0 0.0
        %2265 = vmatpush1.msra.mxu0 0.0
        %2266 = vmatprep.subr.mxu0 0.0
        %2267 = vmatpush1.msra.mxu0 0.0
        %2268 = vmatprep.subr.mxu0 0.0
        %2269 = vmatpush1.msra.mxu0 0.0
        %2270 = vmatprep.subr.mxu0 0.0
        %2271 = vmatpush1.msra.mxu0 0.0
        %2272 = vmatprep.subr.mxu0 0.0
        %2273 = vmatpush1.msra.mxu0 0.0
        %2274 = vmatprep.subr.mxu0 0.0
        %2275 = vmatpush1.msra.mxu0 0.0
        %2276 = vmatprep.subr.mxu0 0.0
        %2277 = vmatpush1.msra.mxu0 0.0
        %2278 = vmatprep.subr.mxu0 0.0
        %2279 = vmatpush1.msra.mxu0 0.0
        %2280 = vmatprep.subr.mxu0 0.0
        %2281 = vmatpush1.msra.mxu0 0.0
        %2282 = vmatprep.subr.mxu0 0.0
        %2283 = vmatpush1.msra.mxu0 0.0
        %2284 = vmatprep.subr.mxu0 0.0
        %2285 = vmatpush1.msra.mxu0 0.0
        %2286 = vmatprep.subr.mxu0 0.0
        %2287 = vmatpush1.msra.mxu0 0.0
        %2288 = vmatprep.subr.mxu0 0.0
        %2289 = vmatpush1.msra.mxu0 0.0
        %2290 = vmatprep.subr.mxu0 %v2004
        %2291 = vmatpush1.msra.mxu0 %v2003
        %2292 = vmatprep.subr.mxu0 0.0
        %2293 = vmatpush2.msra.mxu0 0.0
        %2294 = vmatprep.subr.mxu0 0.0
        %2295 = vmatpush2.msra.mxu0 0.0
        %2296 = vmatprep.subr.mxu0 0.0
        %2297 = vmatpush2.msra.mxu0 0.0
        %2298 = vmatprep.subr.mxu0 0.0
        %2299 = vmatpush2.msra.mxu0 0.0
        %2300 = vmatprep.subr.mxu0 0.0
        %2301 = vmatpush2.msra.mxu0 0.0
        %2302 = vmatprep.subr.mxu0 0.0
        %2303 = vmatpush2.msra.mxu0 0.0
        %2304 = vmatprep.subr.mxu0 0.0
        %2305 = vmatpush2.msra.mxu0 0.0
        %2306 = vmatprep.subr.mxu0 0.0
        %2307 = vmatpush2.msra.mxu0 0.0
        %2308 = vmatprep.subr.mxu0 0.0
        %2309 = vmatpush2.msra.mxu0 0.0
        %2310 = vmatprep.subr.mxu0 0.0
        %2311 = vmatpush2.msra.mxu0 0.0
        %2312 = vmatprep.subr.mxu0 0.0
        %2313 = vmatpush2.msra.mxu0 0.0
        %2314 = vmatprep.subr.mxu0 0.0
        %2315 = vmatpush2.msra.mxu0 0.0
        %2316 = vmatprep.subr.mxu0 0.0
        %2317 = vmatpush2.msra.mxu0 0.0
        %2318 = vmatprep.subr.mxu0 0.0
        %2319 = vmatpush2.msra.mxu0 0.0
        %2320 = vmatprep.subr.mxu0 0.0
        %2321 = vmatpush2.msra.mxu0 0.0
        %2322 = vmatprep.subr.mxu0 0.0
        %2323 = vmatpush2.msra.mxu0 0.0
        %2324 = vmatprep.mubr.f32.mxu0 0.0
        %2325 = vmatmul.mubr.f32.gmra.mxu0 %v2024
        %v2326 = vpop.f32.mrf.mxu0
        %v2327 = vadd.f32 %v2016, %v2326
        %v2328 = vpop.f32.mrf.mxu0
        %v2329 = vadd.f32 %v2016, %v2328
        %2330 = vmatprep.mubr.f32.mxu0 0.0
        %2331 = vmatmul.mubr.f32.gmra.mxu0 %v2027
        %v2332 = vpop.f32.mrf.mxu0
        %v2333 = vadd.f32 %v2021, %v2332
        %v2334 = vpop.f32.mrf.mxu0
        %v2335 = vadd.f32 %v2021, %v2334
        %2336 = vdwg.mxu0
        %2337 = vmatprep.subr.mxu0 0.0
        %2338 = vmatpush1.msra.mxu0 0.0
        %2339 = vmatprep.subr.mxu0 0.0
        %2340 = vmatpush1.msra.mxu0 0.0
        %2341 = vmatprep.subr.mxu0 0.0
        %2342 = vmatpush1.msra.mxu0 0.0
        %2343 = vmatprep.subr.mxu0 0.0
        %2344 = vmatpush1.msra.mxu0 0.0
        %2345 = vmatprep.subr.mxu0 0.0
        %2346 = vmatpush1.msra.mxu0 0.0
        %2347 = vmatprep.subr.mxu0 0.0
        %2348 = vmatpush1.msra.mxu0 0.0
        %2349 = vmatprep.subr.mxu0 0.0
        %2350 = vmatpush1.msra.mxu0 0.0
        %2351 = vmatprep.subr.mxu0 0.0
        %2352 = vmatpush1.msra.mxu0 0.0
        %2353 = vmatprep.subr.mxu0 0.0
        %2354 = vmatpush1.msra.mxu0 0.0
        %2355 = vmatprep.subr.mxu0 0.0
        %2356 = vmatpush1.msra.mxu0 0.0
        %2357 = vmatprep.subr.mxu0 0.0
        %2358 = vmatpush1.msra.mxu0 0.0
        %2359 = vmatprep.subr.mxu0 0.0
        %2360 = vmatpush1.msra.mxu0 0.0
        %2361 = vmatprep.subr.mxu0 0.0
        %2362 = vmatpush1.msra.mxu0 0.0
        %2363 = vmatprep.subr.mxu0 0.0
        %2364 = vmatpush1.msra.mxu0 0.0
        %2365 = vmatprep.subr.mxu0 0.0
        %2366 = vmatpush1.msra.mxu0 0.0
        %2367 = vmatprep.subr.mxu0 %v2006
        %2368 = vmatpush1.msra.mxu0 %v2005
        %2369 = vmatprep.subr.mxu0 0.0
        %2370 = vmatpush2.msra.mxu0 0.0
        %2371 = vmatprep.subr.mxu0 0.0
        %2372 = vmatpush2.msra.mxu0 0.0
        %2373 = vmatprep.subr.mxu0 0.0
        %2374 = vmatpush2.msra.mxu0 0.0
        %2375 = vmatprep.subr.mxu0 0.0
        %2376 = vmatpush2.msra.mxu0 0.0
        %2377 = vmatprep.subr.mxu0 0.0
        %2378 = vmatpush2.msra.mxu0 0.0
        %2379 = vmatprep.subr.mxu0 0.0
        %2380 = vmatpush2.msra.mxu0 0.0
        %2381 = vmatprep.subr.mxu0 0.0
        %2382 = vmatpush2.msra.mxu0 0.0
        %2383 = vmatprep.subr.mxu0 0.0
        %2384 = vmatpush2.msra.mxu0 0.0
        %2385 = vmatprep.subr.mxu0 0.0
        %2386 = vmatpush2.msra.mxu0 0.0
        %2387 = vmatprep.subr.mxu0 0.0
        %2388 = vmatpush2.msra.mxu0 0.0
        %2389 = vmatprep.subr.mxu0 0.0
        %2390 = vmatpush2.msra.mxu0 0.0
        %2391 = vmatprep.subr.mxu0 0.0
        %2392 = vmatpush2.msra.mxu0 0.0
        %2393 = vmatprep.subr.mxu0 0.0
        %2394 = vmatpush2.msra.mxu0 0.0
        %2395 = vmatprep.subr.mxu0 0.0
        %2396 = vmatpush2.msra.mxu0 0.0
        %2397 = vmatprep.subr.mxu0 0.0
        %2398 = vmatpush2.msra.mxu0 0.0
        %2399 = vmatprep.subr.mxu0 0.0
        %2400 = vmatpush2.msra.mxu0 0.0
        %2401 = vmatprep.mubr.f32.mxu0 0.0
        %2402 = vmatmul.mubr.f32.gmra.mxu0 %v2024
        %v2403 = vpop.f32.mrf.mxu0
        %v2404 = vadd.f32 %v2016, %v2403
        %v2405 = vpop.f32.mrf.mxu0
        %v2406 = vadd.f32 %v2016, %v2405
        %2407 = vmatprep.mubr.f32.mxu0 0.0
        %2408 = vmatmul.mubr.f32.gmra.mxu0 %v2027
        %v2409 = vpop.f32.mrf.mxu0
        %v2410 = vadd.f32 %v2021, %v2409
        %v2411 = vpop.f32.mrf.mxu0
        %v2412 = vadd.f32 %v2021, %v2411
        %2413 = vdwg.mxu0
        %s2414 = scalar_lea.vmem [#allocation2], 72
        %v2415 = vld [vmem:[%s2414] sm:$0xff]
        %s2416 = scalar_lea.vmem [#allocation5], 72
        %v2417 = vld [vmem:[%s2416] sm:$0xff]
        %2419 = vset.pattern.permute.xlu0 0
        %2420 = vperm.xlu0 %2419, %v2417
        %v2421 = vpop.permute.xlu0 %2420
        %vm2423 = vcmask 130048
        %v2425 = vsel %vm2423, %v2415, 0
        %2427 = vmatprep.subr.mxu0 0.0
        %2428 = vmatpush1.msra.mxu0 0.0
        %2429 = vmatprep.subr.mxu0 0.0
        %2430 = vmatpush1.msra.mxu0 0.0
        %2431 = vmatprep.subr.mxu0 0.0
        %2432 = vmatpush1.msra.mxu0 0.0
        %2433 = vmatprep.subr.mxu0 0.0
        %2434 = vmatpush1.msra.mxu0 0.0
        %2435 = vmatprep.subr.mxu0 0.0
        %2436 = vmatpush1.msra.mxu0 0.0
        %2437 = vmatprep.subr.mxu0 0.0
        %2438 = vmatpush1.msra.mxu0 0.0
        %2439 = vmatprep.subr.mxu0 0.0
        %2440 = vmatpush1.msra.mxu0 0.0
        %2441 = vmatprep.subr.mxu0 0.0
        %2442 = vmatpush1.msra.mxu0 0.0
        %2443 = vmatprep.subr.mxu0 0.0
        %2444 = vmatpush1.msra.mxu0 0.0
        %2445 = vmatprep.subr.mxu0 0.0
        %2446 = vmatpush1.msra.mxu0 0.0
        %2447 = vmatprep.subr.mxu0 0.0
        %2448 = vmatpush1.msra.mxu0 0.0
        %2449 = vmatprep.subr.mxu0 0.0
        %2450 = vmatpush1.msra.mxu0 0.0
        %2451 = vmatprep.subr.mxu0 0.0
        %2452 = vmatpush1.msra.mxu0 0.0
        %2453 = vmatprep.subr.mxu0 0.0
        %2454 = vmatpush1.msra.mxu0 0.0
        %2455 = vmatprep.subr.mxu0 %v2104
        %2456 = vmatpush1.msra.mxu0 %v2102
        %2457 = vmatprep.subr.mxu0 %v2098
        %2458 = vmatpush1.msra.mxu0 %v2096
        %2459 = vmatprep.subr.mxu0 0.0
        %2460 = vmatpush2.msra.mxu0 0.0
        %2461 = vmatprep.subr.mxu0 0.0
        %2462 = vmatpush2.msra.mxu0 0.0
        %2463 = vmatprep.subr.mxu0 0.0
        %2464 = vmatpush2.msra.mxu0 0.0
        %2465 = vmatprep.subr.mxu0 0.0
        %2466 = vmatpush2.msra.mxu0 0.0
        %2467 = vmatprep.subr.mxu0 0.0
        %2468 = vmatpush2.msra.mxu0 0.0
        %2469 = vmatprep.subr.mxu0 0.0
        %2470 = vmatpush2.msra.mxu0 0.0
        %2471 = vmatprep.subr.mxu0 0.0
        %2472 = vmatpush2.msra.mxu0 0.0
        %2473 = vmatprep.subr.mxu0 0.0
        %2474 = vmatpush2.msra.mxu0 0.0
        %2475 = vmatprep.subr.mxu0 0.0
        %2476 = vmatpush2.msra.mxu0 0.0
        %2477 = vmatprep.subr.mxu0 0.0
        %2478 = vmatpush2.msra.mxu0 0.0
        %2479 = vmatprep.subr.mxu0 0.0
        %2480 = vmatpush2.msra.mxu0 0.0
        %2481 = vmatprep.subr.mxu0 0.0
        %2482 = vmatpush2.msra.mxu0 0.0
        %2483 = vmatprep.subr.mxu0 0.0
        %2484 = vmatpush2.msra.mxu0 0.0
        %2485 = vmatprep.subr.mxu0 0.0
        %2486 = vmatpush2.msra.mxu0 0.0
        %2487 = vmatprep.subr.mxu0 0.0
        %2488 = vmatpush2.msra.mxu0 0.0
        %2489 = vmatprep.subr.mxu0 0.0
        %2490 = vmatpush2.msra.mxu0 0.0
        %2491 = vmatprep.mubr.f32.mxu0 0.0
        %2492 = vmatmul.mubr.f32.gmra.mxu0 %v2425
        %v2493 = vpop.f32.mrf.mxu0
        %v2494 = vadd.f32 %v2421, %v2493
        %v2495 = vpop.f32.mrf.mxu0
        %v2496 = vadd.f32 %v2421, %v2495
        %2497 = vdwg.mxu0
        %2498 = vmatprep.subr.mxu0 0.0
        %2499 = vmatpush1.msra.mxu0 0.0
        %2500 = vmatprep.subr.mxu0 0.0
        %2501 = vmatpush1.msra.mxu0 0.0
        %2502 = vmatprep.subr.mxu0 0.0
        %2503 = vmatpush1.msra.mxu0 0.0
        %2504 = vmatprep.subr.mxu0 0.0
        %2505 = vmatpush1.msra.mxu0 0.0
        %2506 = vmatprep.subr.mxu0 0.0
        %2507 = vmatpush1.msra.mxu0 0.0
        %2508 = vmatprep.subr.mxu0 0.0
        %2509 = vmatpush1.msra.mxu0 0.0
        %2510 = vmatprep.subr.mxu0 0.0
        %2511 = vmatpush1.msra.mxu0 0.0
        %2512 = vmatprep.subr.mxu0 0.0
        %2513 = vmatpush1.msra.mxu0 0.0
        %2514 = vmatprep.subr.mxu0 0.0
        %2515 = vmatpush1.msra.mxu0 0.0
        %2516 = vmatprep.subr.mxu0 0.0
        %2517 = vmatpush1.msra.mxu0 0.0
        %2518 = vmatprep.subr.mxu0 0.0
        %2519 = vmatpush1.msra.mxu0 0.0
        %2520 = vmatprep.subr.mxu0 0.0
        %2521 = vmatpush1.msra.mxu0 0.0
        %2522 = vmatprep.subr.mxu0 0.0
        %2523 = vmatpush1.msra.mxu0 0.0
        %2524 = vmatprep.subr.mxu0 0.0
        %2525 = vmatpush1.msra.mxu0 0.0
        %2526 = vmatprep.subr.mxu0 %v2181
        %2527 = vmatpush1.msra.mxu0 %v2179
        %2528 = vmatprep.subr.mxu0 %v2175
        %2529 = vmatpush1.msra.mxu0 %v2173
        %2530 = vmatprep.subr.mxu0 0.0
        %2531 = vmatpush2.msra.mxu0 0.0
        %2532 = vmatprep.subr.mxu0 0.0
        %2533 = vmatpush2.msra.mxu0 0.0
        %2534 = vmatprep.subr.mxu0 0.0
        %2535 = vmatpush2.msra.mxu0 0.0
        %2536 = vmatprep.subr.mxu0 0.0
        %2537 = vmatpush2.msra.mxu0 0.0
        %2538 = vmatprep.subr.mxu0 0.0
        %2539 = vmatpush2.msra.mxu0 0.0
        %2540 = vmatprep.subr.mxu0 0.0
        %2541 = vmatpush2.msra.mxu0 0.0
        %2542 = vmatprep.subr.mxu0 0.0
        %2543 = vmatpush2.msra.mxu0 0.0
        %2544 = vmatprep.subr.mxu0 0.0
        %2545 = vmatpush2.msra.mxu0 0.0
        %2546 = vmatprep.subr.mxu0 0.0
        %2547 = vmatpush2.msra.mxu0 0.0
        %2548 = vmatprep.subr.mxu0 0.0
        %2549 = vmatpush2.msra.mxu0 0.0
        %2550 = vmatprep.subr.mxu0 0.0
        %2551 = vmatpush2.msra.mxu0 0.0
        %2552 = vmatprep.subr.mxu0 0.0
        %2553 = vmatpush2.msra.mxu0 0.0
        %2554 = vmatprep.subr.mxu0 0.0
        %2555 = vmatpush2.msra.mxu0 0.0
        %2556 = vmatprep.subr.mxu0 0.0
        %2557 = vmatpush2.msra.mxu0 0.0
        %2558 = vmatprep.subr.mxu0 0.0
        %2559 = vmatpush2.msra.mxu0 0.0
        %2560 = vmatprep.subr.mxu0 0.0
        %2561 = vmatpush2.msra.mxu0 0.0
        %2562 = vmatprep.mubr.f32.mxu0 0.0
        %2563 = vmatmul.mubr.f32.gmra.mxu0 %v2425
        %v2564 = vpop.f32.mrf.mxu0
        %v2565 = vadd.f32 %v2421, %v2564
        %v2566 = vpop.f32.mrf.mxu0
        %v2567 = vadd.f32 %v2421, %v2566
        %2568 = vdwg.mxu0
        %2569 = vmatprep.subr.mxu0 0.0
        %2570 = vmatpush1.msra.mxu0 0.0
        %2571 = vmatprep.subr.mxu0 0.0
        %2572 = vmatpush1.msra.mxu0 0.0
        %2573 = vmatprep.subr.mxu0 0.0
        %2574 = vmatpush1.msra.mxu0 0.0
        %2575 = vmatprep.subr.mxu0 0.0
        %2576 = vmatpush1.msra.mxu0 0.0
        %2577 = vmatprep.subr.mxu0 0.0
        %2578 = vmatpush1.msra.mxu0 0.0
        %2579 = vmatprep.subr.mxu0 0.0
        %2580 = vmatpush1.msra.mxu0 0.0
        %2581 = vmatprep.subr.mxu0 0.0
        %2582 = vmatpush1.msra.mxu0 0.0
        %2583 = vmatprep.subr.mxu0 0.0
        %2584 = vmatpush1.msra.mxu0 0.0
        %2585 = vmatprep.subr.mxu0 0.0
        %2586 = vmatpush1.msra.mxu0 0.0
        %2587 = vmatprep.subr.mxu0 0.0
        %2588 = vmatpush1.msra.mxu0 0.0
        %2589 = vmatprep.subr.mxu0 0.0
        %2590 = vmatpush1.msra.mxu0 0.0
        %2591 = vmatprep.subr.mxu0 0.0
        %2592 = vmatpush1.msra.mxu0 0.0
        %2593 = vmatprep.subr.mxu0 0.0
        %2594 = vmatpush1.msra.mxu0 0.0
        %2595 = vmatprep.subr.mxu0 0.0
        %2596 = vmatpush1.msra.mxu0 0.0
        %2597 = vmatprep.subr.mxu0 %v2258
        %2598 = vmatpush1.msra.mxu0 %v2256
        %2599 = vmatprep.subr.mxu0 %v2252
        %2600 = vmatpush1.msra.mxu0 %v2250
        %2601 = vmatprep.subr.mxu0 0.0
        %2602 = vmatpush2.msra.mxu0 0.0
        %2603 = vmatprep.subr.mxu0 0.0
        %2604 = vmatpush2.msra.mxu0 0.0
        %2605 = vmatprep.subr.mxu0 0.0
        %2606 = vmatpush2.msra.mxu0 0.0
        %2607 = vmatprep.subr.mxu0 0.0
        %2608 = vmatpush2.msra.mxu0 0.0
        %2609 = vmatprep.subr.mxu0 0.0
        %2610 = vmatpush2.msra.mxu0 0.0
        %2611 = vmatprep.subr.mxu0 0.0
        %2612 = vmatpush2.msra.mxu0 0.0
        %2613 = vmatprep.subr.mxu0 0.0
        %2614 = vmatpush2.msra.mxu0 0.0
        %2615 = vmatprep.subr.mxu0 0.0
        %2616 = vmatpush2.msra.mxu0 0.0
        %2617 = vmatprep.subr.mxu0 0.0
        %2618 = vmatpush2.msra.mxu0 0.0
        %2619 = vmatprep.subr.mxu0 0.0
        %2620 = vmatpush2.msra.mxu0 0.0
        %2621 = vmatprep.subr.mxu0 0.0
        %2622 = vmatpush2.msra.mxu0 0.0
        %2623 = vmatprep.subr.mxu0 0.0
        %2624 = vmatpush2.msra.mxu0 0.0
        %2625 = vmatprep.subr.mxu0 0.0
        %2626 = vmatpush2.msra.mxu0 0.0
        %2627 = vmatprep.subr.mxu0 0.0
        %2628 = vmatpush2.msra.mxu0 0.0
        %2629 = vmatprep.subr.mxu0 0.0
        %2630 = vmatpush2.msra.mxu0 0.0
        %2631 = vmatprep.subr.mxu0 0.0
        %2632 = vmatpush2.msra.mxu0 0.0
        %2633 = vmatprep.mubr.f32.mxu0 0.0
        %2634 = vmatmul.mubr.f32.gmra.mxu0 %v2425
        %v2635 = vpop.f32.mrf.mxu0
        %v2636 = vadd.f32 %v2421, %v2635
        %v2637 = vpop.f32.mrf.mxu0
        %v2638 = vadd.f32 %v2421, %v2637
        %2639 = vdwg.mxu0
        %2640 = vmatprep.subr.mxu0 0.0
        %2641 = vmatpush1.msra.mxu0 0.0
        %2642 = vmatprep.subr.mxu0 0.0
        %2643 = vmatpush1.msra.mxu0 0.0
        %2644 = vmatprep.subr.mxu0 0.0
        %2645 = vmatpush1.msra.mxu0 0.0
        %2646 = vmatprep.subr.mxu0 0.0
        %2647 = vmatpush1.msra.mxu0 0.0
        %2648 = vmatprep.subr.mxu0 0.0
        %2649 = vmatpush1.msra.mxu0 0.0
        %2650 = vmatprep.subr.mxu0 0.0
        %2651 = vmatpush1.msra.mxu0 0.0
        %2652 = vmatprep.subr.mxu0 0.0
        %2653 = vmatpush1.msra.mxu0 0.0
        %2654 = vmatprep.subr.mxu0 0.0
        %2655 = vmatpush1.msra.mxu0 0.0
        %2656 = vmatprep.subr.mxu0 0.0
        %2657 = vmatpush1.msra.mxu0 0.0
        %2658 = vmatprep.subr.mxu0 0.0
        %2659 = vmatpush1.msra.mxu0 0.0
        %2660 = vmatprep.subr.mxu0 0.0
        %2661 = vmatpush1.msra.mxu0 0.0
        %2662 = vmatprep.subr.mxu0 0.0
        %2663 = vmatpush1.msra.mxu0 0.0
        %2664 = vmatprep.subr.mxu0 0.0
        %2665 = vmatpush1.msra.mxu0 0.0
        %2666 = vmatprep.subr.mxu0 0.0
        %2667 = vmatpush1.msra.mxu0 0.0
        %2668 = vmatprep.subr.mxu0 %v2335
        %2669 = vmatpush1.msra.mxu0 %v2333
        %2670 = vmatprep.subr.mxu0 %v2329
        %2671 = vmatpush1.msra.mxu0 %v2327
        %2672 = vmatprep.subr.mxu0 0.0
        %2673 = vmatpush2.msra.mxu0 0.0
        %2674 = vmatprep.subr.mxu0 0.0
        %2675 = vmatpush2.msra.mxu0 0.0
        %2676 = vmatprep.subr.mxu0 0.0
        %2677 = vmatpush2.msra.mxu0 0.0
        %2678 = vmatprep.subr.mxu0 0.0
        %2679 = vmatpush2.msra.mxu0 0.0
        %2680 = vmatprep.subr.mxu0 0.0
        %2681 = vmatpush2.msra.mxu0 0.0
        %2682 = vmatprep.subr.mxu0 0.0
        %2683 = vmatpush2.msra.mxu0 0.0
        %2684 = vmatprep.subr.mxu0 0.0
        %2685 = vmatpush2.msra.mxu0 0.0
        %2686 = vmatprep.subr.mxu0 0.0
        %2687 = vmatpush2.msra.mxu0 0.0
        %2688 = vmatprep.subr.mxu0 0.0
        %2689 = vmatpush2.msra.mxu0 0.0
        %2690 = vmatprep.subr.mxu0 0.0
        %2691 = vmatpush2.msra.mxu0 0.0
        %2692 = vmatprep.subr.mxu0 0.0
        %2693 = vmatpush2.msra.mxu0 0.0
        %2694 = vmatprep.subr.mxu0 0.0
        %2695 = vmatpush2.msra.mxu0 0.0
        %2696 = vmatprep.subr.mxu0 0.0
        %2697 = vmatpush2.msra.mxu0 0.0
        %2698 = vmatprep.subr.mxu0 0.0
        %2699 = vmatpush2.msra.mxu0 0.0
        %2700 = vmatprep.subr.mxu0 0.0
        %2701 = vmatpush2.msra.mxu0 0.0
        %2702 = vmatprep.subr.mxu0 0.0
        %2703 = vmatpush2.msra.mxu0 0.0
        %2704 = vmatprep.mubr.f32.mxu0 0.0
        %2705 = vmatmul.mubr.f32.gmra.mxu0 %v2425
        %v2706 = vpop.f32.mrf.mxu0
        %v2707 = vadd.f32 %v2421, %v2706
        %v2708 = vpop.f32.mrf.mxu0
        %v2709 = vadd.f32 %v2421, %v2708
        %2710 = vdwg.mxu0
        %2711 = vmatprep.subr.mxu0 0.0
        %2712 = vmatpush1.msra.mxu0 0.0
        %2713 = vmatprep.subr.mxu0 0.0
        %2714 = vmatpush1.msra.mxu0 0.0
        %2715 = vmatprep.subr.mxu0 0.0
        %2716 = vmatpush1.msra.mxu0 0.0
        %2717 = vmatprep.subr.mxu0 0.0
        %2718 = vmatpush1.msra.mxu0 0.0
        %2719 = vmatprep.subr.mxu0 0.0
        %2720 = vmatpush1.msra.mxu0 0.0
        %2721 = vmatprep.subr.mxu0 0.0
        %2722 = vmatpush1.msra.mxu0 0.0
        %2723 = vmatprep.subr.mxu0 0.0
        %2724 = vmatpush1.msra.mxu0 0.0
        %2725 = vmatprep.subr.mxu0 0.0
        %2726 = vmatpush1.msra.mxu0 0.0
        %2727 = vmatprep.subr.mxu0 0.0
        %2728 = vmatpush1.msra.mxu0 0.0
        %2729 = vmatprep.subr.mxu0 0.0
        %2730 = vmatpush1.msra.mxu0 0.0
        %2731 = vmatprep.subr.mxu0 0.0
        %2732 = vmatpush1.msra.mxu0 0.0
        %2733 = vmatprep.subr.mxu0 0.0
        %2734 = vmatpush1.msra.mxu0 0.0
        %2735 = vmatprep.subr.mxu0 0.0
        %2736 = vmatpush1.msra.mxu0 0.0
        %2737 = vmatprep.subr.mxu0 0.0
        %2738 = vmatpush1.msra.mxu0 0.0
        %2739 = vmatprep.subr.mxu0 %v2412
        %2740 = vmatpush1.msra.mxu0 %v2410
        %2741 = vmatprep.subr.mxu0 %v2406
        %2742 = vmatpush1.msra.mxu0 %v2404
        %2743 = vmatprep.subr.mxu0 0.0
        %2744 = vmatpush2.msra.mxu0 0.0
        %2745 = vmatprep.subr.mxu0 0.0
        %2746 = vmatpush2.msra.mxu0 0.0
        %2747 = vmatprep.subr.mxu0 0.0
        %2748 = vmatpush2.msra.mxu0 0.0
        %2749 = vmatprep.subr.mxu0 0.0
        %2750 = vmatpush2.msra.mxu0 0.0
        %2751 = vmatprep.subr.mxu0 0.0
        %2752 = vmatpush2.msra.mxu0 0.0
        %2753 = vmatprep.subr.mxu0 0.0
        %2754 = vmatpush2.msra.mxu0 0.0
        %2755 = vmatprep.subr.mxu0 0.0
        %2756 = vmatpush2.msra.mxu0 0.0
        %2757 = vmatprep.subr.mxu0 0.0
        %2758 = vmatpush2.msra.mxu0 0.0
        %2759 = vmatprep.subr.mxu0 0.0
        %2760 = vmatpush2.msra.mxu0 0.0
        %2761 = vmatprep.subr.mxu0 0.0
        %2762 = vmatpush2.msra.mxu0 0.0
        %2763 = vmatprep.subr.mxu0 0.0
        %2764 = vmatpush2.msra.mxu0 0.0
        %2765 = vmatprep.subr.mxu0 0.0
        %2766 = vmatpush2.msra.mxu0 0.0
        %2767 = vmatprep.subr.mxu0 0.0
        %2768 = vmatpush2.msra.mxu0 0.0
        %2769 = vmatprep.subr.mxu0 0.0
        %2770 = vmatpush2.msra.mxu0 0.0
        %2771 = vmatprep.subr.mxu0 0.0
        %2772 = vmatpush2.msra.mxu0 0.0
        %2773 = vmatprep.subr.mxu0 0.0
        %2774 = vmatpush2.msra.mxu0 0.0
        %2775 = vmatprep.mubr.f32.mxu0 0.0
        %2776 = vmatmul.mubr.f32.gmra.mxu0 %v2425
        %v2777 = vpop.f32.mrf.mxu0
        %v2778 = vadd.f32 %v2421, %v2777
        %v2779 = vpop.f32.mrf.mxu0
        %v2780 = vadd.f32 %v2421, %v2779
        %2781 = vdwg.mxu0
        %v2782 = vadd.f32 %v1997, %v2494
        %v2783 = vadd.f32 %v1998, %v2496
        %v2784 = vadd.f32 %v1999, %v2565
        %v2785 = vadd.f32 %v2000, %v2567
        %v2786 = vadd.f32 %v2001, %v2636
        %v2787 = vadd.f32 %v2002, %v2638
        %v2788 = vadd.f32 %v2003, %v2707
        %v2789 = vadd.f32 %v2004, %v2709
        %v2790 = vadd.f32 %v2005, %v2778
        %v2791 = vadd.f32 %v2006, %v2780
        %v2792 = vld [vmem:[%s285] sm:$0xff]
        %s2793 = scalar_lea.vmem [#allocation2], 96
        %v2794 = vld [vmem:[%s2793 + $0x10] sm:$0xff]
        %s2795 = scalar_lea.vmem [#allocation5], 96
        %v2796 = vld [vmem:[%s2795 + $0x10] sm:$0xff]
        %2798 = vset.pattern.permute.xlu0 0
        %2799 = vperm.xlu0 %2798, %v2796
        %v2800 = vpop.permute.xlu0 %2799
        %v2803 = vsel %vm415, %v2794, 0
        %2805 = vmatprep.subr.mxu0 0.0
        %2806 = vmatpush1.msra.mxu0 0.0
        %2807 = vmatprep.subr.mxu0 0.0
        %2808 = vmatpush1.msra.mxu0 0.0
        %2809 = vmatprep.subr.mxu0 0.0
        %2810 = vmatpush1.msra.mxu0 0.0
        %2811 = vmatprep.subr.mxu0 0.0
        %2812 = vmatpush1.msra.mxu0 0.0
        %2813 = vmatprep.subr.mxu0 0.0
        %2814 = vmatpush1.msra.mxu0 0.0
        %2815 = vmatprep.subr.mxu0 0.0
        %2816 = vmatpush1.msra.mxu0 0.0
        %2817 = vmatprep.subr.mxu0 0.0
        %2818 = vmatpush1.msra.mxu0 0.0
        %2819 = vmatprep.subr.mxu0 0.0
        %2820 = vmatpush1.msra.mxu0 0.0
        %2821 = vmatprep.subr.mxu0 0.0
        %2822 = vmatpush1.msra.mxu0 0.0
        %2823 = vmatprep.subr.mxu0 0.0
        %2824 = vmatpush1.msra.mxu0 0.0
        %2825 = vmatprep.subr.mxu0 0.0
        %2826 = vmatpush1.msra.mxu0 0.0
        %2827 = vmatprep.subr.mxu0 0.0
        %2828 = vmatpush1.msra.mxu0 0.0
        %2829 = vmatprep.subr.mxu0 0.0
        %2830 = vmatpush1.msra.mxu0 0.0
        %2831 = vmatprep.subr.mxu0 0.0
        %2832 = vmatpush1.msra.mxu0 0.0
        %2833 = vmatprep.subr.mxu0 0.0
        %2834 = vmatpush1.msra.mxu0 0.0
        %2835 = vmatprep.subr.mxu0 0.0
        %2836 = vmatpush1.msra.mxu0 %v2792
        %2837 = vmatprep.subr.mxu0 0.0
        %2838 = vmatpush2.msra.mxu0 0.0
        %2839 = vmatprep.subr.mxu0 0.0
        %2840 = vmatpush2.msra.mxu0 0.0
        %2841 = vmatprep.subr.mxu0 0.0
        %2842 = vmatpush2.msra.mxu0 0.0
        %2843 = vmatprep.subr.mxu0 0.0
        %2844 = vmatpush2.msra.mxu0 0.0
        %2845 = vmatprep.subr.mxu0 0.0
        %2846 = vmatpush2.msra.mxu0 0.0
        %2847 = vmatprep.subr.mxu0 0.0
        %2848 = vmatpush2.msra.mxu0 0.0
        %2849 = vmatprep.subr.mxu0 0.0
        %2850 = vmatpush2.msra.mxu0 0.0
        %2851 = vmatprep.subr.mxu0 0.0
        %2852 = vmatpush2.msra.mxu0 0.0
        %2853 = vmatprep.subr.mxu0 0.0
        %2854 = vmatpush2.msra.mxu0 0.0
        %2855 = vmatprep.subr.mxu0 0.0
        %2856 = vmatpush2.msra.mxu0 0.0
        %2857 = vmatprep.subr.mxu0 0.0
        %2858 = vmatpush2.msra.mxu0 0.0
        %2859 = vmatprep.subr.mxu0 0.0
        %2860 = vmatpush2.msra.mxu0 0.0
        %2861 = vmatprep.subr.mxu0 0.0
        %2862 = vmatpush2.msra.mxu0 0.0
        %2863 = vmatprep.subr.mxu0 0.0
        %2864 = vmatpush2.msra.mxu0 0.0
        %2865 = vmatprep.subr.mxu0 0.0
        %2866 = vmatpush2.msra.mxu0 0.0
        %2867 = vmatprep.subr.mxu0 0.0
        %2868 = vmatpush2.msra.mxu0 0.0
        %2869 = vmatprep.mubr.f32.mxu0 0.0
        %2870 = vmatmul.mubr.f32.gmra.mxu0 %v2803
        %v2871 = vpop.f32.mrf.mxu0
        %v2872 = vadd.f32 %v2800, %v2871
        %v2873 = vpop.f32.mrf.mxu0
        %2874 = vdwg.mxu0
        %s2875 = scalar_lea.vmem [#allocation2], 120
        %v2876 = vld [vmem:[%s2875] sm:$0xff]
        %s2877 = scalar_lea.vmem [#allocation5], 120
        %v2878 = vld [vmem:[%s2877] sm:$0xff]
        %2880 = vset.pattern.permute.xlu0 0
        %2881 = vperm.xlu0 %2880, %v2878
        %v2882 = vpop.permute.xlu0 %2881
        %v2885 = vsel %vm415, %v2876, 0
        %2887 = vmatprep.subr.mxu0 0.0
        %2888 = vmatpush1.msra.mxu0 0.0
        %2889 = vmatprep.subr.mxu0 0.0
        %2890 = vmatpush1.msra.mxu0 0.0
        %2891 = vmatprep.subr.mxu0 0.0
        %2892 = vmatpush1.msra.mxu0 0.0
        %2893 = vmatprep.subr.mxu0 0.0
        %2894 = vmatpush1.msra.mxu0 0.0
        %2895 = vmatprep.subr.mxu0 0.0
        %2896 = vmatpush1.msra.mxu0 0.0
        %2897 = vmatprep.subr.mxu0 0.0
        %2898 = vmatpush1.msra.mxu0 0.0
        %2899 = vmatprep.subr.mxu0 0.0
        %2900 = vmatpush1.msra.mxu0 0.0
        %2901 = vmatprep.subr.mxu0 0.0
        %2902 = vmatpush1.msra.mxu0 0.0
        %2903 = vmatprep.subr.mxu0 0.0
        %2904 = vmatpush1.msra.mxu0 0.0
        %2905 = vmatprep.subr.mxu0 0.0
        %2906 = vmatpush1.msra.mxu0 0.0
        %2907 = vmatprep.subr.mxu0 0.0
        %2908 = vmatpush1.msra.mxu0 0.0
        %2909 = vmatprep.subr.mxu0 0.0
        %2910 = vmatpush1.msra.mxu0 0.0
        %2911 = vmatprep.subr.mxu0 0.0
        %2912 = vmatpush1.msra.mxu0 0.0
        %2913 = vmatprep.subr.mxu0 0.0
        %2914 = vmatpush1.msra.mxu0 0.0
        %2915 = vmatprep.subr.mxu0 0.0
        %2916 = vmatpush1.msra.mxu0 0.0
        %2917 = vmatprep.subr.mxu0 0.0
        %2918 = vmatpush1.msra.mxu0 %v2872
        %2919 = vmatprep.subr.mxu0 0.0
        %2920 = vmatpush2.msra.mxu0 0.0
        %2921 = vmatprep.subr.mxu0 0.0
        %2922 = vmatpush2.msra.mxu0 0.0
        %2923 = vmatprep.subr.mxu0 0.0
        %2924 = vmatpush2.msra.mxu0 0.0
        %2925 = vmatprep.subr.mxu0 0.0
        %2926 = vmatpush2.msra.mxu0 0.0
        %2927 = vmatprep.subr.mxu0 0.0
        %2928 = vmatpush2.msra.mxu0 0.0
        %2929 = vmatprep.subr.mxu0 0.0
        %2930 = vmatpush2.msra.mxu0 0.0
        %2931 = vmatprep.subr.mxu0 0.0
        %2932 = vmatpush2.msra.mxu0 0.0
        %2933 = vmatprep.subr.mxu0 0.0
        %2934 = vmatpush2.msra.mxu0 0.0
        %2935 = vmatprep.subr.mxu0 0.0
        %2936 = vmatpush2.msra.mxu0 0.0
        %2937 = vmatprep.subr.mxu0 0.0
        %2938 = vmatpush2.msra.mxu0 0.0
        %2939 = vmatprep.subr.mxu0 0.0
        %2940 = vmatpush2.msra.mxu0 0.0
        %2941 = vmatprep.subr.mxu0 0.0
        %2942 = vmatpush2.msra.mxu0 0.0
        %2943 = vmatprep.subr.mxu0 0.0
        %2944 = vmatpush2.msra.mxu0 0.0
        %2945 = vmatprep.subr.mxu0 0.0
        %2946 = vmatpush2.msra.mxu0 0.0
        %2947 = vmatprep.subr.mxu0 0.0
        %2948 = vmatpush2.msra.mxu0 0.0
        %2949 = vmatprep.subr.mxu0 0.0
        %2950 = vmatpush2.msra.mxu0 0.0
        %2951 = vmatprep.mubr.f32.mxu0 0.0
        %2952 = vmatmul.mubr.f32.gmra.mxu0 %v2885
        %v2953 = vpop.f32.mrf.mxu0
        %v2954 = vadd.f32 %v2882, %v2953
        %v2955 = vpop.f32.mrf.mxu0
        %2956 = vdwg.mxu0
        %v2957 = vadd.f32 %v2792, %v2954
        %s2958 = scalar_lea.vmem [#allocation2], 144
        %v2959 = vld [vmem:[%s2958] sm:$0xff]
        %v2960 = vld [vmem:[%s2958 + $0x8] sm:$0xff]
        %v2961 = vld [vmem:[%s2958 + $0x10] sm:$0xff]
        %s2962 = scalar_lea.vmem [#allocation5], 144
        %v2963 = vld [vmem:[%s2962] sm:$0xff]
        %v2964 = vld [vmem:[%s2962 + $0x8] sm:$0xff]
        %v2965 = vld [vmem:[%s2962 + $0x10] sm:$0xff]
        %2967 = vset.pattern.permute.xlu0 0
        %2968 = vperm.xlu0 %2967, %v2963
        %v2969 = vpop.permute.xlu0 %2968
        %v2972 = vsel %vm415, %v2959, 0
        %2974 = vmatprep.subr.mxu0 0.0
        %2975 = vmatpush1.msra.mxu0 0.0
        %2976 = vmatprep.subr.mxu0 0.0
        %2977 = vmatpush1.msra.mxu0 0.0
        %2978 = vmatprep.subr.mxu0 0.0
        %2979 = vmatpush1.msra.mxu0 0.0
        %2980 = vmatprep.subr.mxu0 0.0
        %2981 = vmatpush1.msra.mxu0 0.0
        %2982 = vmatprep.subr.mxu0 0.0
        %2983 = vmatpush1.msra.mxu0 0.0
        %2984 = vmatprep.subr.mxu0 0.0
        %2985 = vmatpush1.msra.mxu0 0.0
        %2986 = vmatprep.subr.mxu0 0.0
        %2987 = vmatpush1.msra.mxu0 0.0
        %2988 = vmatprep.subr.mxu0 0.0
        %2989 = vmatpush1.msra.mxu0 0.0
        %2990 = vmatprep.subr.mxu0 0.0
        %2991 = vmatpush1.msra.mxu0 0.0
        %2992 = vmatprep.subr.mxu0 0.0
        %2993 = vmatpush1.msra.mxu0 0.0
        %2994 = vmatprep.subr.mxu0 0.0
        %2995 = vmatpush1.msra.mxu0 0.0
        %2996 = vmatprep.subr.mxu0 0.0
        %2997 = vmatpush1.msra.mxu0 0.0
        %2998 = vmatprep.subr.mxu0 0.0
        %2999 = vmatpush1.msra.mxu0 0.0
        %3000 = vmatprep.subr.mxu0 0.0
        %3001 = vmatpush1.msra.mxu0 0.0
        %3002 = vmatprep.subr.mxu0 0.0
        %3003 = vmatpush1.msra.mxu0 0.0
        %3004 = vmatprep.subr.mxu0 0.0
        %3005 = vmatpush1.msra.mxu0 %v2957
        %3006 = vmatprep.subr.mxu0 0.0
        %3007 = vmatpush2.msra.mxu0 0.0
        %3008 = vmatprep.subr.mxu0 0.0
        %3009 = vmatpush2.msra.mxu0 0.0
        %3010 = vmatprep.subr.mxu0 0.0
        %3011 = vmatpush2.msra.mxu0 0.0
        %3012 = vmatprep.subr.mxu0 0.0
        %3013 = vmatpush2.msra.mxu0 0.0
        %3014 = vmatprep.subr.mxu0 0.0
        %3015 = vmatpush2.msra.mxu0 0.0
        %3016 = vmatprep.subr.mxu0 0.0
        %3017 = vmatpush2.msra.mxu0 0.0
        %3018 = vmatprep.subr.mxu0 0.0
        %3019 = vmatpush2.msra.mxu0 0.0
        %3020 = vmatprep.subr.mxu0 0.0
        %3021 = vmatpush2.msra.mxu0 0.0
        %3022 = vmatprep.subr.mxu0 0.0
        %3023 = vmatpush2.msra.mxu0 0.0
        %3024 = vmatprep.subr.mxu0 0.0
        %3025 = vmatpush2.msra.mxu0 0.0
        %3026 = vmatprep.subr.mxu0 0.0
        %3027 = vmatpush2.msra.mxu0 0.0
        %3028 = vmatprep.subr.mxu0 0.0
        %3029 = vmatpush2.msra.mxu0 0.0
        %3030 = vmatprep.subr.mxu0 0.0
        %3031 = vmatpush2.msra.mxu0 0.0
        %3032 = vmatprep.subr.mxu0 0.0
        %3033 = vmatpush2.msra.mxu0 0.0
        %3034 = vmatprep.subr.mxu0 0.0
        %3035 = vmatpush2.msra.mxu0 0.0
        %3036 = vmatprep.subr.mxu0 0.0
        %3037 = vmatpush2.msra.mxu0 0.0
        %3038 = vmatprep.mubr.f32.mxu0 0.0
        %3039 = vmatmul.mubr.f32.gmra.mxu0 %v2972
        %v3040 = vpop.f32.mrf.mxu0
        %v3041 = vadd.f32 %v2969, %v3040
        %v3042 = vpop.f32.mrf.mxu0
        %3043 = vdwg.mxu0
        %3045 = vset.pattern.permute.xlu0 0
        %3046 = vperm.xlu0 %3045, %v2964
        %v3047 = vpop.permute.xlu0 %3046
        %3050 = vset.pattern.permute.xlu0 0
        %3051 = vperm.xlu0 %3050, %v2965
        %v3052 = vpop.permute.xlu0 %3051
        %v3055 = vsel %vm415, %v2960, 0
        %v3058 = vsel %vm415, %v2961, 0
        %3060 = vmatprep.subr.mxu0 0.0
        %3061 = vmatpush1.msra.mxu0 0.0
        %3062 = vmatprep.subr.mxu0 0.0
        %3063 = vmatpush1.msra.mxu0 0.0
        %3064 = vmatprep.subr.mxu0 0.0
        %3065 = vmatpush1.msra.mxu0 0.0
        %3066 = vmatprep.subr.mxu0 0.0
        %3067 = vmatpush1.msra.mxu0 0.0
        %3068 = vmatprep.subr.mxu0 0.0
        %3069 = vmatpush1.msra.mxu0 0.0
        %3070 = vmatprep.subr.mxu0 0.0
        %3071 = vmatpush1.msra.mxu0 0.0
        %3072 = vmatprep.subr.mxu0 0.0
        %3073 = vmatpush1.msra.mxu0 0.0
        %3074 = vmatprep.subr.mxu0 0.0
        %3075 = vmatpush1.msra.mxu0 0.0
        %3076 = vmatprep.subr.mxu0 0.0
        %3077 = vmatpush1.msra.mxu0 0.0
        %3078 = vmatprep.subr.mxu0 0.0
        %3079 = vmatpush1.msra.mxu0 0.0
        %3080 = vmatprep.subr.mxu0 0.0
        %3081 = vmatpush1.msra.mxu0 0.0
        %3082 = vmatprep.subr.mxu0 0.0
        %3083 = vmatpush1.msra.mxu0 0.0
        %3084 = vmatprep.subr.mxu0 0.0
        %3085 = vmatpush1.msra.mxu0 0.0
        %3086 = vmatprep.subr.mxu0 0.0
        %3087 = vmatpush1.msra.mxu0 0.0
        %3088 = vmatprep.subr.mxu0 0.0
        %3089 = vmatpush1.msra.mxu0 0.0
        %3090 = vmatprep.subr.mxu0 %v2783
        %3091 = vmatpush1.msra.mxu0 %v2782
        %3092 = vmatprep.subr.mxu0 0.0
        %3093 = vmatpush2.msra.mxu0 0.0
        %3094 = vmatprep.subr.mxu0 0.0
        %3095 = vmatpush2.msra.mxu0 0.0
        %3096 = vmatprep.subr.mxu0 0.0
        %3097 = vmatpush2.msra.mxu0 0.0
        %3098 = vmatprep.subr.mxu0 0.0
        %3099 = vmatpush2.msra.mxu0 0.0
        %3100 = vmatprep.subr.mxu0 0.0
        %3101 = vmatpush2.msra.mxu0 0.0
        %3102 = vmatprep.subr.mxu0 0.0
        %3103 = vmatpush2.msra.mxu0 0.0
        %3104 = vmatprep.subr.mxu0 0.0
        %3105 = vmatpush2.msra.mxu0 0.0
        %3106 = vmatprep.subr.mxu0 0.0
        %3107 = vmatpush2.msra.mxu0 0.0
        %3108 = vmatprep.subr.mxu0 0.0
        %3109 = vmatpush2.msra.mxu0 0.0
        %3110 = vmatprep.subr.mxu0 0.0
        %3111 = vmatpush2.msra.mxu0 0.0
        %3112 = vmatprep.subr.mxu0 0.0
        %3113 = vmatpush2.msra.mxu0 0.0
        %3114 = vmatprep.subr.mxu0 0.0
        %3115 = vmatpush2.msra.mxu0 0.0
        %3116 = vmatprep.subr.mxu0 0.0
        %3117 = vmatpush2.msra.mxu0 0.0
        %3118 = vmatprep.subr.mxu0 0.0
        %3119 = vmatpush2.msra.mxu0 0.0
        %3120 = vmatprep.subr.mxu0 0.0
        %3121 = vmatpush2.msra.mxu0 0.0
        %3122 = vmatprep.subr.mxu0 0.0
        %3123 = vmatpush2.msra.mxu0 0.0
        %3124 = vmatprep.mubr.f32.mxu0 0.0
        %3125 = vmatmul.mubr.f32.gmra.mxu0 %v3055
        %v3126 = vpop.f32.mrf.mxu0
        %v3127 = vadd.f32 %v3047, %v3126
        %v3128 = vpop.f32.mrf.mxu0
        %v3129 = vadd.f32 %v3047, %v3128
        %3130 = vmatprep.mubr.f32.mxu0 0.0
        %3131 = vmatmul.mubr.f32.gmra.mxu0 %v3058
        %v3132 = vpop.f32.mrf.mxu0
        %v3133 = vadd.f32 %v3052, %v3132
        %v3134 = vpop.f32.mrf.mxu0
        %v3135 = vadd.f32 %v3052, %v3134
        %3136 = vdwg.mxu0
        %3137 = vmatprep.subr.mxu0 0.0
        %3138 = vmatpush1.msra.mxu0 0.0
        %3139 = vmatprep.subr.mxu0 0.0
        %3140 = vmatpush1.msra.mxu0 0.0
        %3141 = vmatprep.subr.mxu0 0.0
        %3142 = vmatpush1.msra.mxu0 0.0
        %3143 = vmatprep.subr.mxu0 0.0
        %3144 = vmatpush1.msra.mxu0 0.0
        %3145 = vmatprep.subr.mxu0 0.0
        %3146 = vmatpush1.msra.mxu0 0.0
        %3147 = vmatprep.subr.mxu0 0.0
        %3148 = vmatpush1.msra.mxu0 0.0
        %3149 = vmatprep.subr.mxu0 0.0
        %3150 = vmatpush1.msra.mxu0 0.0
        %3151 = vmatprep.subr.mxu0 0.0
        %3152 = vmatpush1.msra.mxu0 0.0
        %3153 = vmatprep.subr.mxu0 0.0
        %3154 = vmatpush1.msra.mxu0 0.0
        %3155 = vmatprep.subr.mxu0 0.0
        %3156 = vmatpush1.msra.mxu0 0.0
        %3157 = vmatprep.subr.mxu0 0.0
        %3158 = vmatpush1.msra.mxu0 0.0
        %3159 = vmatprep.subr.mxu0 0.0
        %3160 = vmatpush1.msra.mxu0 0.0
        %3161 = vmatprep.subr.mxu0 0.0
        %3162 = vmatpush1.msra.mxu0 0.0
        %3163 = vmatprep.subr.mxu0 0.0
        %3164 = vmatpush1.msra.mxu0 0.0
        %3165 = vmatprep.subr.mxu0 0.0
        %3166 = vmatpush1.msra.mxu0 0.0
        %3167 = vmatprep.subr.mxu0 %v2785
        %3168 = vmatpush1.msra.mxu0 %v2784
        %3169 = vmatprep.subr.mxu0 0.0
        %3170 = vmatpush2.msra.mxu0 0.0
        %3171 = vmatprep.subr.mxu0 0.0
        %3172 = vmatpush2.msra.mxu0 0.0
        %3173 = vmatprep.subr.mxu0 0.0
        %3174 = vmatpush2.msra.mxu0 0.0
        %3175 = vmatprep.subr.mxu0 0.0
        %3176 = vmatpush2.msra.mxu0 0.0
        %3177 = vmatprep.subr.mxu0 0.0
        %3178 = vmatpush2.msra.mxu0 0.0
        %3179 = vmatprep.subr.mxu0 0.0
        %3180 = vmatpush2.msra.mxu0 0.0
        %3181 = vmatprep.subr.mxu0 0.0
        %3182 = vmatpush2.msra.mxu0 0.0
        %3183 = vmatprep.subr.mxu0 0.0
        %3184 = vmatpush2.msra.mxu0 0.0
        %3185 = vmatprep.subr.mxu0 0.0
        %3186 = vmatpush2.msra.mxu0 0.0
        %3187 = vmatprep.subr.mxu0 0.0
        %3188 = vmatpush2.msra.mxu0 0.0
        %3189 = vmatprep.subr.mxu0 0.0
        %3190 = vmatpush2.msra.mxu0 0.0
        %3191 = vmatprep.subr.mxu0 0.0
        %3192 = vmatpush2.msra.mxu0 0.0
        %3193 = vmatprep.subr.mxu0 0.0
        %3194 = vmatpush2.msra.mxu0 0.0
        %3195 = vmatprep.subr.mxu0 0.0
        %3196 = vmatpush2.msra.mxu0 0.0
        %3197 = vmatprep.subr.mxu0 0.0
        %3198 = vmatpush2.msra.mxu0 0.0
        %3199 = vmatprep.subr.mxu0 0.0
        %3200 = vmatpush2.msra.mxu0 0.0
        %3201 = vmatprep.mubr.f32.mxu0 0.0
        %3202 = vmatmul.mubr.f32.gmra.mxu0 %v3055
        %v3203 = vpop.f32.mrf.mxu0
        %v3204 = vadd.f32 %v3047, %v3203
        %v3205 = vpop.f32.mrf.mxu0
        %v3206 = vadd.f32 %v3047, %v3205
        %3207 = vmatprep.mubr.f32.mxu0 0.0
        %3208 = vmatmul.mubr.f32.gmra.mxu0 %v3058
        %v3209 = vpop.f32.mrf.mxu0
        %v3210 = vadd.f32 %v3052, %v3209
        %v3211 = vpop.f32.mrf.mxu0
        %v3212 = vadd.f32 %v3052, %v3211
        %3213 = vdwg.mxu0
        %3214 = vmatprep.subr.mxu0 0.0
        %3215 = vmatpush1.msra.mxu0 0.0
        %3216 = vmatprep.subr.mxu0 0.0
        %3217 = vmatpush1.msra.mxu0 0.0
        %3218 = vmatprep.subr.mxu0 0.0
        %3219 = vmatpush1.msra.mxu0 0.0
        %3220 = vmatprep.subr.mxu0 0.0
        %3221 = vmatpush1.msra.mxu0 0.0
        %3222 = vmatprep.subr.mxu0 0.0
        %3223 = vmatpush1.msra.mxu0 0.0
        %3224 = vmatprep.subr.mxu0 0.0
        %3225 = vmatpush1.msra.mxu0 0.0
        %3226 = vmatprep.subr.mxu0 0.0
        %3227 = vmatpush1.msra.mxu0 0.0
        %3228 = vmatprep.subr.mxu0 0.0
        %3229 = vmatpush1.msra.mxu0 0.0
        %3230 = vmatprep.subr.mxu0 0.0
        %3231 = vmatpush1.msra.mxu0 0.0
        %3232 = vmatprep.subr.mxu0 0.0
        %3233 = vmatpush1.msra.mxu0 0.0
        %3234 = vmatprep.subr.mxu0 0.0
        %3235 = vmatpush1.msra.mxu0 0.0
        %3236 = vmatprep.subr.mxu0 0.0
        %3237 = vmatpush1.msra.mxu0 0.0
        %3238 = vmatprep.subr.mxu0 0.0
        %3239 = vmatpush1.msra.mxu0 0.0
        %3240 = vmatprep.subr.mxu0 0.0
        %3241 = vmatpush1.msra.mxu0 0.0
        %3242 = vmatprep.subr.mxu0 0.0
        %3243 = vmatpush1.msra.mxu0 0.0
        %3244 = vmatprep.subr.mxu0 %v2787
        %3245 = vmatpush1.msra.mxu0 %v2786
        %3246 = vmatprep.subr.mxu0 0.0
        %3247 = vmatpush2.msra.mxu0 0.0
        %3248 = vmatprep.subr.mxu0 0.0
        %3249 = vmatpush2.msra.mxu0 0.0
        %3250 = vmatprep.subr.mxu0 0.0
        %3251 = vmatpush2.msra.mxu0 0.0
        %3252 = vmatprep.subr.mxu0 0.0
        %3253 = vmatpush2.msra.mxu0 0.0
        %3254 = vmatprep.subr.mxu0 0.0
        %3255 = vmatpush2.msra.mxu0 0.0
        %3256 = vmatprep.subr.mxu0 0.0
        %3257 = vmatpush2.msra.mxu0 0.0
        %3258 = vmatprep.subr.mxu0 0.0
        %3259 = vmatpush2.msra.mxu0 0.0
        %3260 = vmatprep.subr.mxu0 0.0
        %3261 = vmatpush2.msra.mxu0 0.0
        %3262 = vmatprep.subr.mxu0 0.0
        %3263 = vmatpush2.msra.mxu0 0.0
        %3264 = vmatprep.subr.mxu0 0.0
        %3265 = vmatpush2.msra.mxu0 0.0
        %3266 = vmatprep.subr.mxu0 0.0
        %3267 = vmatpush2.msra.mxu0 0.0
        %3268 = vmatprep.subr.mxu0 0.0
        %3269 = vmatpush2.msra.mxu0 0.0
        %3270 = vmatprep.subr.mxu0 0.0
        %3271 = vmatpush2.msra.mxu0 0.0
        %3272 = vmatprep.subr.mxu0 0.0
        %3273 = vmatpush2.msra.mxu0 0.0
        %3274 = vmatprep.subr.mxu0 0.0
        %3275 = vmatpush2.msra.mxu0 0.0
        %3276 = vmatprep.subr.mxu0 0.0
        %3277 = vmatpush2.msra.mxu0 0.0
        %3278 = vmatprep.mubr.f32.mxu0 0.0
        %3279 = vmatmul.mubr.f32.gmra.mxu0 %v3055
        %v3280 = vpop.f32.mrf.mxu0
        %v3281 = vadd.f32 %v3047, %v3280
        %v3282 = vpop.f32.mrf.mxu0
        %v3283 = vadd.f32 %v3047, %v3282
        %3284 = vmatprep.mubr.f32.mxu0 0.0
        %3285 = vmatmul.mubr.f32.gmra.mxu0 %v3058
        %v3286 = vpop.f32.mrf.mxu0
        %v3287 = vadd.f32 %v3052, %v3286
        %v3288 = vpop.f32.mrf.mxu0
        %v3289 = vadd.f32 %v3052, %v3288
        %3290 = vdwg.mxu0
        %3291 = vmatprep.subr.mxu0 0.0
        %3292 = vmatpush1.msra.mxu0 0.0
        %3293 = vmatprep.subr.mxu0 0.0
        %3294 = vmatpush1.msra.mxu0 0.0
        %3295 = vmatprep.subr.mxu0 0.0
        %3296 = vmatpush1.msra.mxu0 0.0
        %3297 = vmatprep.subr.mxu0 0.0
        %3298 = vmatpush1.msra.mxu0 0.0
        %3299 = vmatprep.subr.mxu0 0.0
        %3300 = vmatpush1.msra.mxu0 0.0
        %3301 = vmatprep.subr.mxu0 0.0
        %3302 = vmatpush1.msra.mxu0 0.0
        %3303 = vmatprep.subr.mxu0 0.0
        %3304 = vmatpush1.msra.mxu0 0.0
        %3305 = vmatprep.subr.mxu0 0.0
        %3306 = vmatpush1.msra.mxu0 0.0
        %3307 = vmatprep.subr.mxu0 0.0
        %3308 = vmatpush1.msra.mxu0 0.0
        %3309 = vmatprep.subr.mxu0 0.0
        %3310 = vmatpush1.msra.mxu0 0.0
        %3311 = vmatprep.subr.mxu0 0.0
        %3312 = vmatpush1.msra.mxu0 0.0
        %3313 = vmatprep.subr.mxu0 0.0
        %3314 = vmatpush1.msra.mxu0 0.0
        %3315 = vmatprep.subr.mxu0 0.0
        %3316 = vmatpush1.msra.mxu0 0.0
        %3317 = vmatprep.subr.mxu0 0.0
        %3318 = vmatpush1.msra.mxu0 0.0
        %3319 = vmatprep.subr.mxu0 0.0
        %3320 = vmatpush1.msra.mxu0 0.0
        %3321 = vmatprep.subr.mxu0 %v2789
        %3322 = vmatpush1.msra.mxu0 %v2788
        %3323 = vmatprep.subr.mxu0 0.0
        %3324 = vmatpush2.msra.mxu0 0.0
        %3325 = vmatprep.subr.mxu0 0.0
        %3326 = vmatpush2.msra.mxu0 0.0
        %3327 = vmatprep.subr.mxu0 0.0
        %3328 = vmatpush2.msra.mxu0 0.0
        %3329 = vmatprep.subr.mxu0 0.0
        %3330 = vmatpush2.msra.mxu0 0.0
        %3331 = vmatprep.subr.mxu0 0.0
        %3332 = vmatpush2.msra.mxu0 0.0
        %3333 = vmatprep.subr.mxu0 0.0
        %3334 = vmatpush2.msra.mxu0 0.0
        %3335 = vmatprep.subr.mxu0 0.0
        %3336 = vmatpush2.msra.mxu0 0.0
        %3337 = vmatprep.subr.mxu0 0.0
        %3338 = vmatpush2.msra.mxu0 0.0
        %3339 = vmatprep.subr.mxu0 0.0
        %3340 = vmatpush2.msra.mxu0 0.0
        %3341 = vmatprep.subr.mxu0 0.0
        %3342 = vmatpush2.msra.mxu0 0.0
        %3343 = vmatprep.subr.mxu0 0.0
        %3344 = vmatpush2.msra.mxu0 0.0
        %3345 = vmatprep.subr.mxu0 0.0
        %3346 = vmatpush2.msra.mxu0 0.0
        %3347 = vmatprep.subr.mxu0 0.0
        %3348 = vmatpush2.msra.mxu0 0.0
        %3349 = vmatprep.subr.mxu0 0.0
        %3350 = vmatpush2.msra.mxu0 0.0
        %3351 = vmatprep.subr.mxu0 0.0
        %3352 = vmatpush2.msra.mxu0 0.0
        %3353 = vmatprep.subr.mxu0 0.0
        %3354 = vmatpush2.msra.mxu0 0.0
        %3355 = vmatprep.mubr.f32.mxu0 0.0
        %3356 = vmatmul.mubr.f32.gmra.mxu0 %v3055
        %v3357 = vpop.f32.mrf.mxu0
        %v3358 = vadd.f32 %v3047, %v3357
        %v3359 = vpop.f32.mrf.mxu0
        %v3360 = vadd.f32 %v3047, %v3359
        %3361 = vmatprep.mubr.f32.mxu0 0.0
        %3362 = vmatmul.mubr.f32.gmra.mxu0 %v3058
        %v3363 = vpop.f32.mrf.mxu0
        %v3364 = vadd.f32 %v3052, %v3363
        %v3365 = vpop.f32.mrf.mxu0
        %v3366 = vadd.f32 %v3052, %v3365
        %3367 = vdwg.mxu0
        %3368 = vmatprep.subr.mxu0 0.0
        %3369 = vmatpush1.msra.mxu0 0.0
        %3370 = vmatprep.subr.mxu0 0.0
        %3371 = vmatpush1.msra.mxu0 0.0
        %3372 = vmatprep.subr.mxu0 0.0
        %3373 = vmatpush1.msra.mxu0 0.0
        %3374 = vmatprep.subr.mxu0 0.0
        %3375 = vmatpush1.msra.mxu0 0.0
        %3376 = vmatprep.subr.mxu0 0.0
        %3377 = vmatpush1.msra.mxu0 0.0
        %3378 = vmatprep.subr.mxu0 0.0
        %3379 = vmatpush1.msra.mxu0 0.0
        %3380 = vmatprep.subr.mxu0 0.0
        %3381 = vmatpush1.msra.mxu0 0.0
        %3382 = vmatprep.subr.mxu0 0.0
        %3383 = vmatpush1.msra.mxu0 0.0
        %3384 = vmatprep.subr.mxu0 0.0
        %3385 = vmatpush1.msra.mxu0 0.0
        %3386 = vmatprep.subr.mxu0 0.0
        %3387 = vmatpush1.msra.mxu0 0.0
        %3388 = vmatprep.subr.mxu0 0.0
        %3389 = vmatpush1.msra.mxu0 0.0
        %3390 = vmatprep.subr.mxu0 0.0
        %3391 = vmatpush1.msra.mxu0 0.0
        %3392 = vmatprep.subr.mxu0 0.0
        %3393 = vmatpush1.msra.mxu0 0.0
        %3394 = vmatprep.subr.mxu0 0.0
        %3395 = vmatpush1.msra.mxu0 0.0
        %3396 = vmatprep.subr.mxu0 0.0
        %3397 = vmatpush1.msra.mxu0 0.0
        %3398 = vmatprep.subr.mxu0 %v2791
        %3399 = vmatpush1.msra.mxu0 %v2790
        %3400 = vmatprep.subr.mxu0 0.0
        %3401 = vmatpush2.msra.mxu0 0.0
        %3402 = vmatprep.subr.mxu0 0.0
        %3403 = vmatpush2.msra.mxu0 0.0
        %3404 = vmatprep.subr.mxu0 0.0
        %3405 = vmatpush2.msra.mxu0 0.0
        %3406 = vmatprep.subr.mxu0 0.0
        %3407 = vmatpush2.msra.mxu0 0.0
        %3408 = vmatprep.subr.mxu0 0.0
        %3409 = vmatpush2.msra.mxu0 0.0
        %3410 = vmatprep.subr.mxu0 0.0
        %3411 = vmatpush2.msra.mxu0 0.0
        %3412 = vmatprep.subr.mxu0 0.0
        %3413 = vmatpush2.msra.mxu0 0.0
        %3414 = vmatprep.subr.mxu0 0.0
        %3415 = vmatpush2.msra.mxu0 0.0
        %3416 = vmatprep.subr.mxu0 0.0
        %3417 = vmatpush2.msra.mxu0 0.0
        %3418 = vmatprep.subr.mxu0 0.0
        %3419 = vmatpush2.msra.mxu0 0.0
        %3420 = vmatprep.subr.mxu0 0.0
        %3421 = vmatpush2.msra.mxu0 0.0
        %3422 = vmatprep.subr.mxu0 0.0
        %3423 = vmatpush2.msra.mxu0 0.0
        %3424 = vmatprep.subr.mxu0 0.0
        %3425 = vmatpush2.msra.mxu0 0.0
        %3426 = vmatprep.subr.mxu0 0.0
        %3427 = vmatpush2.msra.mxu0 0.0
        %3428 = vmatprep.subr.mxu0 0.0
        %3429 = vmatpush2.msra.mxu0 0.0
        %3430 = vmatprep.subr.mxu0 0.0
        %3431 = vmatpush2.msra.mxu0 0.0
        %3432 = vmatprep.mubr.f32.mxu0 0.0
        %3433 = vmatmul.mubr.f32.gmra.mxu0 %v3055
        %v3434 = vpop.f32.mrf.mxu0
        %v3435 = vadd.f32 %v3047, %v3434
        %v3436 = vpop.f32.mrf.mxu0
        %v3437 = vadd.f32 %v3047, %v3436
        %3438 = vmatprep.mubr.f32.mxu0 0.0
        %3439 = vmatmul.mubr.f32.gmra.mxu0 %v3058
        %v3440 = vpop.f32.mrf.mxu0
        %v3441 = vadd.f32 %v3052, %v3440
        %v3442 = vpop.f32.mrf.mxu0
        %v3443 = vadd.f32 %v3052, %v3442
        %3444 = vdwg.mxu0
        %v3445 = vmul.f32 %v3041, %v3127
        %v3446 = vmul.f32 %v3041, %v3129
        %v3447 = vmul.f32 %v3041, %v3204
        %v3448 = vmul.f32 %v3041, %v3206
        %v3449 = vmul.f32 %v3041, %v3281
        %v3450 = vmul.f32 %v3041, %v3283
        %v3451 = vmul.f32 %v3041, %v3358
        %v3452 = vmul.f32 %v3041, %v3360
        %v3453 = vmul.f32 %v3041, %v3435
        %v3454 = vmul.f32 %v3041, %v3437
        %v3455 = vmax.f32 %v3445, %v3446
        %v3456 = vmax.f32 %v3455, %v3447
        %v3457 = vmax.f32 %v3456, %v3448
        %v3458 = vmax.f32 %v3457, %v3449
        %v3459 = vmax.f32 %v3458, %v3450
        %v3460 = vmax.f32 %v3459, %v3451
        %v3461 = vmax.f32 %v3460, %v3452
        %v3462 = vmax.f32 %v3461, %v3453
        %v3463 = vmax.f32 %v3462, %v3454
        %v3464 = vsub.f32 %v3445, %v3463
        %v3465 = vmul.f32 %v3464, 1.442695
        %v3466 = vpow.pop %v3465
        %v3467 = vsub.f32 %v3446, %v3463
        %v3468 = vmul.f32 %v3467, 1.442695
        %v3469 = vpow.pop %v3468
        %v3470 = vsub.f32 %v3447, %v3463
        %v3471 = vmul.f32 %v3470, 1.442695
        %v3472 = vpow.pop %v3471
        %v3473 = vsub.f32 %v3448, %v3463
        %v3474 = vmul.f32 %v3473, 1.442695
        %v3475 = vpow.pop %v3474
        %v3476 = vsub.f32 %v3449, %v3463
        %v3477 = vmul.f32 %v3476, 1.442695
        %v3478 = vpow.pop %v3477
        %v3479 = vsub.f32 %v3450, %v3463
        %v3480 = vmul.f32 %v3479, 1.442695
        %v3481 = vpow.pop %v3480
        %v3482 = vsub.f32 %v3451, %v3463
        %v3483 = vmul.f32 %v3482, 1.442695
        %v3484 = vpow.pop %v3483
        %v3485 = vsub.f32 %v3452, %v3463
        %v3486 = vmul.f32 %v3485, 1.442695
        %v3487 = vpow.pop %v3486
        %v3488 = vsub.f32 %v3453, %v3463
        %v3489 = vmul.f32 %v3488, 1.442695
        %v3490 = vpow.pop %v3489
        %v3491 = vsub.f32 %v3454, %v3463
        %v3492 = vmul.f32 %v3491, 1.442695
        %v3493 = vpow.pop %v3492
        %v3494 = vadd.f32 %v3466, %v3469
        %v3495 = vadd.f32 %v3494, %v3472
        %v3496 = vadd.f32 %v3495, %v3475
        %v3497 = vadd.f32 %v3496, %v3478
        %v3498 = vadd.f32 %v3497, %v3481
        %v3499 = vadd.f32 %v3498, %v3484
        %v3500 = vadd.f32 %v3499, %v3487
        %v3501 = vadd.f32 %v3500, %v3490
        %v3502 = vadd.f32 %v3501, %v3493
        %v3503 = vmul.f32 %v3466, %v3133
        %v3504 = vmul.f32 %v3469, %v3135
        %v3505 = vadd.f32 %v3503, %v3504
        %v3506 = vmul.f32 %v3472, %v3210
        %v3507 = vadd.f32 %v3505, %v3506
        %v3508 = vmul.f32 %v3475, %v3212
        %v3509 = vadd.f32 %v3507, %v3508
        %v3510 = vmul.f32 %v3478, %v3287
        %v3511 = vadd.f32 %v3509, %v3510
        %v3512 = vmul.f32 %v3481, %v3289
        %v3513 = vadd.f32 %v3511, %v3512
        %v3514 = vmul.f32 %v3484, %v3364
        %v3515 = vadd.f32 %v3513, %v3514
        %v3516 = vmul.f32 %v3487, %v3366
        %v3517 = vadd.f32 %v3515, %v3516
        %v3518 = vmul.f32 %v3490, %v3441
        %v3519 = vadd.f32 %v3517, %v3518
        %v3520 = vmul.f32 %v3493, %v3443
        %v3521 = vadd.f32 %v3519, %v3520
        %v3522 = vrcp.pop %v3502
        %v3523 = vmul.f32 %v3521, %v3522
        %s3524 = scalar_lea.vmem [#allocation2], 168
        %v3525 = vld [vmem:[%s3524] sm:$0xff]
        %s3526 = scalar_lea.vmem [#allocation5], 168
        %v3527 = vld [vmem:[%s3526] sm:$0xff]
        %3529 = vset.pattern.permute.xlu0 0
        %3530 = vperm.xlu0 %3529, %v3527
        %v3531 = vpop.permute.xlu0 %3530
        %v3534 = vsel %vm415, %v3525, 0
        %3536 = vmatprep.subr.mxu0 0.0
        %3537 = vmatpush1.msra.mxu0 0.0
        %3538 = vmatprep.subr.mxu0 0.0
        %3539 = vmatpush1.msra.mxu0 0.0
        %3540 = vmatprep.subr.mxu0 0.0
        %3541 = vmatpush1.msra.mxu0 0.0
        %3542 = vmatprep.subr.mxu0 0.0
        %3543 = vmatpush1.msra.mxu0 0.0
        %3544 = vmatprep.subr.mxu0 0.0
        %3545 = vmatpush1.msra.mxu0 0.0
        %3546 = vmatprep.subr.mxu0 0.0
        %3547 = vmatpush1.msra.mxu0 0.0
        %3548 = vmatprep.subr.mxu0 0.0
        %3549 = vmatpush1.msra.mxu0 0.0
        %3550 = vmatprep.subr.mxu0 0.0
        %3551 = vmatpush1.msra.mxu0 0.0
        %3552 = vmatprep.subr.mxu0 0.0
        %3553 = vmatpush1.msra.mxu0 0.0
        %3554 = vmatprep.subr.mxu0 0.0
        %3555 = vmatpush1.msra.mxu0 0.0
        %3556 = vmatprep.subr.mxu0 0.0
        %3557 = vmatpush1.msra.mxu0 0.0
        %3558 = vmatprep.subr.mxu0 0.0
        %3559 = vmatpush1.msra.mxu0 0.0
        %3560 = vmatprep.subr.mxu0 0.0
        %3561 = vmatpush1.msra.mxu0 0.0
        %3562 = vmatprep.subr.mxu0 0.0
        %3563 = vmatpush1.msra.mxu0 0.0
        %3564 = vmatprep.subr.mxu0 0.0
        %3565 = vmatpush1.msra.mxu0 0.0
        %3566 = vmatprep.subr.mxu0 0.0
        %3567 = vmatpush1.msra.mxu0 %v3523
        %3568 = vmatprep.subr.mxu0 0.0
        %3569 = vmatpush2.msra.mxu0 0.0
        %3570 = vmatprep.subr.mxu0 0.0
        %3571 = vmatpush2.msra.mxu0 0.0
        %3572 = vmatprep.subr.mxu0 0.0
        %3573 = vmatpush2.msra.mxu0 0.0
        %3574 = vmatprep.subr.mxu0 0.0
        %3575 = vmatpush2.msra.mxu0 0.0
        %3576 = vmatprep.subr.mxu0 0.0
        %3577 = vmatpush2.msra.mxu0 0.0
        %3578 = vmatprep.subr.mxu0 0.0
        %3579 = vmatpush2.msra.mxu0 0.0
        %3580 = vmatprep.subr.mxu0 0.0
        %3581 = vmatpush2.msra.mxu0 0.0
        %3582 = vmatprep.subr.mxu0 0.0
        %3583 = vmatpush2.msra.mxu0 0.0
        %3584 = vmatprep.subr.mxu0 0.0
        %3585 = vmatpush2.msra.mxu0 0.0
        %3586 = vmatprep.subr.mxu0 0.0
        %3587 = vmatpush2.msra.mxu0 0.0
        %3588 = vmatprep.subr.mxu0 0.0
        %3589 = vmatpush2.msra.mxu0 0.0
        %3590 = vmatprep.subr.mxu0 0.0
        %3591 = vmatpush2.msra.mxu0 0.0
        %3592 = vmatprep.subr.mxu0 0.0
        %3593 = vmatpush2.msra.mxu0 0.0
        %3594 = vmatprep.subr.mxu0 0.0
        %3595 = vmatpush2.msra.mxu0 0.0
        %3596 = vmatprep.subr.mxu0 0.0
        %3597 = vmatpush2.msra.mxu0 0.0
        %3598 = vmatprep.subr.mxu0 0.0
        %3599 = vmatpush2.msra.mxu0 0.0
        %3600 = vmatprep.mubr.f32.mxu0 0.0
        %3601 = vmatmul.mubr.f32.gmra.mxu0 %v3534
        %v3602 = vpop.f32.mrf.mxu0
        %v3603 = vadd.f32 %v3531, %v3602
        %v3604 = vpop.f32.mrf.mxu0
        %3605 = vdwg.mxu0
        %v3606 = vadd.f32 %v2957, %v3603
        %s3607 = scalar_lea.vmem [#allocation2], 192
        %v3608 = vld [vmem:[%s3607] sm:$0xff]
        %v3609 = vld [vmem:[%s3607 + $0x8] sm:$0xff]
        %s3610 = scalar_lea.vmem [#allocation5], 192
        %v3611 = vld [vmem:[%s3610] sm:$0xff]
        %v3612 = vld [vmem:[%s3610 + $0x8] sm:$0xff]
        %3614 = vset.pattern.permute.xlu0 0
        %3615 = vperm.xlu0 %3614, %v3611
        %v3616 = vpop.permute.xlu0 %3615
        %3619 = vset.pattern.permute.xlu0 0
        %3620 = vperm.xlu0 %3619, %v3612
        %v3621 = vpop.permute.xlu0 %3620
        %v3624 = vsel %vm415, %v3608, 0
        %v3627 = vsel %vm415, %v3609, 0
        %3629 = vmatprep.subr.mxu0 0.0
        %3630 = vmatpush1.msra.mxu0 0.0
        %3631 = vmatprep.subr.mxu0 0.0
        %3632 = vmatpush1.msra.mxu0 0.0
        %3633 = vmatprep.subr.mxu0 0.0
        %3634 = vmatpush1.msra.mxu0 0.0
        %3635 = vmatprep.subr.mxu0 0.0
        %3636 = vmatpush1.msra.mxu0 0.0
        %3637 = vmatprep.subr.mxu0 0.0
        %3638 = vmatpush1.msra.mxu0 0.0
        %3639 = vmatprep.subr.mxu0 0.0
        %3640 = vmatpush1.msra.mxu0 0.0
        %3641 = vmatprep.subr.mxu0 0.0
        %3642 = vmatpush1.msra.mxu0 0.0
        %3643 = vmatprep.subr.mxu0 0.0
        %3644 = vmatpush1.msra.mxu0 0.0
        %3645 = vmatprep.subr.mxu0 0.0
        %3646 = vmatpush1.msra.mxu0 0.0
        %3647 = vmatprep.subr.mxu0 0.0
        %3648 = vmatpush1.msra.mxu0 0.0
        %3649 = vmatprep.subr.mxu0 0.0
        %3650 = vmatpush1.msra.mxu0 0.0
        %3651 = vmatprep.subr.mxu0 0.0
        %3652 = vmatpush1.msra.mxu0 0.0
        %3653 = vmatprep.subr.mxu0 0.0
        %3654 = vmatpush1.msra.mxu0 0.0
        %3655 = vmatprep.subr.mxu0 0.0
        %3656 = vmatpush1.msra.mxu0 0.0
        %3657 = vmatprep.subr.mxu0 0.0
        %3658 = vmatpush1.msra.mxu0 0.0
        %3659 = vmatprep.subr.mxu0 0.0
        %3660 = vmatpush1.msra.mxu0 %v3606
        %3661 = vmatprep.subr.mxu0 0.0
        %3662 = vmatpush2.msra.mxu0 0.0
        %3663 = vmatprep.subr.mxu0 0.0
        %3664 = vmatpush2.msra.mxu0 0.0
        %3665 = vmatprep.subr.mxu0 0.0
        %3666 = vmatpush2.msra.mxu0 0.0
        %3667 = vmatprep.subr.mxu0 0.0
        %3668 = vmatpush2.msra.mxu0 0.0
        %3669 = vmatprep.subr.mxu0 0.0
        %3670 = vmatpush2.msra.mxu0 0.0
        %3671 = vmatprep.subr.mxu0 0.0
        %3672 = vmatpush2.msra.mxu0 0.0
        %3673 = vmatprep.subr.mxu0 0.0
        %3674 = vmatpush2.msra.mxu0 0.0
        %3675 = vmatprep.subr.mxu0 0.0
        %3676 = vmatpush2.msra.mxu0 0.0
        %3677 = vmatprep.subr.mxu0 0.0
        %3678 = vmatpush2.msra.mxu0 0.0
        %3679 = vmatprep.subr.mxu0 0.0
        %3680 = vmatpush2.msra.mxu0 0.0
        %3681 = vmatprep.subr.mxu0 0.0
        %3682 = vmatpush2.msra.mxu0 0.0
        %3683 = vmatprep.subr.mxu0 0.0
        %3684 = vmatpush2.msra.mxu0 0.0
        %3685 = vmatprep.subr.mxu0 0.0
        %3686 = vmatpush2.msra.mxu0 0.0
        %3687 = vmatprep.subr.mxu0 0.0
        %3688 = vmatpush2.msra.mxu0 0.0
        %3689 = vmatprep.subr.mxu0 0.0
        %3690 = vmatpush2.msra.mxu0 0.0
        %3691 = vmatprep.subr.mxu0 0.0
        %3692 = vmatpush2.msra.mxu0 0.0
        %3693 = vmatprep.mubr.f32.mxu0 0.0
        %3694 = vmatmul.mubr.f32.gmra.mxu0 %v3624
        %v3695 = vpop.f32.mrf.mxu0
        %v3696 = vadd.f32 %v3616, %v3695
        %v3697 = vpop.f32.mrf.mxu0
        %3698 = vmatprep.mubr.f32.mxu0 0.0
        %3699 = vmatmul.mubr.f32.gmra.mxu0 %v3627
        %v3700 = vpop.f32.mrf.mxu0
        %v3701 = vadd.f32 %v3621, %v3700
        %v3702 = vpop.f32.mrf.mxu0
        %3703 = vdwg.mxu0
        %s3704 = scalar_lea.vmem [#allocation2], 216
        %v3705 = vld [vmem:[%s3704] sm:$0xff]
        %s3706 = scalar_lea.vmem [#allocation5], 216
        %v3707 = vld [vmem:[%s3706] sm:$0xff]
        %3709 = vset.pattern.permute.xlu0 0
        %3710 = vperm.xlu0 %3709, %v3707
        %v3711 = vpop.permute.xlu0 %3710
        %v3714 = vsel %vm2423, %v3705, 0
        %3716 = vmatprep.subr.mxu0 0.0
        %3717 = vmatpush1.msra.mxu0 0.0
        %3718 = vmatprep.subr.mxu0 0.0
        %3719 = vmatpush1.msra.mxu0 0.0
        %3720 = vmatprep.subr.mxu0 0.0
        %3721 = vmatpush1.msra.mxu0 0.0
        %3722 = vmatprep.subr.mxu0 0.0
        %3723 = vmatpush1.msra.mxu0 0.0
        %3724 = vmatprep.subr.mxu0 0.0
        %3725 = vmatpush1.msra.mxu0 0.0
        %3726 = vmatprep.subr.mxu0 0.0
        %3727 = vmatpush1.msra.mxu0 0.0
        %3728 = vmatprep.subr.mxu0 0.0
        %3729 = vmatpush1.msra.mxu0 0.0
        %3730 = vmatprep.subr.mxu0 0.0
        %3731 = vmatpush1.msra.mxu0 0.0
        %3732 = vmatprep.subr.mxu0 0.0
        %3733 = vmatpush1.msra.mxu0 0.0
        %3734 = vmatprep.subr.mxu0 0.0
        %3735 = vmatpush1.msra.mxu0 0.0
        %3736 = vmatprep.subr.mxu0 0.0
        %3737 = vmatpush1.msra.mxu0 0.0
        %3738 = vmatprep.subr.mxu0 0.0
        %3739 = vmatpush1.msra.mxu0 0.0
        %3740 = vmatprep.subr.mxu0 0.0
        %3741 = vmatpush1.msra.mxu0 0.0
        %3742 = vmatprep.subr.mxu0 0.0
        %3743 = vmatpush1.msra.mxu0 0.0
        %3744 = vmatprep.subr.mxu0 0.0
        %3745 = vmatpush1.msra.mxu0 %v3701
        %3746 = vmatprep.subr.mxu0 0.0
        %3747 = vmatpush1.msra.mxu0 %v3696
        %3748 = vmatprep.subr.mxu0 0.0
        %3749 = vmatpush2.msra.mxu0 0.0
        %3750 = vmatprep.subr.mxu0 0.0
        %3751 = vmatpush2.msra.mxu0 0.0
        %3752 = vmatprep.subr.mxu0 0.0
        %3753 = vmatpush2.msra.mxu0 0.0
        %3754 = vmatprep.subr.mxu0 0.0
        %3755 = vmatpush2.msra.mxu0 0.0
        %3756 = vmatprep.subr.mxu0 0.0
        %3757 = vmatpush2.msra.mxu0 0.0
        %3758 = vmatprep.subr.mxu0 0.0
        %3759 = vmatpush2.msra.mxu0 0.0
        %3760 = vmatprep.subr.mxu0 0.0
        %3761 = vmatpush2.msra.mxu0 0.0
        %3762 = vmatprep.subr.mxu0 0.0
        %3763 = vmatpush2.msra.mxu0 0.0
        %3764 = vmatprep.subr.mxu0 0.0
        %3765 = vmatpush2.msra.mxu0 0.0
        %3766 = vmatprep.subr.mxu0 0.0
        %3767 = vmatpush2.msra.mxu0 0.0
        %3768 = vmatprep.subr.mxu0 0.0
        %3769 = vmatpush2.msra.mxu0 0.0
        %3770 = vmatprep.subr.mxu0 0.0
        %3771 = vmatpush2.msra.mxu0 0.0
        %3772 = vmatprep.subr.mxu0 0.0
        %3773 = vmatpush2.msra.mxu0 0.0
        %3774 = vmatprep.subr.mxu0 0.0
        %3775 = vmatpush2.msra.mxu0 0.0
        %3776 = vmatprep.subr.mxu0 0.0
        %3777 = vmatpush2.msra.mxu0 0.0
        %3778 = vmatprep.subr.mxu0 0.0
        %3779 = vmatpush2.msra.mxu0 0.0
        %3780 = vmatprep.mubr.f32.mxu0 0.0
        %3781 = vmatmul.mubr.f32.gmra.mxu0 %v3714
        %v3782 = vpop.f32.mrf.mxu0
        %v3783 = vadd.f32 %v3711, %v3782
        %v3784 = vpop.f32.mrf.mxu0
        %3785 = vdwg.mxu0
        %v3786 = vadd.f32 %v3606, %v3783
        %v3787 = vsub.f32 0.0, %v3786
        %v3788 = vmul.f32 %v3787, 1.442695
        %v3789 = vpow.pop %v3788
        %v3790 = vadd.f32 %v3789, 1.0
        %v3791 = vrcp.pop %v3790
        %v3792 = vmul.f32 1.0, %v3791
        %3793 = vst [vmem:[%s281] sm:$0xff] %v3792
        %s3794 = sand.u32 %s144, 1
        %s3795 = scalar_lea.sflag [#allocation4], %s3794
        %s3796 = sand.u32 %s144, 1
        %s3797 = smul.addr %s3796, 8
        %s3798 = scalar_lea.vmem [#allocation8], %s3797
        // Predicated region
        $region53: #{tranad_basic_forward.1} parent=39 // pred_check
          %p3799 = pneg %p154
        $region54: #{tranad_basic_forward.1} parent=39 // pred_check_branch
          %3801 = sbr.rel (%p3799) target = $region56
        $region55: #{tranad_basic_forward.1} parent=39 // pred_region
          %s3803 = ssub.s32 128, 128
          %3804 = vsyncadd %s3795, %s3803
          %s3805 = smul.addr %s21, 128
          %s3806 = scalar_lea.hbm %s5, %s3805
          %s3808 = sshll.u32 %s3798, 4
          %s3809 = int_to_ptr.vmem [resolvable:$true] %s3808
          %3811 = dma.vmem_to_hbm [thread:$0]  %s3809, 128, %s3806, %s3795
        $region56: #{tranad_basic_forward.1} parent=39 // pred_fallthru
          _
      $region40: #{tranad_basic_forward.1} parent=5 // pred_fallthru
        _
      %p3812 = scmp.le.s32.totalorder 2, %s16
      // Predicated region
      $region57: #{tranad_basic_forward.1} parent=5 // pred_check
        %p3813 = pneg %p3812
      $region58: #{tranad_basic_forward.1} parent=5 // pred_check_branch
        %3815 = sbr.rel (%p3813) target = $region60
      $region59: #{tranad_basic_forward.1} parent=5 // pred_region
        %s3816 = ssub.s32 %s16, 2
        // Predicated region
        $region61: #{tranad_basic_forward.1} parent=59 // pred_check
          %p3817 = pneg %p160
        $region62: #{tranad_basic_forward.1} parent=59 // pred_check_branch
          %3819 = sbr.rel (%p3817) target = $region64
        $region63: #{tranad_basic_forward.1} parent=59 // pred_region
          %s3820 = sand.u32 %s145, 1
          %s3821 = scalar_lea.sflag [#allocation4], %s3820
          %s3822 = sand.u32 %s145, 1
          %s3823 = smul.addr %s3822, 8
          %s3824 = scalar_lea.vmem [#allocation8], %s3823
          %3825 = dma.done %s3821, 128
        $region64: #{tranad_basic_forward.1} parent=59 // pred_fallthru
          _
      $region60: #{tranad_basic_forward.1} parent=5 // pred_fallthru
        _
    $region6: #{tranad_basic_forward.1} parent=1 // loop_footer
      %s20 = sadd.s32 1, %s16
    $region7: #{tranad_basic_forward.1} parent=1 // loop_footer_branch
      %15 = sbr.rel target = $region3
    $region8: #{tranad_basic_forward.1} parent=1 // loop_exit
      _
    %3826 = vsyncpa [#allocation3], 1
    %s3827 = scalar_lea.sflag [#allocation3], 1
    %3828 = vsyncpa %s3827, 1
    %3829 = vsyncpa [#allocation6], 1
    %3830 = vsyncpa [#allocation4], 1
    %s3831 = scalar_lea.sflag [#allocation4], 1
    %3832 = vsyncpa %s3831, 1

</llo_original>
